<compile_context>
chip_gen: v7x
topology: tpu7x:2x2x1
jax: 0.10.0
libtpu: 0.0.40
codegen_flags: <defaults>
</compile_context>

<pallas_src>
import functools

import jax
import jax.numpy as jnp
from jax.experimental import pallas as pl
from jax.experimental.pallas import tpu as pltpu

LANE = 128
_VMEM_LIMIT = 32 * 1024 * 1024  # safe on v5e/v6e/v7x; toy blocks use far less


def _round_up(x, m):
    return (x + m - 1) // m * m


# ----------------------------------------------------------------------------
# Fused 1x1 conv (channel matmul) + per-image partial BN statistics.
# Optionally applies the previous stage's CBN affine + ReLU to the input tile
# (fusing the elementwise pass into its consumer's prologue).
# ----------------------------------------------------------------------------
def _matmul_stats(a_bf16, w_ref, y_ref, psum_ref, psq_ref):
    y = jnp.dot(a_bf16, w_ref[...], preferred_element_type=jnp.float32)
    y_ref[0] = y.astype(y_ref.dtype)
    psum_ref[0] = jnp.sum(y, axis=0, keepdims=True)
    psq_ref[0] = jnp.sum(y * y, axis=0, keepdims=True)


def _conv1x1_kernel(x_ref, w_ref, y_ref, psum_ref, psq_ref):
    _matmul_stats(x_ref[0], w_ref, y_ref, psum_ref, psq_ref)


def _cbn_relu_conv1x1_kernel(x_ref, scale_ref, shift_ref, w_ref,
                             y_ref, psum_ref, psq_ref):
    a = x_ref[0].astype(jnp.float32) * scale_ref[...] + shift_ref[...]
    a = jnp.maximum(a, 0.0).astype(jnp.bfloat16)
    _matmul_stats(a, w_ref, y_ref, psum_ref, psq_ref)


def conv1x1_stats(x, w, scale=None, shift=None):
    """x: (N, HW, Cin) bf16, w: (Cin, Cout) bf16 -> (y bf16, psum f32, psq f32)."""
    N, HW, Cin = x.shape
    Cout = w.shape[1]
    fused = scale is not None

    x_spec = pl.BlockSpec((1, HW, Cin), lambda n: (n, 0, 0))
    w_spec = pl.BlockSpec((Cin, Cout), lambda n: (0, 0))
    ss_spec = pl.BlockSpec((1, Cin), lambda n: (0, 0))

    if fused:
        kernel = _cbn_relu_conv1x1_kernel
        in_specs = [x_spec, ss_spec, ss_spec, w_spec]
        args = (x, scale, shift, w)
    else:
        kernel = _conv1x1_kernel
        in_specs = [x_spec, w_spec]
        args = (x, w)

    return pl.pallas_call(
        kernel,
        out_shape=(
            jax.ShapeDtypeStruct((N, HW, Cout), jnp.bfloat16),
            jax.ShapeDtypeStruct((N, 1, Cout), jnp.float32),
            jax.ShapeDtypeStruct((N, 1, Cout), jnp.float32),
        ),
        grid_spec=pltpu.PrefetchScalarGridSpec(
            num_scalar_prefetch=0,
            grid=(N,),
            in_specs=in_specs,
            out_specs=(
                pl.BlockSpec((1, HW, Cout), lambda n: (n, 0, 0)),
                pl.BlockSpec((1, 1, Cout), lambda n: (n, 0, 0)),
                pl.BlockSpec((1, 1, Cout), lambda n: (n, 0, 0)),
            ),
        ),
        compiler_params=pltpu.CompilerParams(
            dimension_semantics=("parallel",),
            vmem_limit_bytes=_VMEM_LIMIT,
        ),
    )(*args)


# ----------------------------------------------------------------------------
# Fused 3x3 conv (stride 1, pad 1): bn-affine+ReLU prologue, in-VMEM halo,
# 9 shifted matmuls, + per-image partial BN statistics. No im2col in HBM.
# ----------------------------------------------------------------------------
def _conv3x3_kernel(y1_ref, m0_ref, m2_ref, scale_ref, shift_ref, w2_ref,
                    y2_ref, psum_ref, psq_ref, apad_ref, *, H, W, P0):
    HW = H * W
    C1 = y1_ref.shape[2]
    C2 = y2_ref.shape[2]

    # Previous stage's conditional BN + ReLU, fused as a prologue (f32 VPU).
    a = y1_ref[0].astype(jnp.float32) * scale_ref[...] + shift_ref[...]
    a = jnp.maximum(a, 0.0).astype(jnp.bfloat16)

    # Stage the activation into a zero-haloed flat (row-major) VMEM buffer so
    # every conv tap becomes a shifted 2-D slice.
    apad_ref[pl.ds(0, P0), :] = jnp.zeros((P0, C1), jnp.bfloat16)
    apad_ref[pl.ds(P0 + HW, P0), :] = jnp.zeros((P0, C1), jnp.bfloat16)
    apad_ref[pl.ds(P0, HW), :] = a

    m0 = m0_ref[...]  # (HW, 1) 0/1: kills wrap-around rows for dx == 0 taps
    m2 = m2_ref[...]  # (HW, 1) 0/1: kills wrap-around rows for dx == 2 taps

    acc = jnp.zeros((HW, C2), jnp.float32)
    for dy in range(3):
        for dx in range(3):
            s = (dy - 1) * W + (dx - 1)
            sl = apad_ref[pl.ds(P0 + s, HW), :]
            wt = w2_ref[pl.ds((dy * 3 + dx) * C1, C1), :]
            contrib = jnp.dot(sl, wt, preferred_element_type=jnp.float32)
            if dx == 0:
                contrib = contrib * m0
            elif dx == 2:
                contrib = contrib * m2
            acc = acc + contrib

    y2_ref[0] = acc.astype(y2_ref.dtype)
    psum_ref[0] = jnp.sum(acc, axis=0, keepdims=True)
    psq_ref[0] = jnp.sum(acc * acc, axis=0, keepdims=True)


def conv3x3_stats(y1, scale, shift, w2, H, W):
    """y1: (N, HW, C1) bf16, w2: (9*C1, C2) bf16 -> (y2 bf16, psum f32, psq f32)."""
    N, HW, C1 = y1.shape
    assert HW == H * W
    C2 = w2.shape[1]
    P0 = _round_up(W + 1, 8)

    wpos = jnp.arange(HW, dtype=jnp.int32) % W
    m0 = (wpos != 0).astype(jnp.float32)[:, None]
    m2 = (wpos != W - 1).astype(jnp.float32)[:, None]

    kernel = functools.partial(_conv3x3_kernel, H=H, W=W, P0=P0)

    return pl.pallas_call(
        kernel,
        out_shape=(
            jax.ShapeDtypeStruct((N, HW, C2), jnp.bfloat16),
            jax.ShapeDtypeStruct((N, 1, C2), jnp.float32),
            jax.ShapeDtypeStruct((N, 1, C2), jnp.float32),
        ),
        grid_spec=pltpu.PrefetchScalarGridSpec(
            num_scalar_prefetch=0,
            grid=(N,),
            in_specs=[
                pl.BlockSpec((1, HW, C1), lambda n: (n, 0, 0)),
                pl.BlockSpec((HW, 1), lambda n: (0, 0)),
                pl.BlockSpec((HW, 1), lambda n: (0, 0)),
                pl.BlockSpec((1, C1), lambda n: (0, 0)),
                pl.BlockSpec((1, C1), lambda n: (0, 0)),
                pl.BlockSpec((9 * C1, C2), lambda n: (0, 0)),
            ],
            out_specs=(
                pl.BlockSpec((1, HW, C2), lambda n: (n, 0, 0)),
                pl.BlockSpec((1, 1, C2), lambda n: (n, 0, 0)),
                pl.BlockSpec((1, 1, C2), lambda n: (n, 0, 0)),
            ),
            scratch_shapes=[pltpu.VMEM((P0 + HW + P0, C1), jnp.bfloat16)],
        ),
        compiler_params=pltpu.CompilerParams(
            dimension_semantics=("parallel",),
            vmem_limit_bytes=_VMEM_LIMIT,
        ),
    )(y1, m0, m2, scale, shift, w2)


# ----------------------------------------------------------------------------
# Final fused bn3-affine + residual add + ReLU.
# ----------------------------------------------------------------------------
def _cbn_add_relu_kernel(y_ref, scale_ref, shift_ref, id_ref, o_ref):
    y = y_ref[0].astype(jnp.float32) * scale_ref[...] + shift_ref[...]
    y = y + id_ref[0].astype(jnp.float32)
    o_ref[0] = jnp.maximum(y, 0.0)


def cbn_add_relu(y, scale, shift, identity):
    N, HW, C = y.shape
    return pl.pallas_call(
        _cbn_add_relu_kernel,
        out_shape=jax.ShapeDtypeStruct((N, HW, C), jnp.float32),
        grid_spec=pltpu.PrefetchScalarGridSpec(
            num_scalar_prefetch=0,
            grid=(N,),
            in_specs=[
                pl.BlockSpec((1, HW, C), lambda n: (n, 0, 0)),
                pl.BlockSpec((1, C), lambda n: (0, 0)),
                pl.BlockSpec((1, C), lambda n: (0, 0)),
                pl.BlockSpec((1, HW, C), lambda n: (n, 0, 0)),
            ],
            out_specs=pl.BlockSpec((1, HW, C), lambda n: (n, 0, 0)),
        ),
        compiler_params=pltpu.CompilerParams(
            dimension_semantics=("parallel",),
            vmem_limit_bytes=_VMEM_LIMIT,
        ),
    )(y, scale, shift, identity)


# ----------------------------------------------------------------------------
# Conditional BN scale/shift from per-image partial statistics (tiny, in JAX).
# ----------------------------------------------------------------------------
def cbn_scale_shift(attr, cbn, psum, psq, count, eps=1e-5):
    s = jnp.sum(psum, axis=0)   # (1, C)
    q = jnp.sum(psq, axis=0)    # (1, C)
    mean = s / count
    # TODO(synk): E[x^2]-E[x]^2 in f32 can cancel for large channel means; a
    # two-pass (subtract-mean) reduction would be more robust.
    var = jnp.maximum(q / count - mean * mean, 0.0)
    gamma = 1.0 + attr @ cbn["wg"] + cbn["bg"]
    beta = attr @ cbn["wb"] + cbn["bb"]
    scale = gamma[None, :] * jax.lax.rsqrt(var + eps)
    shift = beta[None, :] - mean * scale
    return scale.astype(jnp.float32), shift.astype(jnp.float32)


# ----------------------------------------------------------------------------
# Bottleneck forward
# ----------------------------------------------------------------------------
def bottleneck_forward(x_nchw, attr, params, stride=1, cout=None):
    # TODO(synk): stride != 1 / downsample shortcut path not implemented.
    assert stride == 1, "only stride=1 with identity shortcut is implemented"
    N, Cin, H, W = x_nchw.shape
    cin_p, _ = params["w1"].shape
    cout_p = params["w3"].shape[1]
    assert Cin == cout and cin_p == cout_p, "identity shortcut needs Cin == planes*expansion"

    HW = H * W
    M = N * HW

    # One-time layout conversion: NCHW f32 -> (N, HW, C) channel-padded bf16.
    x = jnp.transpose(x_nchw, (0, 2, 3, 1)).reshape(N, HW, Cin)
    x = jnp.pad(x, ((0, 0), (0, 0), (0, cin_p - Cin))).astype(jnp.bfloat16)
    identity = x

    # conv1 (1x1) + partial BN stats (single fused kernel).
    y1, s1, q1 = conv1x1_stats(x, params["w1"])
    scale1, shift1 = cbn_scale_shift(attr, params["bn1"], s1, q1, M)

    # bn1+ReLU fused into the 3x3 conv's prologue; 3x3 conv = 9 shifted
    # in-VMEM matmuls; + partial BN stats.
    y2, s2, q2 = conv3x3_stats(y1, scale1, shift1, params["w2"], H, W)
    scale2, shift2 = cbn_scale_shift(attr, params["bn2"], s2, q2, M)

    # bn2+ReLU fused into conv3 (1x1) prologue; + partial BN stats.
    y3, s3, q3 = conv1x1_stats(y2, params["w3"], scale2, shift2)
    scale3, shift3 = cbn_scale_shift(attr, params["bn3"], s3, q3, M)

    # bn3 + residual add + final ReLU (remove_last_relu=False).
    out = cbn_add_relu(y3, scale3, shift3, identity)  # (N, HW, cout_p) f32

    out = out[:, :, :cout].reshape(N, H, W, cout)
    return jnp.transpose(out, (0, 3, 1, 2))  # NCHW


# ----------------------------------------------------------------------------
# Deterministic parameter construction (channels padded + cast to bf16 ONCE).
# ----------------------------------------------------------------------------
def make_params(key, inplanes, planes, attr_dim, expansion=4):
    width = planes                      # groups=1, base_width=64 -> width = planes
    cout = planes * expansion
    cin_p = _round_up(inplanes, LANE)
    width_p = _round_up(width, LANE)
    cout_p = _round_up(cout, LANE)
    ks = jax.random.split(key, 6)

    def cbn_params(k, c, c_p):
        k1, k2 = jax.random.split(k)
        wg = 0.1 * jax.random.normal(k1, (attr_dim, c), jnp.float32)
        wb = 0.1 * jax.random.normal(k2, (attr_dim, c), jnp.float32)
        pad = ((0, 0), (0, c_p - c))
        return {
            "wg": jnp.pad(wg, pad),
            "bg": jnp.zeros((c_p,), jnp.float32),
            "wb": jnp.pad(wb, pad),
            "bb": jnp.zeros((c_p,), jnp.float32),
        }

    w1 = 0.1 * jax.random.normal(ks[0], (inplanes, width), jnp.float32)
    w1 = jnp.pad(w1, ((0, cin_p - inplanes), (0, width_p - width))).astype(jnp.bfloat16)

    # 3x3 conv weights: (dy, dx, cin, cout), padded, flattened to (9*Cin_p, Cout_p)
    # so tap (dy, dx) is the row block [(dy*3+dx)*Cin_p, +Cin_p).
    w2 = 0.1 * jax.random.normal(ks[1], (3, 3, width, width), jnp.float32)
    w2 = jnp.pad(w2, ((0, 0), (0, 0), (0, width_p - width), (0, width_p - width)))
    w2 = w2.reshape(9 * width_p, width_p).astype(jnp.bfloat16)

    w3 = 0.1 * jax.random.normal(ks[2], (width, cout), jnp.float32)
    w3 = jnp.pad(w3, ((0, width_p - width), (0, cout_p - cout))).astype(jnp.bfloat16)

    return {
        "w1": w1,
        "w2": w2,
        "w3": w3,
        "bn1": cbn_params(ks[3], width, width_p),
        "bn2": cbn_params(ks[4], width, width_p),
        "bn3": cbn_params(ks[5], cout, cout_p),
    }


if __name__ == "__main__":
    key = jax.random.PRNGKey(0)
    k_x, k_attr, k_p = jax.random.split(key, 3)

    # Small shapes: inplanes = planes * expansion so the identity shortcut matches.
    N, inplanes, planes, H, W = 2, 16, 4, 8, 8
    attr_dim = 8

    x = jax.random.normal(k_x, (N, inplanes, H, W), jnp.float32)  # NCHW
    attributes = jax.random.normal(k_attr, (attr_dim,), jnp.float32)
    params = make_params(k_p, inplanes, planes, attr_dim)

    fwd = jax.jit(functools.partial(bottleneck_forward, stride=1, cout=planes * 4))
    out = fwd(x, attributes, params)
    jax.block_until_ready(out)

    assert out.shape == (N, planes * 4, H, W), out.shape
    print("KERNEL_OK")
</pallas_src>

<mosaic_0001>
module attributes {stable_mosaic.version = 11 : i64} {
  func.func @_conv1x1_kernel(%arg0: i32, %arg1: memref<1x64x128xbf16, #tpu.memory_space<vmem>>, %arg2: memref<128x128xbf16, #tpu.memory_space<vmem>>, %arg3: memref<1x64x128xbf16, #tpu.memory_space<vmem>>, %arg4: memref<1x1x128xf32, #tpu.memory_space<vmem>>, %arg5: memref<1x1x128xf32, #tpu.memory_space<vmem>>) attributes {dimension_semantics = [#tpu.dimension_semantics<parallel>], iteration_bounds = array<i64: 2>, scalar_prefetch = 0 : i64, scratch_operands = 0 : i64, tpu.core_type = #tpu.core_type<tc>, window_params = [{transform_indices = @transform_0, window_bounds = array<i64: 1, 64, 128>}, {pipeline_mode = #tpu.pipeline_mode<synchronous>, transform_indices = @transform_1, window_bounds = array<i64: 128, 128>}, {transform_indices = @transform_2, window_bounds = array<i64: 1, 64, 128>}, {transform_indices = @transform_3, window_bounds = array<i64: 1, 1, 128>}, {transform_indices = @transform_4, window_bounds = array<i64: 1, 1, 128>}]} {
    %c0 = arith.constant 0 : index
    %c0_0 = arith.constant 0 : index
    %c0_1 = arith.constant 0 : index
    %0 = vector.load %arg1[%c0, %c0_0, %c0_1] : memref<1x64x128xbf16, #tpu.memory_space<vmem>>, vector<1x64x128xbf16>
    %1 = vector.shape_cast %0 : vector<1x64x128xbf16> to vector<64x128xbf16>
    %c0_2 = arith.constant 0 : index
    %c0_3 = arith.constant 0 : index
    %2 = vector.load %arg2[%c0_2, %c0_3] : memref<128x128xbf16, #tpu.memory_space<vmem>>, vector<128x128xbf16>
    %cst = arith.constant dense<0.000000e+00> : vector<64x128xf32>
    %3 = tpu.matmul %1, %2, %cst {dimension_numbers = #tpu.dot_dimension_numbers<[1], [0], [0], [1], [0, 0, 1, 1], [], []>} : vector<64x128xbf16>, vector<128x128xbf16>, vector<64x128xf32> -> vector<64x128xf32>
    %4 = arith.truncf %3 : vector<64x128xf32> to vector<64x128xbf16>
    %c0_4 = arith.constant 0 : index
    %c0_5 = arith.constant 0 : index
    %c0_6 = arith.constant 0 : index
    %5 = vector.load %arg3[%c0_4, %c0_5, %c0_6] : memref<1x64x128xbf16, #tpu.memory_space<vmem>>, vector<1x64x128xbf16>
    %6 = vector.shape_cast %5 : vector<1x64x128xbf16> to vector<64x128xbf16>
    %7 = vector.shape_cast %4 : vector<64x128xbf16> to vector<1x64x128xbf16>
    tpu.vector_store %arg3[%c0_4, %c0_5, %c0_6], %7 {strides = array<i32>} : memref<1x64x128xbf16, #tpu.memory_space<vmem>>, vector<1x64x128xbf16>,
    %cst_7 = arith.constant dense<0.000000e+00> : vector<128xf32>
    %8 = vector.multi_reduction <add>, %3, %cst_7 [0] : vector<64x128xf32> to vector<128xf32>
    %9 = vector.shape_cast %8 : vector<128xf32> to vector<1x128xf32>
    %c0_8 = arith.constant 0 : index
    %c0_9 = arith.constant 0 : index
    %c0_10 = arith.constant 0 : index
    %10 = vector.load %arg4[%c0_8, %c0_9, %c0_10] : memref<1x1x128xf32, #tpu.memory_space<vmem>>, vector<1x1x128xf32>
    %11 = vector.shape_cast %10 : vector<1x1x128xf32> to vector<1x128xf32>
    %12 = vector.shape_cast %9 : vector<1x128xf32> to vector<1x1x128xf32>
    tpu.vector_store %arg4[%c0_8, %c0_9, %c0_10], %12 {strides = array<i32>} : memref<1x1x128xf32, #tpu.memory_space<vmem>>, vector<1x1x128xf32>,
    %13 = arith.mulf %3, %3 : vector<64x128xf32>
    %cst_11 = arith.constant dense<0.000000e+00> : vector<128xf32>
    %14 = vector.multi_reduction <add>, %13, %cst_11 [0] : vector<64x128xf32> to vector<128xf32>
    %15 = vector.shape_cast %14 : vector<128xf32> to vector<1x128xf32>
    %c0_12 = arith.constant 0 : index
    %c0_13 = arith.constant 0 : index
    %c0_14 = arith.constant 0 : index
    %16 = vector.load %arg5[%c0_12, %c0_13, %c0_14] : memref<1x1x128xf32, #tpu.memory_space<vmem>>, vector<1x1x128xf32>
    %17 = vector.shape_cast %16 : vector<1x1x128xf32> to vector<1x128xf32>
    %18 = vector.shape_cast %15 : vector<1x128xf32> to vector<1x1x128xf32>
    tpu.vector_store %arg5[%c0_12, %c0_13, %c0_14], %18 {strides = array<i32>} : memref<1x1x128xf32, #tpu.memory_space<vmem>>, vector<1x1x128xf32>,
    return
  }
  func.func @transform_0(%arg0: i32) -> (i32, i32, i32) {
    %c0_i32 = arith.constant 0 : i32
    %c0_i32_0 = arith.constant 0 : i32
    %c0_i32_1 = arith.constant 0 : i32
    return %arg0, %c0_i32, %c0_i32_0 : i32, i32, i32
  }
  func.func @transform_1(%arg0: i32) -> (i32, i32) {
    %c0_i32 = arith.constant 0 : i32
    %c0_i32_0 = arith.constant 0 : i32
    %c0_i32_1 = arith.constant 0 : i32
    return %c0_i32, %c0_i32_0 : i32, i32
  }
  func.func @transform_2(%arg0: i32) -> (i32, i32, i32) {
    %c0_i32 = arith.constant 0 : i32
    %c0_i32_0 = arith.constant 0 : i32
    %c0_i32_1 = arith.constant 0 : i32
    return %arg0, %c0_i32, %c0_i32_0 : i32, i32, i32
  }
  func.func @transform_3(%arg0: i32) -> (i32, i32, i32) {
    %c0_i32 = arith.constant 0 : i32
    %c0_i32_0 = arith.constant 0 : i32
    %c0_i32_1 = arith.constant 0 : i32
    return %arg0, %c0_i32, %c0_i32_0 : i32, i32, i32
  }
  func.func @transform_4(%arg0: i32) -> (i32, i32, i32) {
    %c0_i32 = arith.constant 0 : i32
    %c0_i32_0 = arith.constant 0 : i32
    %c0_i32_1 = arith.constant 0 : i32
    return %arg0, %c0_i32, %c0_i32_0 : i32, i32, i32
  }
}

module attributes {stable_mosaic.version = 11 : i64} {
  func.func @_cbn_add_relu_kernel(%arg0: i32, %arg1: memref<1x64x128xbf16, #tpu.memory_space<vmem>>, %arg2: memref<1x128xf32, #tpu.memory_space<vmem>>, %arg3: memref<1x128xf32, #tpu.memory_space<vmem>>, %arg4: memref<1x64x128xbf16, #tpu.memory_space<vmem>>, %arg5: memref<1x64x128xf32, #tpu.memory_space<vmem>>) attributes {dimension_semantics = [#tpu.dimension_semantics<parallel>], iteration_bounds = array<i64: 2>, scalar_prefetch = 0 : i64, scratch_operands = 0 : i64, tpu.core_type = #tpu.core_type<tc>, window_params = [{transform_indices = @transform_0, window_bounds = array<i64: 1, 64, 128>}, {pipeline_mode = #tpu.pipeline_mode<synchronous>, transform_indices = @transform_1, window_bounds = array<i64: 1, 128>}, {pipeline_mode = #tpu.pipeline_mode<synchronous>, transform_indices = @transform_2, window_bounds = array<i64: 1, 128>}, {transform_indices = @transform_3, window_bounds = array<i64: 1, 64, 128>}, {transform_indices = @transform_4, window_bounds = array<i64: 1, 64, 128>}]} {
    %c0 = arith.constant 0 : index
    %c0_0 = arith.constant 0 : index
    %c0_1 = arith.constant 0 : index
    %0 = vector.load %arg1[%c0, %c0_0, %c0_1] : memref<1x64x128xbf16, #tpu.memory_space<vmem>>, vector<1x64x128xbf16>
    %1 = vector.shape_cast %0 : vector<1x64x128xbf16> to vector<64x128xbf16>
    %2 = arith.extf %1 : vector<64x128xbf16> to vector<64x128xf32>
    %c0_2 = arith.constant 0 : index
    %c0_3 = arith.constant 0 : index
    %3 = vector.load %arg2[%c0_2, %c0_3] : memref<1x128xf32, #tpu.memory_space<vmem>>, vector<1x128xf32>
    %4 = vector.broadcast %3 : vector<1x128xf32> to vector<64x128xf32>
    %5 = arith.mulf %2, %4 : vector<64x128xf32>
    %c0_4 = arith.constant 0 : index
    %c0_5 = arith.constant 0 : index
    %6 = vector.load %arg3[%c0_4, %c0_5] : memref<1x128xf32, #tpu.memory_space<vmem>>, vector<1x128xf32>
    %7 = vector.broadcast %6 : vector<1x128xf32> to vector<64x128xf32>
    %8 = arith.addf %5, %7 : vector<64x128xf32>
    %c0_6 = arith.constant 0 : index
    %c0_7 = arith.constant 0 : index
    %c0_8 = arith.constant 0 : index
    %9 = vector.load %arg4[%c0_6, %c0_7, %c0_8] : memref<1x64x128xbf16, #tpu.memory_space<vmem>>, vector<1x64x128xbf16>
    %10 = vector.shape_cast %9 : vector<1x64x128xbf16> to vector<64x128xbf16>
    %11 = arith.extf %10 : vector<64x128xbf16> to vector<64x128xf32>
    %12 = arith.addf %8, %11 : vector<64x128xf32>
    %cst = arith.constant 0.000000e+00 : f32
    %13 = vector.broadcast %cst : f32 to vector<64x128xf32>
    %14 = arith.maximumf %12, %13 : vector<64x128xf32>
    %c0_9 = arith.constant 0 : index
    %c0_10 = arith.constant 0 : index
    %c0_11 = arith.constant 0 : index
    %15 = vector.load %arg5[%c0_9, %c0_10, %c0_11] : memref<1x64x128xf32, #tpu.memory_space<vmem>>, vector<1x64x128xf32>
    %16 = vector.shape_cast %15 : vector<1x64x128xf32> to vector<64x128xf32>
    %17 = vector.shape_cast %14 : vector<64x128xf32> to vector<1x64x128xf32>
    tpu.vector_store %arg5[%c0_9, %c0_10, %c0_11], %17 {strides = array<i32>} : memref<1x64x128xf32, #tpu.memory_space<vmem>>, vector<1x64x128xf32>,
    return
  }
  func.func @transform_0(%arg0: i32) -> (i32, i32, i32) {
    %c0_i32 = arith.constant 0 : i32
    %c0_i32_0 = arith.constant 0 : i32
    %c0_i32_1 = arith.constant 0 : i32
    return %arg0, %c0_i32, %c0_i32_0 : i32, i32, i32
  }
  func.func @transform_1(%arg0: i32) -> (i32, i32) {
    %c0_i32 = arith.constant 0 : i32
    %c0_i32_0 = arith.constant 0 : i32
    %c0_i32_1 = arith.constant 0 : i32
    return %c0_i32, %c0_i32_0 : i32, i32
  }
  func.func @transform_2(%arg0: i32) -> (i32, i32) {
    %c0_i32 = arith.constant 0 : i32
    %c0_i32_0 = arith.constant 0 : i32
    %c0_i32_1 = arith.constant 0 : i32
    return %c0_i32, %c0_i32_0 : i32, i32
  }
  func.func @transform_3(%arg0: i32) -> (i32, i32, i32) {
    %c0_i32 = arith.constant 0 : i32
    %c0_i32_0 = arith.constant 0 : i32
    %c0_i32_1 = arith.constant 0 : i32
    return %arg0, %c0_i32, %c0_i32_0 : i32, i32, i32
  }
  func.func @transform_4(%arg0: i32) -> (i32, i32, i32) {
    %c0_i32 = arith.constant 0 : i32
    %c0_i32_0 = arith.constant 0 : i32
    %c0_i32_1 = arith.constant 0 : i32
    return %arg0, %c0_i32, %c0_i32_0 : i32, i32, i32
  }
}

module attributes {stable_mosaic.version = 11 : i64} {
  func.func @_cbn_relu_conv1x1_kernel(%arg0: i32, %arg1: memref<1x64x128xbf16, #tpu.memory_space<vmem>>, %arg2: memref<1x128xf32, #tpu.memory_space<vmem>>, %arg3: memref<1x128xf32, #tpu.memory_space<vmem>>, %arg4: memref<128x128xbf16, #tpu.memory_space<vmem>>, %arg5: memref<1x64x128xbf16, #tpu.memory_space<vmem>>, %arg6: memref<1x1x128xf32, #tpu.memory_space<vmem>>, %arg7: memref<1x1x128xf32, #tpu.memory_space<vmem>>) attributes {dimension_semantics = [#tpu.dimension_semantics<parallel>], iteration_bounds = array<i64: 2>, scalar_prefetch = 0 : i64, scratch_operands = 0 : i64, tpu.core_type = #tpu.core_type<tc>, window_params = [{transform_indices = @transform_0, window_bounds = array<i64: 1, 64, 128>}, {pipeline_mode = #tpu.pipeline_mode<synchronous>, transform_indices = @transform_1, window_bounds = array<i64: 1, 128>}, {pipeline_mode = #tpu.pipeline_mode<synchronous>, transform_indices = @transform_2, window_bounds = array<i64: 1, 128>}, {pipeline_mode = #tpu.pipeline_mode<synchronous>, transform_indices = @transform_3, window_bounds = array<i64: 128, 128>}, {transform_indices = @transform_4, window_bounds = array<i64: 1, 64, 128>}, {transform_indices = @transform_5, window_bounds = array<i64: 1, 1, 128>}, {transform_indices = @transform_6, window_bounds = array<i64: 1, 1, 128>}]} {
    %c0 = arith.constant 0 : index
    %c0_0 = arith.constant 0 : index
    %c0_1 = arith.constant 0 : index
    %0 = vector.load %arg1[%c0, %c0_0, %c0_1] : memref<1x64x128xbf16, #tpu.memory_space<vmem>>, vector<1x64x128xbf16>
    %1 = vector.shape_cast %0 : vector<1x64x128xbf16> to vector<64x128xbf16>
    %2 = arith.extf %1 : vector<64x128xbf16> to vector<64x128xf32>
    %c0_2 = arith.constant 0 : index
    %c0_3 = arith.constant 0 : index
    %3 = vector.load %arg2[%c0_2, %c0_3] : memref<1x128xf32, #tpu.memory_space<vmem>>, vector<1x128xf32>
    %4 = vector.broadcast %3 : vector<1x128xf32> to vector<64x128xf32>
    %5 = arith.mulf %2, %4 : vector<64x128xf32>
    %c0_4 = arith.constant 0 : index
    %c0_5 = arith.constant 0 : index
    %6 = vector.load %arg3[%c0_4, %c0_5] : memref<1x128xf32, #tpu.memory_space<vmem>>, vector<1x128xf32>
    %7 = vector.broadcast %6 : vector<1x128xf32> to vector<64x128xf32>
    %8 = arith.addf %5, %7 : vector<64x128xf32>
    %cst = arith.constant 0.000000e+00 : f32
    %9 = vector.broadcast %cst : f32 to vector<64x128xf32>
    %10 = arith.maximumf %8, %9 : vector<64x128xf32>
    %11 = arith.truncf %10 : vector<64x128xf32> to vector<64x128xbf16>
    %c0_6 = arith.constant 0 : index
    %c0_7 = arith.constant 0 : index
    %12 = vector.load %arg4[%c0_6, %c0_7] : memref<128x128xbf16, #tpu.memory_space<vmem>>, vector<128x128xbf16>
    %cst_8 = arith.constant dense<0.000000e+00> : vector<64x128xf32>
    %13 = tpu.matmul %11, %12, %cst_8 {dimension_numbers = #tpu.dot_dimension_numbers<[1], [0], [0], [1], [0, 0, 1, 1], [], []>} : vector<64x128xbf16>, vector<128x128xbf16>, vector<64x128xf32> -> vector<64x128xf32>
    %14 = arith.truncf %13 : vector<64x128xf32> to vector<64x128xbf16>
    %c0_9 = arith.constant 0 : index
    %c0_10 = arith.constant 0 : index
    %c0_11 = arith.constant 0 : index
    %15 = vector.load %arg5[%c0_9, %c0_10, %c0_11] : memref<1x64x128xbf16, #tpu.memory_space<vmem>>, vector<1x64x128xbf16>
    %16 = vector.shape_cast %15 : vector<1x64x128xbf16> to vector<64x128xbf16>
    %17 = vector.shape_cast %14 : vector<64x128xbf16> to vector<1x64x128xbf16>
    tpu.vector_store %arg5[%c0_9, %c0_10, %c0_11], %17 {strides = array<i32>} : memref<1x64x128xbf16, #tpu.memory_space<vmem>>, vector<1x64x128xbf16>,
    %cst_12 = arith.constant dense<0.000000e+00> : vector<128xf32>
    %18 = vector.multi_reduction <add>, %13, %cst_12 [0] : vector<64x128xf32> to vector<128xf32>
    %19 = vector.shape_cast %18 : vector<128xf32> to vector<1x128xf32>
    %c0_13 = arith.constant 0 : index
    %c0_14 = arith.constant 0 : index
    %c0_15 = arith.constant 0 : index
    %20 = vector.load %arg6[%c0_13, %c0_14, %c0_15] : memref<1x1x128xf32, #tpu.memory_space<vmem>>, vector<1x1x128xf32>
    %21 = vector.shape_cast %20 : vector<1x1x128xf32> to vector<1x128xf32>
    %22 = vector.shape_cast %19 : vector<1x128xf32> to vector<1x1x128xf32>
    tpu.vector_store %arg6[%c0_13, %c0_14, %c0_15], %22 {strides = array<i32>} : memref<1x1x128xf32, #tpu.memory_space<vmem>>, vector<1x1x128xf32>,
    %23 = arith.mulf %13, %13 : vector<64x128xf32>
    %cst_16 = arith.constant dense<0.000000e+00> : vector<128xf32>
    %24 = vector.multi_reduction <add>, %23, %cst_16 [0] : vector<64x128xf32> to vector<128xf32>
    %25 = vector.shape_cast %24 : vector<128xf32> to vector<1x128xf32>
    %c0_17 = arith.constant 0 : index
    %c0_18 = arith.constant 0 : index
    %c0_19 = arith.constant 0 : index
    %26 = vector.load %arg7[%c0_17, %c0_18, %c0_19] : memref<1x1x128xf32, #tpu.memory_space<vmem>>, vector<1x1x128xf32>
    %27 = vector.shape_cast %26 : vector<1x1x128xf32> to vector<1x128xf32>
    %28 = vector.shape_cast %25 : vector<1x128xf32> to vector<1x1x128xf32>
    tpu.vector_store %arg7[%c0_17, %c0_18, %c0_19], %28 {strides = array<i32>} : memref<1x1x128xf32, #tpu.memory_space<vmem>>, vector<1x1x128xf32>,
    return
  }
  func.func @transform_0(%arg0: i32) -> (i32, i32, i32) {
    %c0_i32 = arith.constant 0 : i32
    %c0_i32_0 = arith.constant 0 : i32
    %c0_i32_1 = arith.constant 0 : i32
    return %arg0, %c0_i32, %c0_i32_0 : i32, i32, i32
  }
  func.func @transform_1(%arg0: i32) -> (i32, i32) {
    %c0_i32 = arith.constant 0 : i32
    %c0_i32_0 = arith.constant 0 : i32
    %c0_i32_1 = arith.constant 0 : i32
    return %c0_i32, %c0_i32_0 : i32, i32
  }
  func.func @transform_2(%arg0: i32) -> (i32, i32) {
    %c0_i32 = arith.constant 0 : i32
    %c0_i32_0 = arith.constant 0 : i32
    %c0_i32_1 = arith.constant 0 : i32
    return %c0_i32, %c0_i32_0 : i32, i32
  }
  func.func @transform_3(%arg0: i32) -> (i32, i32) {
    %c0_i32 = arith.constant 0 : i32
    %c0_i32_0 = arith.constant 0 : i32
    %c0_i32_1 = arith.constant 0 : i32
    return %c0_i32, %c0_i32_0 : i32, i32
  }
  func.func @transform_4(%arg0: i32) -> (i32, i32, i32) {
    %c0_i32 = arith.constant 0 : i32
    %c0_i32_0 = arith.constant 0 : i32
    %c0_i32_1 = arith.constant 0 : i32
    return %arg0, %c0_i32, %c0_i32_0 : i32, i32, i32
  }
  func.func @transform_5(%arg0: i32) -> (i32, i32, i32) {
    %c0_i32 = arith.constant 0 : i32
    %c0_i32_0 = arith.constant 0 : i32
    %c0_i32_1 = arith.constant 0 : i32
    return %arg0, %c0_i32, %c0_i32_0 : i32, i32, i32
  }
  func.func @transform_6(%arg0: i32) -> (i32, i32, i32) {
    %c0_i32 = arith.constant 0 : i32
    %c0_i32_0 = arith.constant 0 : i32
    %c0_i32_1 = arith.constant 0 : i32
    return %arg0, %c0_i32, %c0_i32_0 : i32, i32, i32
  }
}

module attributes {stable_mosaic.version = 11 : i64} {
  func.func @_conv3x3_kernel(%arg0: i32, %arg1: memref<1x64x128xbf16, #tpu.memory_space<vmem>>, %arg2: memref<64x1xf32, #tpu.memory_space<vmem>>, %arg3: memref<64x1xf32, #tpu.memory_space<vmem>>, %arg4: memref<1x128xf32, #tpu.memory_space<vmem>>, %arg5: memref<1x128xf32, #tpu.memory_space<vmem>>, %arg6: memref<1152x128xbf16, #tpu.memory_space<vmem>>, %arg7: memref<1x64x128xbf16, #tpu.memory_space<vmem>>, %arg8: memref<1x1x128xf32, #tpu.memory_space<vmem>>, %arg9: memref<1x1x128xf32, #tpu.memory_space<vmem>>, %arg10: memref<96x128xbf16, #tpu.memory_space<vmem>>) attributes {dimension_semantics = [#tpu.dimension_semantics<parallel>], iteration_bounds = array<i64: 2>, scalar_prefetch = 0 : i64, scratch_operands = 1 : i64, tpu.core_type = #tpu.core_type<tc>, window_params = [{transform_indices = @transform_0, window_bounds = array<i64: 1, 64, 128>}, {pipeline_mode = #tpu.pipeline_mode<synchronous>, transform_indices = @transform_1, window_bounds = array<i64: 64, 1>}, {pipeline_mode = #tpu.pipeline_mode<synchronous>, transform_indices = @transform_2, window_bounds = array<i64: 64, 1>}, {pipeline_mode = #tpu.pipeline_mode<synchronous>, transform_indices = @transform_3, window_bounds = array<i64: 1, 128>}, {pipeline_mode = #tpu.pipeline_mode<synchronous>, transform_indices = @transform_4, window_bounds = array<i64: 1, 128>}, {pipeline_mode = #tpu.pipeline_mode<synchronous>, transform_indices = @transform_5, window_bounds = array<i64: 1152, 128>}, {transform_indices = @transform_6, window_bounds = array<i64: 1, 64, 128>}, {transform_indices = @transform_7, window_bounds = array<i64: 1, 1, 128>}, {transform_indices = @transform_8, window_bounds = array<i64: 1, 1, 128>}]} {
    %c0 = arith.constant 0 : index
    %c0_0 = arith.constant 0 : index
    %c0_1 = arith.constant 0 : index
    %0 = vector.load %arg1[%c0, %c0_0, %c0_1] : memref<1x64x128xbf16, #tpu.memory_space<vmem>>, vector<1x64x128xbf16>
    %1 = vector.shape_cast %0 : vector<1x64x128xbf16> to vector<64x128xbf16>
    %2 = arith.extf %1 : vector<64x128xbf16> to vector<64x128xf32>
    %c0_2 = arith.constant 0 : index
    %c0_3 = arith.constant 0 : index
    %3 = vector.load %arg4[%c0_2, %c0_3] : memref<1x128xf32, #tpu.memory_space<vmem>>, vector<1x128xf32>
    %4 = vector.broadcast %3 : vector<1x128xf32> to vector<64x128xf32>
    %5 = arith.mulf %2, %4 : vector<64x128xf32>
    %c0_4 = arith.constant 0 : index
    %c0_5 = arith.constant 0 : index
    %6 = vector.load %arg5[%c0_4, %c0_5] : memref<1x128xf32, #tpu.memory_space<vmem>>, vector<1x128xf32>
    %7 = vector.broadcast %6 : vector<1x128xf32> to vector<64x128xf32>
    %8 = arith.addf %5, %7 : vector<64x128xf32>
    %cst = arith.constant 0.000000e+00 : f32
    %9 = vector.broadcast %cst : f32 to vector<64x128xf32>
    %10 = arith.maximumf %8, %9 : vector<64x128xf32>
    %11 = arith.truncf %10 : vector<64x128xf32> to vector<64x128xbf16>
    %cst_6 = arith.constant 0.000000e+00 : bf16
    %12 = vector.broadcast %cst_6 : bf16 to vector<16x128xbf16>
    %c0_7 = arith.constant 0 : index
    %c0_8 = arith.constant 0 : index
    %13 = vector.load %arg10[%c0_7, %c0_8] : memref<96x128xbf16, #tpu.memory_space<vmem>>, vector<16x128xbf16>
    tpu.vector_store %arg10[%c0_7, %c0_8], %12 {strides = array<i32>} : memref<96x128xbf16, #tpu.memory_space<vmem>>, vector<16x128xbf16>,
    %cst_9 = arith.constant 0.000000e+00 : bf16
    %14 = vector.broadcast %cst_9 : bf16 to vector<16x128xbf16>
    %c80 = arith.constant 80 : index
    %c0_10 = arith.constant 0 : index
    %15 = vector.load %arg10[%c80, %c0_10] : memref<96x128xbf16, #tpu.memory_space<vmem>>, vector<16x128xbf16>
    tpu.vector_store %arg10[%c80, %c0_10], %14 {strides = array<i32>} : memref<96x128xbf16, #tpu.memory_space<vmem>>, vector<16x128xbf16>,
    %c16 = arith.constant 16 : index
    %c0_11 = arith.constant 0 : index
    %16 = vector.load %arg10[%c16, %c0_11] : memref<96x128xbf16, #tpu.memory_space<vmem>>, vector<64x128xbf16>
    tpu.vector_store %arg10[%c16, %c0_11], %11 {strides = array<i32>} : memref<96x128xbf16, #tpu.memory_space<vmem>>, vector<64x128xbf16>,
    %c0_12 = arith.constant 0 : index
    %c0_13 = arith.constant 0 : index
    %17 = vector.load %arg2[%c0_12, %c0_13] : memref<64x1xf32, #tpu.memory_space<vmem>>, vector<64x1xf32>
    %c0_14 = arith.constant 0 : index
    %c0_15 = arith.constant 0 : index
    %18 = vector.load %arg3[%c0_14, %c0_15] : memref<64x1xf32, #tpu.memory_space<vmem>>, vector<64x1xf32>
    %cst_16 = arith.constant 0.000000e+00 : f32
    %19 = vector.broadcast %cst_16 : f32 to vector<64x128xf32>
    %c7 = arith.constant 7 : index
    %c0_17 = arith.constant 0 : index
    %20 = vector.load %arg10[%c7, %c0_17] : memref<96x128xbf16, #tpu.memory_space<vmem>>, vector<64x128xbf16>
    %c0_18 = arith.constant 0 : index
    %c0_19 = arith.constant 0 : index
    %21 = vector.load %arg6[%c0_18, %c0_19] : memref<1152x128xbf16, #tpu.memory_space<vmem>>, vector<128x128xbf16>
    %cst_20 = arith.constant dense<0.000000e+00> : vector<64x128xf32>
    %22 = tpu.matmul %20, %21, %cst_20 {dimension_numbers = #tpu.dot_dimension_numbers<[1], [0], [0], [1], [0, 0, 1, 1], [], []>} : vector<64x128xbf16>, vector<128x128xbf16>, vector<64x128xf32> -> vector<64x128xf32>
    %23 = vector.broadcast %17 : vector<64x1xf32> to vector<64x128xf32>
    %24 = arith.mulf %22, %23 : vector<64x128xf32>
    %25 = arith.addf %19, %24 : vector<64x128xf32>
    %c8 = arith.constant 8 : index
    %c0_21 = arith.constant 0 : index
    %26 = vector.load %arg10[%c8, %c0_21] : memref<96x128xbf16, #tpu.memory_space<vmem>>, vector<64x128xbf16>
    %c128 = arith.constant 128 : index
    %c0_22 = arith.constant 0 : index
    %27 = vector.load %arg6[%c128, %c0_22] : memref<1152x128xbf16, #tpu.memory_space<vmem>>, vector<128x128xbf16>
    %cst_23 = arith.constant dense<0.000000e+00> : vector<64x128xf32>
    %28 = tpu.matmul %26, %27, %cst_23 {dimension_numbers = #tpu.dot_dimension_numbers<[1], [0], [0], [1], [0, 0, 1, 1], [], []>} : vector<64x128xbf16>, vector<128x128xbf16>, vector<64x128xf32> -> vector<64x128xf32>
    %29 = arith.addf %25, %28 : vector<64x128xf32>
    %c9 = arith.constant 9 : index
    %c0_24 = arith.constant 0 : index
    %30 = vector.load %arg10[%c9, %c0_24] : memref<96x128xbf16, #tpu.memory_space<vmem>>, vector<64x128xbf16>
    %c256 = arith.constant 256 : index
    %c0_25 = arith.constant 0 : index
    %31 = vector.load %arg6[%c256, %c0_25] : memref<1152x128xbf16, #tpu.memory_space<vmem>>, vector<128x128xbf16>
    %cst_26 = arith.constant dense<0.000000e+00> : vector<64x128xf32>
    %32 = tpu.matmul %30, %31, %cst_26 {dimension_numbers = #tpu.dot_dimension_numbers<[1], [0], [0], [1], [0, 0, 1, 1], [], []>} : vector<64x128xbf16>, vector<128x128xbf16>, vector<64x128xf32> -> vector<64x128xf32>
    %33 = vector.broadcast %18 : vector<64x1xf32> to vector<64x128xf32>
    %34 = arith.mulf %32, %33 : vector<64x128xf32>
    %35 = arith.addf %29, %34 : vector<64x128xf32>
    %c15 = arith.constant 15 : index
    %c0_27 = arith.constant 0 : index
    %36 = vector.load %arg10[%c15, %c0_27] : memref<96x128xbf16, #tpu.memory_space<vmem>>, vector<64x128xbf16>
    %c384 = arith.constant 384 : index
    %c0_28 = arith.constant 0 : index
    %37 = vector.load %arg6[%c384, %c0_28] : memref<1152x128xbf16, #tpu.memory_space<vmem>>, vector<128x128xbf16>
    %cst_29 = arith.constant dense<0.000000e+00> : vector<64x128xf32>
    %38 = tpu.matmul %36, %37, %cst_29 {dimension_numbers = #tpu.dot_dimension_numbers<[1], [0], [0], [1], [0, 0, 1, 1], [], []>} : vector<64x128xbf16>, vector<128x128xbf16>, vector<64x128xf32> -> vector<64x128xf32>
    %39 = vector.broadcast %17 : vector<64x1xf32> to vector<64x128xf32>
    %40 = arith.mulf %38, %39 : vector<64x128xf32>
    %41 = arith.addf %35, %40 : vector<64x128xf32>
    %c16_30 = arith.constant 16 : index
    %c0_31 = arith.constant 0 : index
    %42 = vector.load %arg10[%c16_30, %c0_31] : memref<96x128xbf16, #tpu.memory_space<vmem>>, vector<64x128xbf16>
    %c512 = arith.constant 512 : index
    %c0_32 = arith.constant 0 : index
    %43 = vector.load %arg6[%c512, %c0_32] : memref<1152x128xbf16, #tpu.memory_space<vmem>>, vector<128x128xbf16>
    %cst_33 = arith.constant dense<0.000000e+00> : vector<64x128xf32>
    %44 = tpu.matmul %42, %43, %cst_33 {dimension_numbers = #tpu.dot_dimension_numbers<[1], [0], [0], [1], [0, 0, 1, 1], [], []>} : vector<64x128xbf16>, vector<128x128xbf16>, vector<64x128xf32> -> vector<64x128xf32>
    %45 = arith.addf %41, %44 : vector<64x128xf32>
    %c17 = arith.constant 17 : index
    %c0_34 = arith.constant 0 : index
    %46 = vector.load %arg10[%c17, %c0_34] : memref<96x128xbf16, #tpu.memory_space<vmem>>, vector<64x128xbf16>
    %c640 = arith.constant 640 : index
    %c0_35 = arith.constant 0 : index
    %47 = vector.load %arg6[%c640, %c0_35] : memref<1152x128xbf16, #tpu.memory_space<vmem>>, vector<128x128xbf16>
    %cst_36 = arith.constant dense<0.000000e+00> : vector<64x128xf32>
    %48 = tpu.matmul %46, %47, %cst_36 {dimension_numbers = #tpu.dot_dimension_numbers<[1], [0], [0], [1], [0, 0, 1, 1], [], []>} : vector<64x128xbf16>, vector<128x128xbf16>, vector<64x128xf32> -> vector<64x128xf32>
    %49 = vector.broadcast %18 : vector<64x1xf32> to vector<64x128xf32>
    %50 = arith.mulf %48, %49 : vector<64x128xf32>
    %51 = arith.addf %45, %50 : vector<64x128xf32>
    %c23 = arith.constant 23 : index
    %c0_37 = arith.constant 0 : index
    %52 = vector.load %arg10[%c23, %c0_37] : memref<96x128xbf16, #tpu.memory_space<vmem>>, vector<64x128xbf16>
    %c768 = arith.constant 768 : index
    %c0_38 = arith.constant 0 : index
    %53 = vector.load %arg6[%c768, %c0_38] : memref<1152x128xbf16, #tpu.memory_space<vmem>>, vector<128x128xbf16>
    %cst_39 = arith.constant dense<0.000000e+00> : vector<64x128xf32>
    %54 = tpu.matmul %52, %53, %cst_39 {dimension_numbers = #tpu.dot_dimension_numbers<[1], [0], [0], [1], [0, 0, 1, 1], [], []>} : vector<64x128xbf16>, vector<128x128xbf16>, vector<64x128xf32> -> vector<64x128xf32>
    %55 = vector.broadcast %17 : vector<64x1xf32> to vector<64x128xf32>
    %56 = arith.mulf %54, %55 : vector<64x128xf32>
    %57 = arith.addf %51, %56 : vector<64x128xf32>
    %c24 = arith.constant 24 : index
    %c0_40 = arith.constant 0 : index
    %58 = vector.load %arg10[%c24, %c0_40] : memref<96x128xbf16, #tpu.memory_space<vmem>>, vector<64x128xbf16>
    %c896 = arith.constant 896 : index
    %c0_41 = arith.constant 0 : index
    %59 = vector.load %arg6[%c896, %c0_41] : memref<1152x128xbf16, #tpu.memory_space<vmem>>, vector<128x128xbf16>
    %cst_42 = arith.constant dense<0.000000e+00> : vector<64x128xf32>
    %60 = tpu.matmul %58, %59, %cst_42 {dimension_numbers = #tpu.dot_dimension_numbers<[1], [0], [0], [1], [0, 0, 1, 1], [], []>} : vector<64x128xbf16>, vector<128x128xbf16>, vector<64x128xf32> -> vector<64x128xf32>
    %61 = arith.addf %57, %60 : vector<64x128xf32>
    %c25 = arith.constant 25 : index
    %c0_43 = arith.constant 0 : index
    %62 = vector.load %arg10[%c25, %c0_43] : memref<96x128xbf16, #tpu.memory_space<vmem>>, vector<64x128xbf16>
    %c1024 = arith.constant 1024 : index
    %c0_44 = arith.constant 0 : index
    %63 = vector.load %arg6[%c1024, %c0_44] : memref<1152x128xbf16, #tpu.memory_space<vmem>>, vector<128x128xbf16>
    %cst_45 = arith.constant dense<0.000000e+00> : vector<64x128xf32>
    %64 = tpu.matmul %62, %63, %cst_45 {dimension_numbers = #tpu.dot_dimension_numbers<[1], [0], [0], [1], [0, 0, 1, 1], [], []>} : vector<64x128xbf16>, vector<128x128xbf16>, vector<64x128xf32> -> vector<64x128xf32>
    %65 = vector.broadcast %18 : vector<64x1xf32> to vector<64x128xf32>
    %66 = arith.mulf %64, %65 : vector<64x128xf32>
    %67 = arith.addf %61, %66 : vector<64x128xf32>
    %68 = arith.truncf %67 : vector<64x128xf32> to vector<64x128xbf16>
    %c0_46 = arith.constant 0 : index
    %c0_47 = arith.constant 0 : index
    %c0_48 = arith.constant 0 : index
    %69 = vector.load %arg7[%c0_46, %c0_47, %c0_48] : memref<1x64x128xbf16, #tpu.memory_space<vmem>>, vector<1x64x128xbf16>
    %70 = vector.shape_cast %69 : vector<1x64x128xbf16> to vector<64x128xbf16>
    %71 = vector.shape_cast %68 : vector<64x128xbf16> to vector<1x64x128xbf16>
    tpu.vector_store %arg7[%c0_46, %c0_47, %c0_48], %71 {strides = array<i32>} : memref<1x64x128xbf16, #tpu.memory_space<vmem>>, vector<1x64x128xbf16>,
    %cst_49 = arith.constant dense<0.000000e+00> : vector<128xf32>
    %72 = vector.multi_reduction <add>, %67, %cst_49 [0] : vector<64x128xf32> to vector<128xf32>
    %73 = vector.shape_cast %72 : vector<128xf32> to vector<1x128xf32>
    %c0_50 = arith.constant 0 : index
    %c0_51 = arith.constant 0 : index
    %c0_52 = arith.constant 0 : index
    %74 = vector.load %arg8[%c0_50, %c0_51, %c0_52] : memref<1x1x128xf32, #tpu.memory_space<vmem>>, vector<1x1x128xf32>
    %75 = vector.shape_cast %74 : vector<1x1x128xf32> to vector<1x128xf32>
    %76 = vector.shape_cast %73 : vector<1x128xf32> to vector<1x1x128xf32>
    tpu.vector_store %arg8[%c0_50, %c0_51, %c0_52], %76 {strides = array<i32>} : memref<1x1x128xf32, #tpu.memory_space<vmem>>, vector<1x1x128xf32>,
    %77 = arith.mulf %67, %67 : vector<64x128xf32>
    %cst_53 = arith.constant dense<0.000000e+00> : vector<128xf32>
    %78 = vector.multi_reduction <add>, %77, %cst_53 [0] : vector<64x128xf32> to vector<128xf32>
    %79 = vector.shape_cast %78 : vector<128xf32> to vector<1x128xf32>
    %c0_54 = arith.constant 0 : index
    %c0_55 = arith.constant 0 : index
    %c0_56 = arith.constant 0 : index
    %80 = vector.load %arg9[%c0_54, %c0_55, %c0_56] : memref<1x1x128xf32, #tpu.memory_space<vmem>>, vector<1x1x128xf32>
    %81 = vector.shape_cast %80 : vector<1x1x128xf32> to vector<1x128xf32>
    %82 = vector.shape_cast %79 : vector<1x128xf32> to vector<1x1x128xf32>
    tpu.vector_store %arg9[%c0_54, %c0_55, %c0_56], %82 {strides = array<i32>} : memref<1x1x128xf32, #tpu.memory_space<vmem>>, vector<1x1x128xf32>,
    return
  }
  func.func @transform_0(%arg0: i32) -> (i32, i32, i32) {
    %c0_i32 = arith.constant 0 : i32
    %c0_i32_0 = arith.constant 0 : i32
    %c0_i32_1 = arith.constant 0 : i32
    return %arg0, %c0_i32, %c0_i32_0 : i32, i32, i32
  }
  func.func @transform_1(%arg0: i32) -> (i32, i32) {
    %c0_i32 = arith.constant 0 : i32
    %c0_i32_0 = arith.constant 0 : i32
    %c0_i32_1 = arith.constant 0 : i32
    return %c0_i32, %c0_i32_0 : i32, i32
  }
  func.func @transform_2(%arg0: i32) -> (i32, i32) {
    %c0_i32 = arith.constant 0 : i32
    %c0_i32_0 = arith.constant 0 : i32
    %c0_i32_1 = arith.constant 0 : i32
    return %c0_i32, %c0_i32_0 : i32, i32
  }
  func.func @transform_3(%arg0: i32) -> (i32, i32) {
    %c0_i32 = arith.constant 0 : i32
    %c0_i32_0 = arith.constant 0 : i32
    %c0_i32_1 = arith.constant 0 : i32
    return %c0_i32, %c0_i32_0 : i32, i32
  }
  func.func @transform_4(%arg0: i32) -> (i32, i32) {
    %c0_i32 = arith.constant 0 : i32
    %c0_i32_0 = arith.constant 0 : i32
    %c0_i32_1 = arith.constant 0 : i32
    return %c0_i32, %c0_i32_0 : i32, i32
  }
  func.func @transform_5(%arg0: i32) -> (i32, i32) {
    %c0_i32 = arith.constant 0 : i32
    %c0_i32_0 = arith.constant 0 : i32
    %c0_i32_1 = arith.constant 0 : i32
    return %c0_i32, %c0_i32_0 : i32, i32
  }
  func.func @transform_6(%arg0: i32) -> (i32, i32, i32) {
    %c0_i32 = arith.constant 0 : i32
    %c0_i32_0 = arith.constant 0 : i32
    %c0_i32_1 = arith.constant 0 : i32
    return %arg0, %c0_i32, %c0_i32_0 : i32, i32, i32
  }
  func.func @transform_7(%arg0: i32) -> (i32, i32, i32) {
    %c0_i32 = arith.constant 0 : i32
    %c0_i32_0 = arith.constant 0 : i32
    %c0_i32_1 = arith.constant 0 : i32
    return %arg0, %c0_i32, %c0_i32_0 : i32, i32, i32
  }
  func.func @transform_8(%arg0: i32) -> (i32, i32, i32) {
    %c0_i32 = arith.constant 0 : i32
    %c0_i32_0 = arith.constant 0 : i32
    %c0_i32_1 = arith.constant 0 : i32
    return %arg0, %c0_i32, %c0_i32_0 : i32, i32, i32
  }
}

</mosaic_0001>

<llo_original>
// kernel: bottleneck_forward.4
$region0: #{bottleneck_forward.4}
  #allocation0 [shape = 'u32[]', space=smem, size = 0x4, offset = 0x4, fixed_abs, tag = 'smem constant byte address 0x4 - core index']
  #allocation1 [shape = 'u32[144,128]{1,0:T(1,128)}', space=vmem, size = 0x12000, scoped, tag = 'internal scratch']
  %s0 = inlined_call_operand.vmem [shape: bf16[2,64,128], index: 0, kind: input, shape index: {}]
  %s1 = inlined_call_operand.hbm [shape: bf16[128,128], index: 1, kind: input, shape index: {}]
  %s2 = inlined_call_operand.vmem [shape: bf16[2,64,128], index: 2, kind: output, shape index: {0}]
  %s3 = inlined_call_operand.vmem [shape: f32[2,1,128], index: 3, kind: output, shape index: {1}]
  %s4 = inlined_call_operand.vmem [shape: f32[2,1,128], index: 4, kind: output, shape index: {2}]
  %5 = xla_tuple %s2, %s3, %s4
  %s6 = sld [smem:[#allocation0]]
  $region61: #{bottleneck_forward.4} parent=0
    _
  %s8 = ssub.s32 1, %s6
  %s9 = scalar_select 0, %s8, %s6
  $region1: #{bottleneck_forward.4} parent=0
    #allocation2 [shape = 'u8[32768]{0}', space=vmem, size = 0x8000, scoped, tag = 'input window, operand 1, single buffered']
    #allocation3 [shape = 's32[2]{0}', space=sflag, size = 0x8, scoped, tag = 'scoped memory for bottleneck_forward.4']
    %10 = vsyncpa [#allocation3], 0
    loop: start=0, step=1, limit=4
    $region2: #{bottleneck_forward.4} parent=1 // loop_pre_header
      _
    $region3: #{bottleneck_forward.4} parent=1 // loop_header
      %s12 = sphi 0, %s16
      %p13 = scmp.ge.s32.totalorder %s12, 4
      %s22 = sphi 0, %s24
      %s25 = sphi 0, %s22
      %s26 = sphi 0, %s25
      %s42 = sphi 0, %s26
      %s46 = sphi 0, %s46
      %s48 = sphi 0, %s46
      %s49 = sphi 0, %s48
      %s63 = sphi 0, %s49
      %s69 = sphi 0, %s71
      %s72 = sphi 0, %s69
      %s73 = sphi 0, %s72
      %s89 = sphi 0, %s73
      %s95 = sphi 0, %s97
      %s98 = sphi 0, %s95
      %s99 = sphi 0, %s98
      %s115 = sphi 0, %s99
      %s121 = sphi 0, %s123
      %s124 = sphi 0, %s121
      %s125 = sphi 0, %s124
      %s141 = sphi 0, %s125
    $region4: #{bottleneck_forward.4} parent=1 // loop_header_branch
      %15 = sbr.rel (%p13) target = $region8
    $region5: #{bottleneck_forward.4} parent=1 // loop_body
      %s17 = ssub.s32 %s12, 1
      %s18 = ssub.s32 %s12, 2
      %s19 = sadd.s32 %s12, 1
      %s20 = ssub.s32 %s12, %s19
      %p21 = scmp.eq.s32.totalorder %s20, 0
      %s23 = sadd.s32 %s22, 1
      %s24 = scalar_select %p21, %s22, %s23
      %p27 = pneg %p21
      %p28 = scmp.eq.s32.totalorder %s12, 1
      %p29 = por %p27, %p28
      %p30 = scmp.ne.s32.totalorder %s22, %s25
      %p31 = scmp.eq.s32.totalorder %s12, 0
      %p32 = por %p30, %p31
      %p33 = scmp.ne.s32.totalorder %s22, %s25
      %p34 = scmp.eq.s32.totalorder %s17, 1
      %p35 = por %p33, %p34
      %p36 = scmp.ne.s32.totalorder %s25, %s26
      %p37 = scmp.eq.s32.totalorder %s17, 0
      %p38 = por %p36, %p37
      %p39 = scmp.ne.s32.totalorder %s25, %s26
      %p40 = scmp.eq.s32.totalorder %s18, 1
      %p41 = por %p39, %p40
      %p43 = scmp.ne.s32.totalorder %s26, %s42
      %p44 = scmp.eq.s32.totalorder %s18, 0
      %p45 = por %p43, %p44
      %s47 = sadd.s32 %s46, 1
      %p50 = scmp.eq.s32.totalorder %s12, 1
      %p51 = scmp.ne.s32.totalorder %s46, %s48
      %p52 = scmp.eq.s32.totalorder %s12, 0
      %p53 = por %p51, %p52
      %p54 = scmp.ne.s32.totalorder %s46, %s48
      %p55 = scmp.eq.s32.totalorder %s17, 1
      %p56 = por %p54, %p55
      %p57 = scmp.ne.s32.totalorder %s48, %s49
      %p58 = scmp.eq.s32.totalorder %s17, 0
      %p59 = por %p57, %p58
      %p60 = scmp.ne.s32.totalorder %s48, %s49
      %p61 = scmp.eq.s32.totalorder %s18, 1
      %p62 = por %p60, %p61
      %p64 = scmp.ne.s32.totalorder %s49, %s63
      %p65 = scmp.eq.s32.totalorder %s18, 0
      %p66 = por %p64, %p65
      %s67 = ssub.s32 %s12, %s19
      %p68 = scmp.eq.s32.totalorder %s67, 0
      %s70 = sadd.s32 %s69, 1
      %s71 = scalar_select %p68, %s69, %s70
      %p74 = pneg %p68
      %p75 = scmp.eq.s32.totalorder %s12, 1
      %p76 = por %p74, %p75
      %p77 = scmp.ne.s32.totalorder %s69, %s72
      %p78 = scmp.eq.s32.totalorder %s12, 0
      %p79 = por %p77, %p78
      %p80 = scmp.ne.s32.totalorder %s69, %s72
      %p81 = scmp.eq.s32.totalorder %s17, 1
      %p82 = por %p80, %p81
      %p83 = scmp.ne.s32.totalorder %s72, %s73
      %p84 = scmp.eq.s32.totalorder %s17, 0
      %p85 = por %p83, %p84
      %p86 = scmp.ne.s32.totalorder %s72, %s73
      %p87 = scmp.eq.s32.totalorder %s18, 1
      %p88 = por %p86, %p87
      %p90 = scmp.ne.s32.totalorder %s73, %s89
      %p91 = scmp.eq.s32.totalorder %s18, 0
      %p92 = por %p90, %p91
      %s93 = ssub.s32 %s12, %s19
      %p94 = scmp.eq.s32.totalorder %s93, 0
      %s96 = sadd.s32 %s95, 1
      %s97 = scalar_select %p94, %s95, %s96
      %p100 = pneg %p94
      %p101 = scmp.eq.s32.totalorder %s12, 1
      %p102 = por %p100, %p101
      %p103 = scmp.ne.s32.totalorder %s95, %s98
      %p104 = scmp.eq.s32.totalorder %s12, 0
      %p105 = por %p103, %p104
      %p106 = scmp.ne.s32.totalorder %s95, %s98
      %p107 = scmp.eq.s32.totalorder %s17, 1
      %p108 = por %p106, %p107
      %p109 = scmp.ne.s32.totalorder %s98, %s99
      %p110 = scmp.eq.s32.totalorder %s17, 0
      %p111 = por %p109, %p110
      %p112 = scmp.ne.s32.totalorder %s98, %s99
      %p113 = scmp.eq.s32.totalorder %s18, 1
      %p114 = por %p112, %p113
      %p116 = scmp.ne.s32.totalorder %s99, %s115
      %p117 = scmp.eq.s32.totalorder %s18, 0
      %p118 = por %p116, %p117
      %s119 = ssub.s32 %s12, %s19
      %p120 = scmp.eq.s32.totalorder %s119, 0
      %s122 = sadd.s32 %s121, 1
      %s123 = scalar_select %p120, %s121, %s122
      %p126 = pneg %p120
      %p127 = scmp.eq.s32.totalorder %s12, 1
      %p128 = por %p126, %p127
      %p129 = scmp.ne.s32.totalorder %s121, %s124
      %p130 = scmp.eq.s32.totalorder %s12, 0
      %p131 = por %p129, %p130
      %p132 = scmp.ne.s32.totalorder %s121, %s124
      %p133 = scmp.eq.s32.totalorder %s17, 1
      %p134 = por %p132, %p133
      %p135 = scmp.ne.s32.totalorder %s124, %s125
      %p136 = scmp.eq.s32.totalorder %s17, 0
      %p137 = por %p135, %p136
      %p138 = scmp.ne.s32.totalorder %s124, %s125
      %p139 = scmp.eq.s32.totalorder %s18, 1
      %p140 = por %p138, %p139
      %p142 = scmp.ne.s32.totalorder %s125, %s141
      %p143 = scmp.eq.s32.totalorder %s18, 0
      %p144 = por %p142, %p143
      %p145 = scmp.le.s32.totalorder 1, %s12
      %p146 = scmp.lt.s32.totalorder %s12, 3
      %p147 = pnand %p145, %p146
      %p148 = pneg %p147
      // Predicated region
      $region9: #{bottleneck_forward.4} parent=5 // pred_check
        _
      $region10: #{bottleneck_forward.4} parent=5 // pred_check_branch
        %150 = sbr.rel (%p147) target = $region12
      $region11: #{bottleneck_forward.4} parent=5 // pred_region
        %s151 = ssub.s32 %s12, 1
        // Predicated region
        $region13: #{bottleneck_forward.4} parent=11 // pred_check
          %p152 = pneg %p59
        $region14: #{bottleneck_forward.4} parent=11 // pred_check_branch
          %154 = sbr.rel (%p152) target = $region16
        $region15: #{bottleneck_forward.4} parent=11 // pred_region
          %s156 = ssub.s32 1024, 1024
          %157 = vsyncadd [#allocation3], %s156
          %s158 = sshll.u32 [#allocation2], 4
          %s159 = int_to_ptr.vmem [resolvable:$true] %s158
          %164 = dma.hbm_to_vmem [thread:$0]  %s1, 1024, %s159, [#allocation3], 64, 64, 4
        $region16: #{bottleneck_forward.4} parent=11 // pred_fallthru
          _
      $region12: #{bottleneck_forward.4} parent=5 // pred_fallthru
        _
      %p165 = scmp.lt.s32.totalorder %s12, 2
      // Predicated region
      $region17: #{bottleneck_forward.4} parent=5 // pred_check
        %p166 = pneg %p165
      $region18: #{bottleneck_forward.4} parent=5 // pred_check_branch
        %168 = sbr.rel (%p166) target = $region20
      $region19: #{bottleneck_forward.4} parent=5 // pred_region
        // Predicated region
        $region21: #{bottleneck_forward.4} parent=19 // pred_check
          %p169 = pneg %p32
        $region22: #{bottleneck_forward.4} parent=19 // pred_check_branch
          %171 = sbr.rel (%p169) target = $region24
        $region23: #{bottleneck_forward.4} parent=19 // pred_region
          %p172 = scmp.lt.s32.totalorder %s12, 1
          %s173 = scalar_select %p172, %s12, 1
          %s174 = smul.addr %s173, 8
          %s175 = smul.addr %s174, 4
          %s176 = scalar_lea.vmem %s0, %s175
        $region24: #{bottleneck_forward.4} parent=19 // pred_fallthru
          _
      $region20: #{bottleneck_forward.4} parent=5 // pred_fallthru
        _
      %p177 = scmp.le.s32.totalorder 1, %s12
      %p178 = scmp.lt.s32.totalorder %s12, 3
      %p179 = pnand %p177, %p178
      %p180 = pneg %p179
      // Predicated region
      $region25: #{bottleneck_forward.4} parent=5 // pred_check
        _
      $region26: #{bottleneck_forward.4} parent=5 // pred_check_branch
        %182 = sbr.rel (%p179) target = $region28
      $region27: #{bottleneck_forward.4} parent=5 // pred_region
        %s183 = ssub.s32 %s12, 1
        // Predicated region
        $region29: #{bottleneck_forward.4} parent=27 // pred_check
          %p184 = pneg %p59
        $region30: #{bottleneck_forward.4} parent=27 // pred_check_branch
          %186 = sbr.rel (%p184) target = $region32
        $region31: #{bottleneck_forward.4} parent=27 // pred_region
          %187 = dma.done [#allocation3], 1024
        $region32: #{bottleneck_forward.4} parent=27 // pred_fallthru
          _
        %p188 = scmp.lt.s32.totalorder %s17, 1
        %s189 = scalar_select %p188, %s17, 1
        %s190 = smul.addr %s189, 8
        %s191 = smul.addr %s190, 4
        %s192 = scalar_lea.vmem %s0, %s191
        %p193 = pneg %p38
        %p194 = pneg %p35
        %p195 = pneg %p59
        %p196 = pneg %p56
        %p197 = pneg %p85
        %p198 = pneg %p82
        %p199 = scmp.lt.s32.totalorder %s17, 1
        %s200 = scalar_select %p199, %s17, 1
        %s201 = smul.addr %s200, 8
        %s202 = smul.addr %s201, 4
        %s203 = scalar_lea.vmem %s2, %s202
        %p204 = pneg %p111
        %p205 = pneg %p108
        %p206 = scmp.lt.s32.totalorder %s17, 1
        %s207 = scalar_select %p206, %s17, 1
        %s208 = scalar_lea.vmem %s3, %s207
        %p209 = pneg %p137
        %p210 = pneg %p134
        %p211 = scmp.lt.s32.totalorder %s17, 1
        %s212 = scalar_select %p211, %s17, 1
        %s213 = scalar_lea.vmem %s4, %s212
        %p214 = scmp.lt.s32.totalorder %s17, 1
        %s215 = scalar_select %p214, %s17, 1
        %s216 = smul.addr %s215, 8
        %s217 = smul.addr %s216, 4
        %s218 = scalar_lea.vmem %s0, %s217
        %p219 = scmp.lt.s32.totalorder %s17, 1
        %s220 = scalar_select %p219, %s17, 1
        %s221 = smul.addr %s220, 8
        %s222 = smul.addr %s221, 4
        %s223 = scalar_lea.vmem %s2, %s222
        %p224 = scmp.lt.s32.totalorder %s17, 1
        %s225 = scalar_select %p224, %s17, 1
        %s226 = scalar_lea.vmem %s3, %s225
        %p227 = scmp.lt.s32.totalorder %s17, 1
        %s228 = scalar_select %p227, %s17, 1
        %s229 = scalar_lea.vmem %s4, %s228
        %v231 = vld [vmem:[%s218] sm:$0xf]
        %v232 = vld [vmem:[%s218 + $0x4] sm:$0xf]
        %v233 = vld [vmem:[%s218 + $0x8] sm:$0xf]
        %v234 = vld [vmem:[%s218 + $0xc] sm:$0xf]
        %v235 = vld [vmem:[%s218 + $0x10] sm:$0xf]
        %v236 = vld [vmem:[%s218 + $0x14] sm:$0xf]
        %v237 = vld [vmem:[%s218 + $0x18] sm:$0xf]
        %v238 = vld [vmem:[%s218 + $0x1c] sm:$0xf]
        %v239 = vld [vmem:[#allocation2] sm:$0xf]
        %v240 = vld [vmem:[#allocation2 + $0x4] sm:$0xf]
        %v241 = vld [vmem:[#allocation2 + $0x8] sm:$0xf]
        %v242 = vld [vmem:[#allocation2 + $0xc] sm:$0xf]
        %v243 = vld [vmem:[#allocation2 + $0x10] sm:$0xf]
        %v244 = vld [vmem:[#allocation2 + $0x14] sm:$0xf]
        %v245 = vld [vmem:[#allocation2 + $0x18] sm:$0xf]
        %v246 = vld [vmem:[#allocation2 + $0x1c] sm:$0xf]
        %v247 = vld [vmem:[#allocation2 + $0x20] sm:$0xf]
        %v248 = vld [vmem:[#allocation2 + $0x24] sm:$0xf]
        %v249 = vld [vmem:[#allocation2 + $0x28] sm:$0xf]
        %v250 = vld [vmem:[#allocation2 + $0x2c] sm:$0xf]
        %v251 = vld [vmem:[#allocation2 + $0x30] sm:$0xf]
        %v252 = vld [vmem:[#allocation2 + $0x34] sm:$0xf]
        %v253 = vld [vmem:[#allocation2 + $0x38] sm:$0xf]
        %v254 = vld [vmem:[#allocation2 + $0x3c] sm:$0xf]
        %v263 = vunpack.c.l.b16 %v231
        %v264 = vunpack.c.l.b16 %v232
        %v265 = vunpack.c.l.b16 %v233
        %v266 = vunpack.c.l.b16 %v234
        %v267 = vunpack.c.l.b16 %v235
        %v268 = vunpack.c.l.b16 %v236
        %v269 = vunpack.c.l.b16 %v237
        %v270 = vunpack.c.l.b16 %v238
        %v271 = vpack.c.b16 %v264, %v263
        %v272 = vpack.c.b16 %v266, %v265
        %v273 = vpack.c.b16 %v268, %v267
        %v274 = vpack.c.b16 %v270, %v269
        %v295 = vunpack.c.l.b16 %v239
        %v296 = vunpack.c.l.b16 %v240
        %v297 = vunpack.c.l.b16 %v241
        %v298 = vunpack.c.l.b16 %v242
        %v299 = vunpack.c.l.b16 %v243
        %v300 = vunpack.c.l.b16 %v244
        %v301 = vunpack.c.l.b16 %v245
        %v302 = vunpack.c.l.b16 %v246
        %v303 = vunpack.c.l.b16 %v247
        %v304 = vunpack.c.l.b16 %v248
        %v305 = vunpack.c.l.b16 %v249
        %v306 = vunpack.c.l.b16 %v250
        %v307 = vunpack.c.l.b16 %v251
        %v308 = vunpack.c.l.b16 %v252
        %v309 = vunpack.c.l.b16 %v253
        %v310 = vunpack.c.l.b16 %v254
        %v311 = vpack.c.b16 %v296, %v295
        %v312 = vpack.c.b16 %v298, %v297
        %v313 = vpack.c.b16 %v300, %v299
        %v314 = vpack.c.b16 %v302, %v301
        %v315 = vpack.c.b16 %v304, %v303
        %v316 = vpack.c.b16 %v306, %v305
        %v317 = vpack.c.b16 %v308, %v307
        %v318 = vpack.c.b16 %v310, %v309
        %327 = vmatprep.subr.bf16.mxu0 0
        %328 = vmatpush1.bf16.msra.mxu0 %v311
        %329 = vmatprep.subr.bf16.mxu0 0
        %330 = vmatpush1.bf16.msra.mxu0 %v312
        %331 = vmatprep.subr.bf16.mxu0 0
        %332 = vmatpush1.bf16.msra.mxu0 %v313
        %333 = vmatprep.subr.bf16.mxu0 0
        %334 = vmatpush1.bf16.msra.mxu0 %v314
        %335 = vmatprep.subr.bf16.mxu0 0
        %336 = vmatpush1.bf16.msra.mxu0 %v315
        %337 = vmatprep.subr.bf16.mxu0 0
        %338 = vmatpush1.bf16.msra.mxu0 %v316
        %339 = vmatprep.subr.bf16.mxu0 0
        %340 = vmatpush1.bf16.msra.mxu0 %v317
        %341 = vmatprep.subr.bf16.mxu0 0
        %342 = vmatpush1.bf16.msra.mxu0 %v318
        %343 = vmatprep.subr.bf16.mxu0 0
        %344 = vmatpush1.bf16.msra.mxu0 0
        %345 = vmatprep.subr.bf16.mxu0 0
        %346 = vmatpush1.bf16.msra.mxu0 0
        %347 = vmatprep.subr.bf16.mxu0 0
        %348 = vmatpush1.bf16.msra.mxu0 0
        %349 = vmatprep.subr.bf16.mxu0 0
        %350 = vmatpush1.bf16.msra.mxu0 0
        %351 = vmatprep.subr.bf16.mxu0 0
        %352 = vmatpush1.bf16.msra.mxu0 0
        %353 = vmatprep.subr.bf16.mxu0 0
        %354 = vmatpush1.bf16.msra.mxu0 0
        %355 = vmatprep.subr.bf16.mxu0 0
        %356 = vmatpush1.bf16.msra.mxu0 0
        %357 = vmatprep.subr.bf16.mxu0 0
        %358 = vmatpush1.bf16.msra.mxu0 0
        %359 = vmatprep.mubr.bf16.mxu0 0
        %360 = vmatmul.mubr.bf16.gmra.mrb[0].mxu0 %v271
        %v361 = vpop.f32.mrb[0].mxu0
        %v362 = vadd.f32 0.0, %v361
        %v363 = vpop.f32.mrb[0].mxu0
        %v364 = vpop.f32.mrb[0].mxu0
        %v365 = vadd.f32 0.0, %v364
        %v366 = vpop.f32.mrb[0].mxu0
        %367 = vmatprep.mubr.bf16.mxu0 0
        %368 = vmatmul.mubr.bf16.gmra.mrb[0].mxu0 %v272
        %v369 = vpop.f32.mrb[0].mxu0
        %v370 = vadd.f32 0.0, %v369
        %v371 = vpop.f32.mrb[0].mxu0
        %v372 = vpop.f32.mrb[0].mxu0
        %v373 = vadd.f32 0.0, %v372
        %v374 = vpop.f32.mrb[0].mxu0
        %375 = vmatprep.mubr.bf16.mxu0 0
        %376 = vmatmul.mubr.bf16.gmra.mrb[0].mxu0 %v273
        %v377 = vpop.f32.mrb[0].mxu0
        %v378 = vadd.f32 0.0, %v377
        %v379 = vpop.f32.mrb[0].mxu0
        %v380 = vpop.f32.mrb[0].mxu0
        %v381 = vadd.f32 0.0, %v380
        %v382 = vpop.f32.mrb[0].mxu0
        %383 = vmatprep.mubr.bf16.mxu0 0
        %384 = vmatmul.mubr.bf16.gmra.mrb[0].mxu0 %v274
        %v385 = vpop.f32.mrb[0].mxu0
        %v386 = vadd.f32 0.0, %v385
        %v387 = vpop.f32.mrb[0].mxu0
        %v388 = vpop.f32.mrb[0].mxu0
        %v389 = vadd.f32 0.0, %v388
        %v390 = vpop.f32.mrb[0].mxu0
        %391 = vdwg.mxu0
        %v392 = vpack.c.bf16 %v365, %v362
        %v393 = vpack.c.bf16 %v373, %v370
        %v394 = vpack.c.bf16 %v381, %v378
        %v395 = vpack.c.bf16 %v389, %v386
        %v400 = vunpack.c.l.b16 %v392
        %v401 = vunpack.c.h.b16 %v392
        %v402 = vunpack.c.l.b16 %v393
        %v403 = vunpack.c.h.b16 %v393
        %v404 = vunpack.c.l.b16 %v394
        %v405 = vunpack.c.h.b16 %v394
        %v406 = vunpack.c.l.b16 %v395
        %v407 = vunpack.c.h.b16 %v395
        %v408 = vpack.c.b16 %v400, %v400
        %v409 = vpack.c.b16 %v401, %v401
        %v410 = vpack.c.b16 %v402, %v402
        %v411 = vpack.c.b16 %v403, %v403
        %v412 = vpack.c.b16 %v404, %v404
        %v413 = vpack.c.b16 %v405, %v405
        %v414 = vpack.c.b16 %v406, %v406
        %v415 = vpack.c.b16 %v407, %v407
        %424 = vst [vmem:[%s223] sm:$0xf] %v408
        %425 = vst [vmem:[%s223 + $0x4] sm:$0xf] %v409
        %426 = vst [vmem:[%s223 + $0x8] sm:$0xf] %v410
        %427 = vst [vmem:[%s223 + $0xc] sm:$0xf] %v411
        %428 = vst [vmem:[%s223 + $0x10] sm:$0xf] %v412
        %429 = vst [vmem:[%s223 + $0x14] sm:$0xf] %v413
        %430 = vst [vmem:[%s223 + $0x18] sm:$0xf] %v414
        %431 = vst [vmem:[%s223 + $0x1c] sm:$0xf] %v415
        %v432 = vadd.f32 %v362, %v365
        %v433 = vadd.f32 %v432, %v370
        %v434 = vadd.f32 %v433, %v373
        %v435 = vadd.f32 %v434, %v378
        %v436 = vadd.f32 %v435, %v381
        %v437 = vadd.f32 %v436, %v386
        %v438 = vadd.f32 %v437, %v389
        %v439 = vrot.slane %v438, 4
        %v440 = vadd.f32 %v438, %v439
        %v441 = vrot.slane %v440, 2
        %v442 = vadd.f32 %v440, %v441
        %v443 = vrot.slane %v442, 1
        %v444 = vadd.f32 %v442, %v443
        %445 = vst [vmem:[%s226] sm:$0x1] %v444
        %v446 = vmul.f32 %v362, %v362
        %v447 = vmul.f32 %v365, %v365
        %v448 = vmul.f32 %v370, %v370
        %v449 = vmul.f32 %v373, %v373
        %v450 = vmul.f32 %v378, %v378
        %v451 = vmul.f32 %v381, %v381
        %v452 = vmul.f32 %v386, %v386
        %v453 = vmul.f32 %v389, %v389
        %v454 = vadd.f32 %v446, %v447
        %v455 = vadd.f32 %v454, %v448
        %v456 = vadd.f32 %v455, %v449
        %v457 = vadd.f32 %v456, %v450
        %v458 = vadd.f32 %v457, %v451
        %v459 = vadd.f32 %v458, %v452
        %v460 = vadd.f32 %v459, %v453
        %v461 = vrot.slane %v460, 4
        %v462 = vadd.f32 %v460, %v461
        %v463 = vrot.slane %v462, 2
        %v464 = vadd.f32 %v462, %v463
        %v465 = vrot.slane %v464, 1
        %v466 = vadd.f32 %v464, %v465
        %467 = vst [vmem:[%s229] sm:$0x1] %v466
        %p468 = scmp.lt.s32.totalorder %s17, 1
        %s469 = scalar_select %p468, %s17, 1
        %s470 = smul.addr %s469, 8
        %s471 = smul.addr %s470, 4
        %s472 = scalar_lea.vmem %s2, %s471
        %p473 = scmp.lt.s32.totalorder %s17, 1
        %s474 = scalar_select %p473, %s17, 1
        %s475 = scalar_lea.vmem %s3, %s474
        %p476 = scmp.lt.s32.totalorder %s17, 1
        %s477 = scalar_select %p476, %s17, 1
        %s478 = scalar_lea.vmem %s4, %s477
        // Predicated region
        $region33: #{bottleneck_forward.4} parent=27 // pred_check
          %p479 = pneg %p82
        $region34: #{bottleneck_forward.4} parent=27 // pred_check_branch
          %481 = sbr.rel (%p479) target = $region36
        $region35: #{bottleneck_forward.4} parent=27 // pred_region
          _
        $region36: #{bottleneck_forward.4} parent=27 // pred_fallthru
          _
        // Predicated region
        $region37: #{bottleneck_forward.4} parent=27 // pred_check
          %p482 = pneg %p108
        $region38: #{bottleneck_forward.4} parent=27 // pred_check_branch
          %484 = sbr.rel (%p482) target = $region40
        $region39: #{bottleneck_forward.4} parent=27 // pred_region
          _
        $region40: #{bottleneck_forward.4} parent=27 // pred_fallthru
          _
        // Predicated region
        $region41: #{bottleneck_forward.4} parent=27 // pred_check
          %p485 = pneg %p134
        $region42: #{bottleneck_forward.4} parent=27 // pred_check_branch
          %487 = sbr.rel (%p485) target = $region44
        $region43: #{bottleneck_forward.4} parent=27 // pred_region
          _
        $region44: #{bottleneck_forward.4} parent=27 // pred_fallthru
          _
      $region28: #{bottleneck_forward.4} parent=5 // pred_fallthru
        _
      %p488 = scmp.le.s32.totalorder 2, %s12
      // Predicated region
      $region45: #{bottleneck_forward.4} parent=5 // pred_check
        %p489 = pneg %p488
      $region46: #{bottleneck_forward.4} parent=5 // pred_check_branch
        %491 = sbr.rel (%p489) target = $region48
      $region47: #{bottleneck_forward.4} parent=5 // pred_region
        %s492 = ssub.s32 %s12, 2
        // Predicated region
        $region49: #{bottleneck_forward.4} parent=47 // pred_check
          %p493 = pneg %p88
        $region50: #{bottleneck_forward.4} parent=47 // pred_check_branch
          %495 = sbr.rel (%p493) target = $region52
        $region51: #{bottleneck_forward.4} parent=47 // pred_region
          %p496 = scmp.lt.s32.totalorder %s18, 1
          %s497 = scalar_select %p496, %s18, 1
          %s498 = smul.addr %s497, 8
          %s499 = smul.addr %s498, 4
          %s500 = scalar_lea.vmem %s2, %s499
        $region52: #{bottleneck_forward.4} parent=47 // pred_fallthru
          _
        // Predicated region
        $region53: #{bottleneck_forward.4} parent=47 // pred_check
          %p501 = pneg %p114
        $region54: #{bottleneck_forward.4} parent=47 // pred_check_branch
          %503 = sbr.rel (%p501) target = $region56
        $region55: #{bottleneck_forward.4} parent=47 // pred_region
          %p504 = scmp.lt.s32.totalorder %s18, 1
          %s505 = scalar_select %p504, %s18, 1
          %s506 = scalar_lea.vmem %s3, %s505
        $region56: #{bottleneck_forward.4} parent=47 // pred_fallthru
          _
        // Predicated region
        $region57: #{bottleneck_forward.4} parent=47 // pred_check
          %p507 = pneg %p140
        $region58: #{bottleneck_forward.4} parent=47 // pred_check_branch
          %509 = sbr.rel (%p507) target = $region60
        $region59: #{bottleneck_forward.4} parent=47 // pred_region
          %p510 = scmp.lt.s32.totalorder %s18, 1
          %s511 = scalar_select %p510, %s18, 1
          %s512 = scalar_lea.vmem %s4, %s511
        $region60: #{bottleneck_forward.4} parent=47 // pred_fallthru
          _
      $region48: #{bottleneck_forward.4} parent=5 // pred_fallthru
        _
    $region6: #{bottleneck_forward.4} parent=1 // loop_footer
      %s16 = sadd.s32 1, %s12
    $region7: #{bottleneck_forward.4} parent=1 // loop_footer_branch
      %11 = sbr.rel target = $region3
    $region8: #{bottleneck_forward.4} parent=1 // loop_exit
      _
    %513 = vsyncpa [#allocation3], 1
    %s514 = scalar_lea.sflag [#allocation3], 1
    %515 = vsyncpa %s514, 1

// kernel: bottleneck_forward.7
$region0: #{bottleneck_forward.7}
  #allocation0 [shape = 'u32[]', space=smem, size = 0x4, offset = 0x4, fixed_abs, tag = 'smem constant byte address 0x4 - core index']
  #allocation1 [shape = 'u32[144,128]{1,0:T(1,128)}', space=vmem, size = 0x12000, scoped, tag = 'internal scratch']
  %s0 = inlined_call_operand.vmem [shape: bf16[2,64,128], index: 0, kind: input, shape index: {}]
  %s1 = inlined_call_operand.vmem [shape: f32[1,128], index: 1, kind: input, shape index: {}]
  %s2 = inlined_call_operand.vmem [shape: f32[1,128], index: 2, kind: input, shape index: {}]
  %s3 = inlined_call_operand.vmem [shape: bf16[2,64,128], index: 3, kind: input, shape index: {}]
  %s4 = inlined_call_operand.vmem [shape: f32[2,64,128], index: 4, kind: output, shape index: {}]
  %s5 = sld [smem:[#allocation0]]
  $region49: #{bottleneck_forward.7} parent=0
    _
  %s7 = ssub.s32 1, %s5
  %s8 = scalar_select 0, %s7, %s5
  loop: start=0, step=1, limit=4
  $region2: #{bottleneck_forward.7} parent=0 // loop_pre_header
    _
  $region3: #{bottleneck_forward.7} parent=0 // loop_header
    %s10 = sphi 0, %s14
    %p11 = scmp.ge.s32.totalorder %s10, 4
    %s20 = sphi 0, %s22
    %s23 = sphi 0, %s20
    %s24 = sphi 0, %s23
    %s40 = sphi 0, %s24
    %s44 = sphi 0, %s44
    %s46 = sphi 0, %s44
    %s47 = sphi 0, %s46
    %s61 = sphi 0, %s47
    %s65 = sphi 0, %s65
    %s67 = sphi 0, %s65
    %s68 = sphi 0, %s67
    %s82 = sphi 0, %s68
    %s88 = sphi 0, %s90
    %s91 = sphi 0, %s88
    %s92 = sphi 0, %s91
    %s108 = sphi 0, %s92
    %s114 = sphi 0, %s116
    %s117 = sphi 0, %s114
    %s118 = sphi 0, %s117
    %s134 = sphi 0, %s118
  $region4: #{bottleneck_forward.7} parent=0 // loop_header_branch
    %13 = sbr.rel (%p11) target = $region8
  $region5: #{bottleneck_forward.7} parent=0 // loop_body
    %s15 = ssub.s32 %s10, 1
    %s16 = ssub.s32 %s10, 2
    %s17 = sadd.s32 %s10, 1
    %s18 = ssub.s32 %s10, %s17
    %p19 = scmp.eq.s32.totalorder %s18, 0
    %s21 = sadd.s32 %s20, 1
    %s22 = scalar_select %p19, %s20, %s21
    %p25 = pneg %p19
    %p26 = scmp.eq.s32.totalorder %s10, 1
    %p27 = por %p25, %p26
    %p28 = scmp.ne.s32.totalorder %s20, %s23
    %p29 = scmp.eq.s32.totalorder %s10, 0
    %p30 = por %p28, %p29
    %p31 = scmp.ne.s32.totalorder %s20, %s23
    %p32 = scmp.eq.s32.totalorder %s15, 1
    %p33 = por %p31, %p32
    %p34 = scmp.ne.s32.totalorder %s23, %s24
    %p35 = scmp.eq.s32.totalorder %s15, 0
    %p36 = por %p34, %p35
    %p37 = scmp.ne.s32.totalorder %s23, %s24
    %p38 = scmp.eq.s32.totalorder %s16, 1
    %p39 = por %p37, %p38
    %p41 = scmp.ne.s32.totalorder %s24, %s40
    %p42 = scmp.eq.s32.totalorder %s16, 0
    %p43 = por %p41, %p42
    %s45 = sadd.s32 %s44, 1
    %p48 = scmp.eq.s32.totalorder %s10, 1
    %p49 = scmp.ne.s32.totalorder %s44, %s46
    %p50 = scmp.eq.s32.totalorder %s10, 0
    %p51 = por %p49, %p50
    %p52 = scmp.ne.s32.totalorder %s44, %s46
    %p53 = scmp.eq.s32.totalorder %s15, 1
    %p54 = por %p52, %p53
    %p55 = scmp.ne.s32.totalorder %s46, %s47
    %p56 = scmp.eq.s32.totalorder %s15, 0
    %p57 = por %p55, %p56
    %p58 = scmp.ne.s32.totalorder %s46, %s47
    %p59 = scmp.eq.s32.totalorder %s16, 1
    %p60 = por %p58, %p59
    %p62 = scmp.ne.s32.totalorder %s47, %s61
    %p63 = scmp.eq.s32.totalorder %s16, 0
    %p64 = por %p62, %p63
    %s66 = sadd.s32 %s65, 1
    %p69 = scmp.eq.s32.totalorder %s10, 1
    %p70 = scmp.ne.s32.totalorder %s65, %s67
    %p71 = scmp.eq.s32.totalorder %s10, 0
    %p72 = por %p70, %p71
    %p73 = scmp.ne.s32.totalorder %s65, %s67
    %p74 = scmp.eq.s32.totalorder %s15, 1
    %p75 = por %p73, %p74
    %p76 = scmp.ne.s32.totalorder %s67, %s68
    %p77 = scmp.eq.s32.totalorder %s15, 0
    %p78 = por %p76, %p77
    %p79 = scmp.ne.s32.totalorder %s67, %s68
    %p80 = scmp.eq.s32.totalorder %s16, 1
    %p81 = por %p79, %p80
    %p83 = scmp.ne.s32.totalorder %s68, %s82
    %p84 = scmp.eq.s32.totalorder %s16, 0
    %p85 = por %p83, %p84
    %s86 = ssub.s32 %s10, %s17
    %p87 = scmp.eq.s32.totalorder %s86, 0
    %s89 = sadd.s32 %s88, 1
    %s90 = scalar_select %p87, %s88, %s89
    %p93 = pneg %p87
    %p94 = scmp.eq.s32.totalorder %s10, 1
    %p95 = por %p93, %p94
    %p96 = scmp.ne.s32.totalorder %s88, %s91
    %p97 = scmp.eq.s32.totalorder %s10, 0
    %p98 = por %p96, %p97
    %p99 = scmp.ne.s32.totalorder %s88, %s91
    %p100 = scmp.eq.s32.totalorder %s15, 1
    %p101 = por %p99, %p100
    %p102 = scmp.ne.s32.totalorder %s91, %s92
    %p103 = scmp.eq.s32.totalorder %s15, 0
    %p104 = por %p102, %p103
    %p105 = scmp.ne.s32.totalorder %s91, %s92
    %p106 = scmp.eq.s32.totalorder %s16, 1
    %p107 = por %p105, %p106
    %p109 = scmp.ne.s32.totalorder %s92, %s108
    %p110 = scmp.eq.s32.totalorder %s16, 0
    %p111 = por %p109, %p110
    %s112 = ssub.s32 %s10, %s17
    %p113 = scmp.eq.s32.totalorder %s112, 0
    %s115 = sadd.s32 %s114, 1
    %s116 = scalar_select %p113, %s114, %s115
    %p119 = pneg %p113
    %p120 = scmp.eq.s32.totalorder %s10, 1
    %p121 = por %p119, %p120
    %p122 = scmp.ne.s32.totalorder %s114, %s117
    %p123 = scmp.eq.s32.totalorder %s10, 0
    %p124 = por %p122, %p123
    %p125 = scmp.ne.s32.totalorder %s114, %s117
    %p126 = scmp.eq.s32.totalorder %s15, 1
    %p127 = por %p125, %p126
    %p128 = scmp.ne.s32.totalorder %s117, %s118
    %p129 = scmp.eq.s32.totalorder %s15, 0
    %p130 = por %p128, %p129
    %p131 = scmp.ne.s32.totalorder %s117, %s118
    %p132 = scmp.eq.s32.totalorder %s16, 1
    %p133 = por %p131, %p132
    %p135 = scmp.ne.s32.totalorder %s118, %s134
    %p136 = scmp.eq.s32.totalorder %s16, 0
    %p137 = por %p135, %p136
    %p138 = scmp.le.s32.totalorder 1, %s10
    %p139 = scmp.lt.s32.totalorder %s10, 3
    %p140 = pnand %p138, %p139
    %p141 = pneg %p140
    // Predicated region
    $region9: #{bottleneck_forward.7} parent=5 // pred_check
      _
    $region10: #{bottleneck_forward.7} parent=5 // pred_check_branch
      %143 = sbr.rel (%p140) target = $region12
    $region11: #{bottleneck_forward.7} parent=5 // pred_region
      %s144 = ssub.s32 %s10, 1
      // Predicated region
      $region13: #{bottleneck_forward.7} parent=11 // pred_check
        %p145 = pneg %p57
      $region14: #{bottleneck_forward.7} parent=11 // pred_check_branch
        %147 = sbr.rel (%p145) target = $region16
      $region15: #{bottleneck_forward.7} parent=11 // pred_region
        _
      $region16: #{bottleneck_forward.7} parent=11 // pred_fallthru
        _
      // Predicated region
      $region17: #{bottleneck_forward.7} parent=11 // pred_check
        %p148 = pneg %p78
      $region18: #{bottleneck_forward.7} parent=11 // pred_check_branch
        %150 = sbr.rel (%p148) target = $region20
      $region19: #{bottleneck_forward.7} parent=11 // pred_region
        _
      $region20: #{bottleneck_forward.7} parent=11 // pred_fallthru
        _
    $region12: #{bottleneck_forward.7} parent=5 // pred_fallthru
      _
    %p151 = scmp.lt.s32.totalorder %s10, 2
    // Predicated region
    $region21: #{bottleneck_forward.7} parent=5 // pred_check
      %p152 = pneg %p151
    $region22: #{bottleneck_forward.7} parent=5 // pred_check_branch
      %154 = sbr.rel (%p152) target = $region24
    $region23: #{bottleneck_forward.7} parent=5 // pred_region
      // Predicated region
      $region25: #{bottleneck_forward.7} parent=23 // pred_check
        %p155 = pneg %p30
      $region26: #{bottleneck_forward.7} parent=23 // pred_check_branch
        %157 = sbr.rel (%p155) target = $region28
      $region27: #{bottleneck_forward.7} parent=23 // pred_region
        %p158 = scmp.lt.s32.totalorder %s10, 1
        %s159 = scalar_select %p158, %s10, 1
        %s160 = smul.addr %s159, 8
        %s161 = smul.addr %s160, 4
        %s162 = scalar_lea.vmem %s0, %s161
      $region28: #{bottleneck_forward.7} parent=23 // pred_fallthru
        _
      // Predicated region
      $region29: #{bottleneck_forward.7} parent=23 // pred_check
        %p163 = pneg %p98
      $region30: #{bottleneck_forward.7} parent=23 // pred_check_branch
        %165 = sbr.rel (%p163) target = $region32
      $region31: #{bottleneck_forward.7} parent=23 // pred_region
        %p166 = scmp.lt.s32.totalorder %s10, 1
        %s167 = scalar_select %p166, %s10, 1
        %s168 = smul.addr %s167, 8
        %s169 = smul.addr %s168, 4
        %s170 = scalar_lea.vmem %s3, %s169
      $region32: #{bottleneck_forward.7} parent=23 // pred_fallthru
        _
    $region24: #{bottleneck_forward.7} parent=5 // pred_fallthru
      _
    %p171 = scmp.le.s32.totalorder 1, %s10
    %p172 = scmp.lt.s32.totalorder %s10, 3
    %p173 = pnand %p171, %p172
    %p174 = pneg %p173
    // Predicated region
    $region33: #{bottleneck_forward.7} parent=5 // pred_check
      _
    $region34: #{bottleneck_forward.7} parent=5 // pred_check_branch
      %176 = sbr.rel (%p173) target = $region36
    $region35: #{bottleneck_forward.7} parent=5 // pred_region
      %s177 = ssub.s32 %s10, 1
      %p178 = scmp.lt.s32.totalorder %s15, 1
      %s179 = scalar_select %p178, %s15, 1
      %s180 = smul.addr %s179, 8
      %s181 = smul.addr %s180, 4
      %s182 = scalar_lea.vmem %s0, %s181
      %p183 = pneg %p36
      %p184 = pneg %p33
      %p185 = pneg %p57
      %p186 = pneg %p54
      %p187 = pneg %p78
      %p188 = pneg %p75
      %p189 = scmp.lt.s32.totalorder %s15, 1
      %s190 = scalar_select %p189, %s15, 1
      %s191 = smul.addr %s190, 8
      %s192 = smul.addr %s191, 4
      %s193 = scalar_lea.vmem %s3, %s192
      %p194 = pneg %p104
      %p195 = pneg %p101
      %p196 = pneg %p130
      %p197 = pneg %p127
      %p198 = scmp.lt.s32.totalorder %s15, 1
      %s199 = scalar_select %p198, %s15, 1
      %s200 = smul.addr %s199, 8
      %s201 = smul.addr %s200, 8
      %s202 = scalar_lea.vmem %s4, %s201
      %p203 = scmp.lt.s32.totalorder %s15, 1
      %s204 = scalar_select %p203, %s15, 1
      %s205 = smul.addr %s204, 8
      %s206 = smul.addr %s205, 4
      %s207 = scalar_lea.vmem %s0, %s206
      %p208 = scmp.lt.s32.totalorder %s15, 1
      %s209 = scalar_select %p208, %s15, 1
      %s210 = smul.addr %s209, 8
      %s211 = smul.addr %s210, 4
      %s212 = scalar_lea.vmem %s3, %s211
      %p213 = scmp.lt.s32.totalorder %s15, 1
      %s214 = scalar_select %p213, %s15, 1
      %s215 = smul.addr %s214, 8
      %s216 = smul.addr %s215, 8
      %s217 = scalar_lea.vmem %s4, %s216
      %v218 = vld [vmem:[%s207] sm:$0xf]
      %v219 = vld [vmem:[%s207 + $0x4] sm:$0xf]
      %v220 = vld [vmem:[%s207 + $0x8] sm:$0xf]
      %v221 = vld [vmem:[%s207 + $0xc] sm:$0xf]
      %v222 = vld [vmem:[%s207 + $0x10] sm:$0xf]
      %v223 = vld [vmem:[%s207 + $0x14] sm:$0xf]
      %v224 = vld [vmem:[%s207 + $0x18] sm:$0xf]
      %v225 = vld [vmem:[%s207 + $0x1c] sm:$0xf]
      %v226 = vunpack.c.l.bf16 %v218
      %v227 = vunpack.c.l.bf16 %v219
      %v228 = vunpack.c.l.bf16 %v220
      %v229 = vunpack.c.l.bf16 %v221
      %v230 = vunpack.c.l.bf16 %v222
      %v231 = vunpack.c.l.bf16 %v223
      %v232 = vunpack.c.l.bf16 %v224
      %v233 = vunpack.c.l.bf16 %v225
      %v234 = vld [vmem:[%s1] sm:$0x1]
      %v236 = vlaneseq
      %v237 = vshrl.u32 %v236, 7
      %v238 = vsub.s32 0, %v237
      %v239 = vrot.slane %v234, %v238
      %v241 = vmul.f32 %v226, %v239
      %v242 = vmul.f32 %v227, %v239
      %v243 = vmul.f32 %v228, %v239
      %v244 = vmul.f32 %v229, %v239
      %v245 = vmul.f32 %v230, %v239
      %v246 = vmul.f32 %v231, %v239
      %v247 = vmul.f32 %v232, %v239
      %v248 = vmul.f32 %v233, %v239
      %v249 = vld [vmem:[%s2] sm:$0x1]
      %v251 = vlaneseq
      %v252 = vshrl.u32 %v251, 7
      %v253 = vsub.s32 0, %v252
      %v254 = vrot.slane %v249, %v253
      %v256 = vadd.f32 %v241, %v254
      %v257 = vadd.f32 %v242, %v254
      %v258 = vadd.f32 %v243, %v254
      %v259 = vadd.f32 %v244, %v254
      %v260 = vadd.f32 %v245, %v254
      %v261 = vadd.f32 %v246, %v254
      %v262 = vadd.f32 %v247, %v254
      %v263 = vadd.f32 %v248, %v254
      %v264 = vld [vmem:[%s212] sm:$0xf]
      %v265 = vld [vmem:[%s212 + $0x4] sm:$0xf]
      %v266 = vld [vmem:[%s212 + $0x8] sm:$0xf]
      %v267 = vld [vmem:[%s212 + $0xc] sm:$0xf]
      %v268 = vld [vmem:[%s212 + $0x10] sm:$0xf]
      %v269 = vld [vmem:[%s212 + $0x14] sm:$0xf]
      %v270 = vld [vmem:[%s212 + $0x18] sm:$0xf]
      %v271 = vld [vmem:[%s212 + $0x1c] sm:$0xf]
      %v272 = vunpack.c.l.bf16 %v264
      %v273 = vunpack.c.l.bf16 %v265
      %v274 = vunpack.c.l.bf16 %v266
      %v275 = vunpack.c.l.bf16 %v267
      %v276 = vunpack.c.l.bf16 %v268
      %v277 = vunpack.c.l.bf16 %v269
      %v278 = vunpack.c.l.bf16 %v270
      %v279 = vunpack.c.l.bf16 %v271
      %v280 = vadd.f32 %v256, %v272
      %v281 = vadd.f32 %v257, %v273
      %v282 = vadd.f32 %v258, %v274
      %v283 = vadd.f32 %v259, %v275
      %v284 = vadd.f32 %v260, %v276
      %v285 = vadd.f32 %v261, %v277
      %v286 = vadd.f32 %v262, %v278
      %v287 = vadd.f32 %v263, %v279
      %v288 = vmax.f32 %v280, 0.0
      %v289 = vmax.f32 %v281, 0.0
      %v290 = vmax.f32 %v282, 0.0
      %v291 = vmax.f32 %v283, 0.0
      %v292 = vmax.f32 %v284, 0.0
      %v293 = vmax.f32 %v285, 0.0
      %v294 = vmax.f32 %v286, 0.0
      %v295 = vmax.f32 %v287, 0.0
      %296 = vst [vmem:[%s217] sm:$0xff] %v288
      %297 = vst [vmem:[%s217 + $0x8] sm:$0xff] %v289
      %298 = vst [vmem:[%s217 + $0x10] sm:$0xff] %v290
      %299 = vst [vmem:[%s217 + $0x18] sm:$0xff] %v291
      %300 = vst [vmem:[%s217 + $0x20] sm:$0xff] %v292
      %301 = vst [vmem:[%s217 + $0x28] sm:$0xff] %v293
      %302 = vst [vmem:[%s217 + $0x30] sm:$0xff] %v294
      %303 = vst [vmem:[%s217 + $0x38] sm:$0xff] %v295
      %p304 = scmp.lt.s32.totalorder %s15, 1
      %s305 = scalar_select %p304, %s15, 1
      %s306 = smul.addr %s305, 8
      %s307 = smul.addr %s306, 8
      %s308 = scalar_lea.vmem %s4, %s307
      // Predicated region
      $region37: #{bottleneck_forward.7} parent=35 // pred_check
        %p309 = pneg %p127
      $region38: #{bottleneck_forward.7} parent=35 // pred_check_branch
        %311 = sbr.rel (%p309) target = $region40
      $region39: #{bottleneck_forward.7} parent=35 // pred_region
        _
      $region40: #{bottleneck_forward.7} parent=35 // pred_fallthru
        _
    $region36: #{bottleneck_forward.7} parent=5 // pred_fallthru
      _
    %p312 = scmp.le.s32.totalorder 2, %s10
    // Predicated region
    $region41: #{bottleneck_forward.7} parent=5 // pred_check
      %p313 = pneg %p312
    $region42: #{bottleneck_forward.7} parent=5 // pred_check_branch
      %315 = sbr.rel (%p313) target = $region44
    $region43: #{bottleneck_forward.7} parent=5 // pred_region
      %s316 = ssub.s32 %s10, 2
      // Predicated region
      $region45: #{bottleneck_forward.7} parent=43 // pred_check
        %p317 = pneg %p133
      $region46: #{bottleneck_forward.7} parent=43 // pred_check_branch
        %319 = sbr.rel (%p317) target = $region48
      $region47: #{bottleneck_forward.7} parent=43 // pred_region
        %p320 = scmp.lt.s32.totalorder %s16, 1
        %s321 = scalar_select %p320, %s16, 1
        %s322 = smul.addr %s321, 8
        %s323 = smul.addr %s322, 8
        %s324 = scalar_lea.vmem %s4, %s323
      $region48: #{bottleneck_forward.7} parent=43 // pred_fallthru
        _
    $region44: #{bottleneck_forward.7} parent=5 // pred_fallthru
      _
  $region6: #{bottleneck_forward.7} parent=0 // loop_footer
    %s14 = sadd.s32 1, %s10
  $region7: #{bottleneck_forward.7} parent=0 // loop_footer_branch
    %9 = sbr.rel target = $region3
  $region8: #{bottleneck_forward.7} parent=0 // loop_exit
    _

// kernel: bottleneck_forward.6
$region0: #{bottleneck_forward.6}
  #allocation0 [shape = 'u32[]', space=smem, size = 0x4, offset = 0x4, fixed_abs, tag = 'smem constant byte address 0x4 - core index']
  #allocation1 [shape = 'u32[144,128]{1,0:T(1,128)}', space=vmem, size = 0x12000, scoped, tag = 'internal scratch']
  %s0 = inlined_call_operand.vmem [shape: bf16[2,64,128], index: 0, kind: input, shape index: {}]
  %s1 = inlined_call_operand.vmem [shape: f32[1,128], index: 1, kind: input, shape index: {}]
  %s2 = inlined_call_operand.vmem [shape: f32[1,128], index: 2, kind: input, shape index: {}]
  %s3 = inlined_call_operand.vmem [shape: bf16[128,128], index: 3, kind: input, shape index: {}]
  %s4 = inlined_call_operand.vmem [shape: bf16[2,64,128], index: 4, kind: output, shape index: {0}]
  %s5 = inlined_call_operand.vmem [shape: f32[2,1,128], index: 5, kind: output, shape index: {1}]
  %s6 = inlined_call_operand.vmem [shape: f32[2,1,128], index: 6, kind: output, shape index: {2}]
  %7 = xla_tuple %s4, %s5, %s6
  %s8 = sld [smem:[#allocation0]]
  $region65: #{bottleneck_forward.6} parent=0
    _
  %s10 = ssub.s32 1, %s8
  %s11 = scalar_select 0, %s10, %s8
  loop: start=0, step=1, limit=4
  $region2: #{bottleneck_forward.6} parent=0 // loop_pre_header
    _
  $region3: #{bottleneck_forward.6} parent=0 // loop_header
    %s13 = sphi 0, %s17
    %p14 = scmp.ge.s32.totalorder %s13, 4
    %s23 = sphi 0, %s25
    %s26 = sphi 0, %s23
    %s27 = sphi 0, %s26
    %s43 = sphi 0, %s27
    %s47 = sphi 0, %s47
    %s49 = sphi 0, %s47
    %s50 = sphi 0, %s49
    %s64 = sphi 0, %s50
    %s68 = sphi 0, %s68
    %s70 = sphi 0, %s68
    %s71 = sphi 0, %s70
    %s85 = sphi 0, %s71
    %s89 = sphi 0, %s89
    %s91 = sphi 0, %s89
    %s92 = sphi 0, %s91
    %s106 = sphi 0, %s92
    %s112 = sphi 0, %s114
    %s115 = sphi 0, %s112
    %s116 = sphi 0, %s115
    %s132 = sphi 0, %s116
    %s138 = sphi 0, %s140
    %s141 = sphi 0, %s138
    %s142 = sphi 0, %s141
    %s158 = sphi 0, %s142
    %s164 = sphi 0, %s166
    %s167 = sphi 0, %s164
    %s168 = sphi 0, %s167
    %s184 = sphi 0, %s168
  $region4: #{bottleneck_forward.6} parent=0 // loop_header_branch
    %16 = sbr.rel (%p14) target = $region8
  $region5: #{bottleneck_forward.6} parent=0 // loop_body
    %s18 = ssub.s32 %s13, 1
    %s19 = ssub.s32 %s13, 2
    %s20 = sadd.s32 %s13, 1
    %s21 = ssub.s32 %s13, %s20
    %p22 = scmp.eq.s32.totalorder %s21, 0
    %s24 = sadd.s32 %s23, 1
    %s25 = scalar_select %p22, %s23, %s24
    %p28 = pneg %p22
    %p29 = scmp.eq.s32.totalorder %s13, 1
    %p30 = por %p28, %p29
    %p31 = scmp.ne.s32.totalorder %s23, %s26
    %p32 = scmp.eq.s32.totalorder %s13, 0
    %p33 = por %p31, %p32
    %p34 = scmp.ne.s32.totalorder %s23, %s26
    %p35 = scmp.eq.s32.totalorder %s18, 1
    %p36 = por %p34, %p35
    %p37 = scmp.ne.s32.totalorder %s26, %s27
    %p38 = scmp.eq.s32.totalorder %s18, 0
    %p39 = por %p37, %p38
    %p40 = scmp.ne.s32.totalorder %s26, %s27
    %p41 = scmp.eq.s32.totalorder %s19, 1
    %p42 = por %p40, %p41
    %p44 = scmp.ne.s32.totalorder %s27, %s43
    %p45 = scmp.eq.s32.totalorder %s19, 0
    %p46 = por %p44, %p45
    %s48 = sadd.s32 %s47, 1
    %p51 = scmp.eq.s32.totalorder %s13, 1
    %p52 = scmp.ne.s32.totalorder %s47, %s49
    %p53 = scmp.eq.s32.totalorder %s13, 0
    %p54 = por %p52, %p53
    %p55 = scmp.ne.s32.totalorder %s47, %s49
    %p56 = scmp.eq.s32.totalorder %s18, 1
    %p57 = por %p55, %p56
    %p58 = scmp.ne.s32.totalorder %s49, %s50
    %p59 = scmp.eq.s32.totalorder %s18, 0
    %p60 = por %p58, %p59
    %p61 = scmp.ne.s32.totalorder %s49, %s50
    %p62 = scmp.eq.s32.totalorder %s19, 1
    %p63 = por %p61, %p62
    %p65 = scmp.ne.s32.totalorder %s50, %s64
    %p66 = scmp.eq.s32.totalorder %s19, 0
    %p67 = por %p65, %p66
    %s69 = sadd.s32 %s68, 1
    %p72 = scmp.eq.s32.totalorder %s13, 1
    %p73 = scmp.ne.s32.totalorder %s68, %s70
    %p74 = scmp.eq.s32.totalorder %s13, 0
    %p75 = por %p73, %p74
    %p76 = scmp.ne.s32.totalorder %s68, %s70
    %p77 = scmp.eq.s32.totalorder %s18, 1
    %p78 = por %p76, %p77
    %p79 = scmp.ne.s32.totalorder %s70, %s71
    %p80 = scmp.eq.s32.totalorder %s18, 0
    %p81 = por %p79, %p80
    %p82 = scmp.ne.s32.totalorder %s70, %s71
    %p83 = scmp.eq.s32.totalorder %s19, 1
    %p84 = por %p82, %p83
    %p86 = scmp.ne.s32.totalorder %s71, %s85
    %p87 = scmp.eq.s32.totalorder %s19, 0
    %p88 = por %p86, %p87
    %s90 = sadd.s32 %s89, 1
    %p93 = scmp.eq.s32.totalorder %s13, 1
    %p94 = scmp.ne.s32.totalorder %s89, %s91
    %p95 = scmp.eq.s32.totalorder %s13, 0
    %p96 = por %p94, %p95
    %p97 = scmp.ne.s32.totalorder %s89, %s91
    %p98 = scmp.eq.s32.totalorder %s18, 1
    %p99 = por %p97, %p98
    %p100 = scmp.ne.s32.totalorder %s91, %s92
    %p101 = scmp.eq.s32.totalorder %s18, 0
    %p102 = por %p100, %p101
    %p103 = scmp.ne.s32.totalorder %s91, %s92
    %p104 = scmp.eq.s32.totalorder %s19, 1
    %p105 = por %p103, %p104
    %p107 = scmp.ne.s32.totalorder %s92, %s106
    %p108 = scmp.eq.s32.totalorder %s19, 0
    %p109 = por %p107, %p108
    %s110 = ssub.s32 %s13, %s20
    %p111 = scmp.eq.s32.totalorder %s110, 0
    %s113 = sadd.s32 %s112, 1
    %s114 = scalar_select %p111, %s112, %s113
    %p117 = pneg %p111
    %p118 = scmp.eq.s32.totalorder %s13, 1
    %p119 = por %p117, %p118
    %p120 = scmp.ne.s32.totalorder %s112, %s115
    %p121 = scmp.eq.s32.totalorder %s13, 0
    %p122 = por %p120, %p121
    %p123 = scmp.ne.s32.totalorder %s112, %s115
    %p124 = scmp.eq.s32.totalorder %s18, 1
    %p125 = por %p123, %p124
    %p126 = scmp.ne.s32.totalorder %s115, %s116
    %p127 = scmp.eq.s32.totalorder %s18, 0
    %p128 = por %p126, %p127
    %p129 = scmp.ne.s32.totalorder %s115, %s116
    %p130 = scmp.eq.s32.totalorder %s19, 1
    %p131 = por %p129, %p130
    %p133 = scmp.ne.s32.totalorder %s116, %s132
    %p134 = scmp.eq.s32.totalorder %s19, 0
    %p135 = por %p133, %p134
    %s136 = ssub.s32 %s13, %s20
    %p137 = scmp.eq.s32.totalorder %s136, 0
    %s139 = sadd.s32 %s138, 1
    %s140 = scalar_select %p137, %s138, %s139
    %p143 = pneg %p137
    %p144 = scmp.eq.s32.totalorder %s13, 1
    %p145 = por %p143, %p144
    %p146 = scmp.ne.s32.totalorder %s138, %s141
    %p147 = scmp.eq.s32.totalorder %s13, 0
    %p148 = por %p146, %p147
    %p149 = scmp.ne.s32.totalorder %s138, %s141
    %p150 = scmp.eq.s32.totalorder %s18, 1
    %p151 = por %p149, %p150
    %p152 = scmp.ne.s32.totalorder %s141, %s142
    %p153 = scmp.eq.s32.totalorder %s18, 0
    %p154 = por %p152, %p153
    %p155 = scmp.ne.s32.totalorder %s141, %s142
    %p156 = scmp.eq.s32.totalorder %s19, 1
    %p157 = por %p155, %p156
    %p159 = scmp.ne.s32.totalorder %s142, %s158
    %p160 = scmp.eq.s32.totalorder %s19, 0
    %p161 = por %p159, %p160
    %s162 = ssub.s32 %s13, %s20
    %p163 = scmp.eq.s32.totalorder %s162, 0
    %s165 = sadd.s32 %s164, 1
    %s166 = scalar_select %p163, %s164, %s165
    %p169 = pneg %p163
    %p170 = scmp.eq.s32.totalorder %s13, 1
    %p171 = por %p169, %p170
    %p172 = scmp.ne.s32.totalorder %s164, %s167
    %p173 = scmp.eq.s32.totalorder %s13, 0
    %p174 = por %p172, %p173
    %p175 = scmp.ne.s32.totalorder %s164, %s167
    %p176 = scmp.eq.s32.totalorder %s18, 1
    %p177 = por %p175, %p176
    %p178 = scmp.ne.s32.totalorder %s167, %s168
    %p179 = scmp.eq.s32.totalorder %s18, 0
    %p180 = por %p178, %p179
    %p181 = scmp.ne.s32.totalorder %s167, %s168
    %p182 = scmp.eq.s32.totalorder %s19, 1
    %p183 = por %p181, %p182
    %p185 = scmp.ne.s32.totalorder %s168, %s184
    %p186 = scmp.eq.s32.totalorder %s19, 0
    %p187 = por %p185, %p186
    %p188 = scmp.le.s32.totalorder 1, %s13
    %p189 = scmp.lt.s32.totalorder %s13, 3
    %p190 = pnand %p188, %p189
    %p191 = pneg %p190
    // Predicated region
    $region9: #{bottleneck_forward.6} parent=5 // pred_check
      _
    $region10: #{bottleneck_forward.6} parent=5 // pred_check_branch
      %193 = sbr.rel (%p190) target = $region12
    $region11: #{bottleneck_forward.6} parent=5 // pred_region
      %s194 = ssub.s32 %s13, 1
      // Predicated region
      $region13: #{bottleneck_forward.6} parent=11 // pred_check
        %p195 = pneg %p60
      $region14: #{bottleneck_forward.6} parent=11 // pred_check_branch
        %197 = sbr.rel (%p195) target = $region16
      $region15: #{bottleneck_forward.6} parent=11 // pred_region
        _
      $region16: #{bottleneck_forward.6} parent=11 // pred_fallthru
        _
      // Predicated region
      $region17: #{bottleneck_forward.6} parent=11 // pred_check
        %p198 = pneg %p81
      $region18: #{bottleneck_forward.6} parent=11 // pred_check_branch
        %200 = sbr.rel (%p198) target = $region20
      $region19: #{bottleneck_forward.6} parent=11 // pred_region
        _
      $region20: #{bottleneck_forward.6} parent=11 // pred_fallthru
        _
      // Predicated region
      $region21: #{bottleneck_forward.6} parent=11 // pred_check
        %p201 = pneg %p102
      $region22: #{bottleneck_forward.6} parent=11 // pred_check_branch
        %203 = sbr.rel (%p201) target = $region24
      $region23: #{bottleneck_forward.6} parent=11 // pred_region
        _
      $region24: #{bottleneck_forward.6} parent=11 // pred_fallthru
        _
    $region12: #{bottleneck_forward.6} parent=5 // pred_fallthru
      _
    %p204 = scmp.lt.s32.totalorder %s13, 2
    // Predicated region
    $region25: #{bottleneck_forward.6} parent=5 // pred_check
      %p205 = pneg %p204
    $region26: #{bottleneck_forward.6} parent=5 // pred_check_branch
      %207 = sbr.rel (%p205) target = $region28
    $region27: #{bottleneck_forward.6} parent=5 // pred_region
      // Predicated region
      $region29: #{bottleneck_forward.6} parent=27 // pred_check
        %p208 = pneg %p33
      $region30: #{bottleneck_forward.6} parent=27 // pred_check_branch
        %210 = sbr.rel (%p208) target = $region32
      $region31: #{bottleneck_forward.6} parent=27 // pred_region
        %p211 = scmp.lt.s32.totalorder %s13, 1
        %s212 = scalar_select %p211, %s13, 1
        %s213 = smul.addr %s212, 8
        %s214 = smul.addr %s213, 4
        %s215 = scalar_lea.vmem %s0, %s214
      $region32: #{bottleneck_forward.6} parent=27 // pred_fallthru
        _
    $region28: #{bottleneck_forward.6} parent=5 // pred_fallthru
      _
    %p216 = scmp.le.s32.totalorder 1, %s13
    %p217 = scmp.lt.s32.totalorder %s13, 3
    %p218 = pnand %p216, %p217
    %p219 = pneg %p218
    // Predicated region
    $region33: #{bottleneck_forward.6} parent=5 // pred_check
      _
    $region34: #{bottleneck_forward.6} parent=5 // pred_check_branch
      %221 = sbr.rel (%p218) target = $region36
    $region35: #{bottleneck_forward.6} parent=5 // pred_region
      %s222 = ssub.s32 %s13, 1
      %p223 = scmp.lt.s32.totalorder %s18, 1
      %s224 = scalar_select %p223, %s18, 1
      %s225 = smul.addr %s224, 8
      %s226 = smul.addr %s225, 4
      %s227 = scalar_lea.vmem %s0, %s226
      %p228 = pneg %p39
      %p229 = pneg %p36
      %p230 = pneg %p60
      %p231 = pneg %p57
      %p232 = pneg %p81
      %p233 = pneg %p78
      %p234 = pneg %p102
      %p235 = pneg %p99
      %p236 = pneg %p128
      %p237 = pneg %p125
      %p238 = scmp.lt.s32.totalorder %s18, 1
      %s239 = scalar_select %p238, %s18, 1
      %s240 = smul.addr %s239, 8
      %s241 = smul.addr %s240, 4
      %s242 = scalar_lea.vmem %s4, %s241
      %p243 = pneg %p154
      %p244 = pneg %p151
      %p245 = scmp.lt.s32.totalorder %s18, 1
      %s246 = scalar_select %p245, %s18, 1
      %s247 = scalar_lea.vmem %s5, %s246
      %p248 = pneg %p180
      %p249 = pneg %p177
      %p250 = scmp.lt.s32.totalorder %s18, 1
      %s251 = scalar_select %p250, %s18, 1
      %s252 = scalar_lea.vmem %s6, %s251
      %p253 = scmp.lt.s32.totalorder %s18, 1
      %s254 = scalar_select %p253, %s18, 1
      %s255 = smul.addr %s254, 8
      %s256 = smul.addr %s255, 4
      %s257 = scalar_lea.vmem %s0, %s256
      %p258 = scmp.lt.s32.totalorder %s18, 1
      %s259 = scalar_select %p258, %s18, 1
      %s260 = smul.addr %s259, 8
      %s261 = smul.addr %s260, 4
      %s262 = scalar_lea.vmem %s4, %s261
      %p263 = scmp.lt.s32.totalorder %s18, 1
      %s264 = scalar_select %p263, %s18, 1
      %s265 = scalar_lea.vmem %s5, %s264
      %p266 = scmp.lt.s32.totalorder %s18, 1
      %s267 = scalar_select %p266, %s18, 1
      %s268 = scalar_lea.vmem %s6, %s267
      %v270 = vld [vmem:[%s257] sm:$0xf]
      %v271 = vld [vmem:[%s257 + $0x4] sm:$0xf]
      %v272 = vld [vmem:[%s257 + $0x8] sm:$0xf]
      %v273 = vld [vmem:[%s257 + $0xc] sm:$0xf]
      %v274 = vld [vmem:[%s257 + $0x10] sm:$0xf]
      %v275 = vld [vmem:[%s257 + $0x14] sm:$0xf]
      %v276 = vld [vmem:[%s257 + $0x18] sm:$0xf]
      %v277 = vld [vmem:[%s257 + $0x1c] sm:$0xf]
      %v278 = vunpack.c.l.bf16 %v270
      %v279 = vunpack.c.l.bf16 %v271
      %v280 = vunpack.c.l.bf16 %v272
      %v281 = vunpack.c.l.bf16 %v273
      %v282 = vunpack.c.l.bf16 %v274
      %v283 = vunpack.c.l.bf16 %v275
      %v284 = vunpack.c.l.bf16 %v276
      %v285 = vunpack.c.l.bf16 %v277
      %v286 = vld [vmem:[%s1] sm:$0x1]
      %v288 = vlaneseq
      %v289 = vshrl.u32 %v288, 7
      %v290 = vsub.s32 0, %v289
      %v291 = vrot.slane %v286, %v290
      %v293 = vmul.f32 %v278, %v291
      %v294 = vmul.f32 %v279, %v291
      %v295 = vmul.f32 %v280, %v291
      %v296 = vmul.f32 %v281, %v291
      %v297 = vmul.f32 %v282, %v291
      %v298 = vmul.f32 %v283, %v291
      %v299 = vmul.f32 %v284, %v291
      %v300 = vmul.f32 %v285, %v291
      %v301 = vld [vmem:[%s2] sm:$0x1]
      %v303 = vlaneseq
      %v304 = vshrl.u32 %v303, 7
      %v305 = vsub.s32 0, %v304
      %v306 = vrot.slane %v301, %v305
      %v308 = vadd.f32 %v293, %v306
      %v309 = vadd.f32 %v294, %v306
      %v310 = vadd.f32 %v295, %v306
      %v311 = vadd.f32 %v296, %v306
      %v312 = vadd.f32 %v297, %v306
      %v313 = vadd.f32 %v298, %v306
      %v314 = vadd.f32 %v299, %v306
      %v315 = vadd.f32 %v300, %v306
      %v316 = vmax.f32 %v308, 0.0
      %v317 = vmax.f32 %v309, 0.0
      %v318 = vmax.f32 %v310, 0.0
      %v319 = vmax.f32 %v311, 0.0
      %v320 = vmax.f32 %v312, 0.0
      %v321 = vmax.f32 %v313, 0.0
      %v322 = vmax.f32 %v314, 0.0
      %v323 = vmax.f32 %v315, 0.0
      %v324 = vpack.c.bf16 %v317, %v316
      %v325 = vpack.c.bf16 %v319, %v318
      %v326 = vpack.c.bf16 %v321, %v320
      %v327 = vpack.c.bf16 %v323, %v322
      %v328 = vld [vmem:[%s3] sm:$0xf]
      %v329 = vld [vmem:[%s3 + $0x4] sm:$0xf]
      %v330 = vld [vmem:[%s3 + $0x8] sm:$0xf]
      %v331 = vld [vmem:[%s3 + $0xc] sm:$0xf]
      %v332 = vld [vmem:[%s3 + $0x10] sm:$0xf]
      %v333 = vld [vmem:[%s3 + $0x14] sm:$0xf]
      %v334 = vld [vmem:[%s3 + $0x18] sm:$0xf]
      %v335 = vld [vmem:[%s3 + $0x1c] sm:$0xf]
      %v336 = vld [vmem:[%s3 + $0x20] sm:$0xf]
      %v337 = vld [vmem:[%s3 + $0x24] sm:$0xf]
      %v338 = vld [vmem:[%s3 + $0x28] sm:$0xf]
      %v339 = vld [vmem:[%s3 + $0x2c] sm:$0xf]
      %v340 = vld [vmem:[%s3 + $0x30] sm:$0xf]
      %v341 = vld [vmem:[%s3 + $0x34] sm:$0xf]
      %v342 = vld [vmem:[%s3 + $0x38] sm:$0xf]
      %v343 = vld [vmem:[%s3 + $0x3c] sm:$0xf]
      %v360 = vunpack.c.l.b16 %v328
      %v361 = vunpack.c.l.b16 %v329
      %v362 = vunpack.c.l.b16 %v330
      %v363 = vunpack.c.l.b16 %v331
      %v364 = vunpack.c.l.b16 %v332
      %v365 = vunpack.c.l.b16 %v333
      %v366 = vunpack.c.l.b16 %v334
      %v367 = vunpack.c.l.b16 %v335
      %v368 = vunpack.c.l.b16 %v336
      %v369 = vunpack.c.l.b16 %v337
      %v370 = vunpack.c.l.b16 %v338
      %v371 = vunpack.c.l.b16 %v339
      %v372 = vunpack.c.l.b16 %v340
      %v373 = vunpack.c.l.b16 %v341
      %v374 = vunpack.c.l.b16 %v342
      %v375 = vunpack.c.l.b16 %v343
      %v376 = vpack.c.b16 %v361, %v360
      %v377 = vpack.c.b16 %v363, %v362
      %v378 = vpack.c.b16 %v365, %v364
      %v379 = vpack.c.b16 %v367, %v366
      %v380 = vpack.c.b16 %v369, %v368
      %v381 = vpack.c.b16 %v371, %v370
      %v382 = vpack.c.b16 %v373, %v372
      %v383 = vpack.c.b16 %v375, %v374
      %392 = vmatprep.subr.bf16.mxu0 0
      %393 = vmatpush1.bf16.msra.mxu0 %v376
      %394 = vmatprep.subr.bf16.mxu0 0
      %395 = vmatpush1.bf16.msra.mxu0 %v377
      %396 = vmatprep.subr.bf16.mxu0 0
      %397 = vmatpush1.bf16.msra.mxu0 %v378
      %398 = vmatprep.subr.bf16.mxu0 0
      %399 = vmatpush1.bf16.msra.mxu0 %v379
      %400 = vmatprep.subr.bf16.mxu0 0
      %401 = vmatpush1.bf16.msra.mxu0 %v380
      %402 = vmatprep.subr.bf16.mxu0 0
      %403 = vmatpush1.bf16.msra.mxu0 %v381
      %404 = vmatprep.subr.bf16.mxu0 0
      %405 = vmatpush1.bf16.msra.mxu0 %v382
      %406 = vmatprep.subr.bf16.mxu0 0
      %407 = vmatpush1.bf16.msra.mxu0 %v383
      %408 = vmatprep.subr.bf16.mxu0 0
      %409 = vmatpush1.bf16.msra.mxu0 0
      %410 = vmatprep.subr.bf16.mxu0 0
      %411 = vmatpush1.bf16.msra.mxu0 0
      %412 = vmatprep.subr.bf16.mxu0 0
      %413 = vmatpush1.bf16.msra.mxu0 0
      %414 = vmatprep.subr.bf16.mxu0 0
      %415 = vmatpush1.bf16.msra.mxu0 0
      %416 = vmatprep.subr.bf16.mxu0 0
      %417 = vmatpush1.bf16.msra.mxu0 0
      %418 = vmatprep.subr.bf16.mxu0 0
      %419 = vmatpush1.bf16.msra.mxu0 0
      %420 = vmatprep.subr.bf16.mxu0 0
      %421 = vmatpush1.bf16.msra.mxu0 0
      %422 = vmatprep.subr.bf16.mxu0 0
      %423 = vmatpush1.bf16.msra.mxu0 0
      %424 = vmatprep.mubr.bf16.mxu0 0
      %425 = vmatmul.mubr.bf16.gmra.mrb[0].mxu0 %v324
      %v426 = vpop.f32.mrb[0].mxu0
      %v427 = vadd.f32 0.0, %v426
      %v428 = vpop.f32.mrb[0].mxu0
      %v429 = vpop.f32.mrb[0].mxu0
      %v430 = vadd.f32 0.0, %v429
      %v431 = vpop.f32.mrb[0].mxu0
      %432 = vmatprep.mubr.bf16.mxu0 0
      %433 = vmatmul.mubr.bf16.gmra.mrb[0].mxu0 %v325
      %v434 = vpop.f32.mrb[0].mxu0
      %v435 = vadd.f32 0.0, %v434
      %v436 = vpop.f32.mrb[0].mxu0
      %v437 = vpop.f32.mrb[0].mxu0
      %v438 = vadd.f32 0.0, %v437
      %v439 = vpop.f32.mrb[0].mxu0
      %440 = vmatprep.mubr.bf16.mxu0 0
      %441 = vmatmul.mubr.bf16.gmra.mrb[0].mxu0 %v326
      %v442 = vpop.f32.mrb[0].mxu0
      %v443 = vadd.f32 0.0, %v442
      %v444 = vpop.f32.mrb[0].mxu0
      %v445 = vpop.f32.mrb[0].mxu0
      %v446 = vadd.f32 0.0, %v445
      %v447 = vpop.f32.mrb[0].mxu0
      %448 = vmatprep.mubr.bf16.mxu0 0
      %449 = vmatmul.mubr.bf16.gmra.mrb[0].mxu0 %v327
      %v450 = vpop.f32.mrb[0].mxu0
      %v451 = vadd.f32 0.0, %v450
      %v452 = vpop.f32.mrb[0].mxu0
      %v453 = vpop.f32.mrb[0].mxu0
      %v454 = vadd.f32 0.0, %v453
      %v455 = vpop.f32.mrb[0].mxu0
      %456 = vdwg.mxu0
      %v457 = vpack.c.bf16 %v430, %v427
      %v458 = vpack.c.bf16 %v438, %v435
      %v459 = vpack.c.bf16 %v446, %v443
      %v460 = vpack.c.bf16 %v454, %v451
      %v465 = vunpack.c.l.b16 %v457
      %v466 = vunpack.c.h.b16 %v457
      %v467 = vunpack.c.l.b16 %v458
      %v468 = vunpack.c.h.b16 %v458
      %v469 = vunpack.c.l.b16 %v459
      %v470 = vunpack.c.h.b16 %v459
      %v471 = vunpack.c.l.b16 %v460
      %v472 = vunpack.c.h.b16 %v460
      %v473 = vpack.c.b16 %v465, %v465
      %v474 = vpack.c.b16 %v466, %v466
      %v475 = vpack.c.b16 %v467, %v467
      %v476 = vpack.c.b16 %v468, %v468
      %v477 = vpack.c.b16 %v469, %v469
      %v478 = vpack.c.b16 %v470, %v470
      %v479 = vpack.c.b16 %v471, %v471
      %v480 = vpack.c.b16 %v472, %v472
      %489 = vst [vmem:[%s262] sm:$0xf] %v473
      %490 = vst [vmem:[%s262 + $0x4] sm:$0xf] %v474
      %491 = vst [vmem:[%s262 + $0x8] sm:$0xf] %v475
      %492 = vst [vmem:[%s262 + $0xc] sm:$0xf] %v476
      %493 = vst [vmem:[%s262 + $0x10] sm:$0xf] %v477
      %494 = vst [vmem:[%s262 + $0x14] sm:$0xf] %v478
      %495 = vst [vmem:[%s262 + $0x18] sm:$0xf] %v479
      %496 = vst [vmem:[%s262 + $0x1c] sm:$0xf] %v480
      %v497 = vadd.f32 %v427, %v430
      %v498 = vadd.f32 %v497, %v435
      %v499 = vadd.f32 %v498, %v438
      %v500 = vadd.f32 %v499, %v443
      %v501 = vadd.f32 %v500, %v446
      %v502 = vadd.f32 %v501, %v451
      %v503 = vadd.f32 %v502, %v454
      %v504 = vrot.slane %v503, 4
      %v505 = vadd.f32 %v503, %v504
      %v506 = vrot.slane %v505, 2
      %v507 = vadd.f32 %v505, %v506
      %v508 = vrot.slane %v507, 1
      %v509 = vadd.f32 %v507, %v508
      %510 = vst [vmem:[%s265] sm:$0x1] %v509
      %v511 = vmul.f32 %v427, %v427
      %v512 = vmul.f32 %v430, %v430
      %v513 = vmul.f32 %v435, %v435
      %v514 = vmul.f32 %v438, %v438
      %v515 = vmul.f32 %v443, %v443
      %v516 = vmul.f32 %v446, %v446
      %v517 = vmul.f32 %v451, %v451
      %v518 = vmul.f32 %v454, %v454
      %v519 = vadd.f32 %v511, %v512
      %v520 = vadd.f32 %v519, %v513
      %v521 = vadd.f32 %v520, %v514
      %v522 = vadd.f32 %v521, %v515
      %v523 = vadd.f32 %v522, %v516
      %v524 = vadd.f32 %v523, %v517
      %v525 = vadd.f32 %v524, %v518
      %v526 = vrot.slane %v525, 4
      %v527 = vadd.f32 %v525, %v526
      %v528 = vrot.slane %v527, 2
      %v529 = vadd.f32 %v527, %v528
      %v530 = vrot.slane %v529, 1
      %v531 = vadd.f32 %v529, %v530
      %532 = vst [vmem:[%s268] sm:$0x1] %v531
      %p533 = scmp.lt.s32.totalorder %s18, 1
      %s534 = scalar_select %p533, %s18, 1
      %s535 = smul.addr %s534, 8
      %s536 = smul.addr %s535, 4
      %s537 = scalar_lea.vmem %s4, %s536
      %p538 = scmp.lt.s32.totalorder %s18, 1
      %s539 = scalar_select %p538, %s18, 1
      %s540 = scalar_lea.vmem %s5, %s539
      %p541 = scmp.lt.s32.totalorder %s18, 1
      %s542 = scalar_select %p541, %s18, 1
      %s543 = scalar_lea.vmem %s6, %s542
      // Predicated region
      $region37: #{bottleneck_forward.6} parent=35 // pred_check
        %p544 = pneg %p125
      $region38: #{bottleneck_forward.6} parent=35 // pred_check_branch
        %546 = sbr.rel (%p544) target = $region40
      $region39: #{bottleneck_forward.6} parent=35 // pred_region
        _
      $region40: #{bottleneck_forward.6} parent=35 // pred_fallthru
        _
      // Predicated region
      $region41: #{bottleneck_forward.6} parent=35 // pred_check
        %p547 = pneg %p151
      $region42: #{bottleneck_forward.6} parent=35 // pred_check_branch
        %549 = sbr.rel (%p547) target = $region44
      $region43: #{bottleneck_forward.6} parent=35 // pred_region
        _
      $region44: #{bottleneck_forward.6} parent=35 // pred_fallthru
        _
      // Predicated region
      $region45: #{bottleneck_forward.6} parent=35 // pred_check
        %p550 = pneg %p177
      $region46: #{bottleneck_forward.6} parent=35 // pred_check_branch
        %552 = sbr.rel (%p550) target = $region48
      $region47: #{bottleneck_forward.6} parent=35 // pred_region
        _
      $region48: #{bottleneck_forward.6} parent=35 // pred_fallthru
        _
    $region36: #{bottleneck_forward.6} parent=5 // pred_fallthru
      _
    %p553 = scmp.le.s32.totalorder 2, %s13
    // Predicated region
    $region49: #{bottleneck_forward.6} parent=5 // pred_check
      %p554 = pneg %p553
    $region50: #{bottleneck_forward.6} parent=5 // pred_check_branch
      %556 = sbr.rel (%p554) target = $region52
    $region51: #{bottleneck_forward.6} parent=5 // pred_region
      %s557 = ssub.s32 %s13, 2
      // Predicated region
      $region53: #{bottleneck_forward.6} parent=51 // pred_check
        %p558 = pneg %p131
      $region54: #{bottleneck_forward.6} parent=51 // pred_check_branch
        %560 = sbr.rel (%p558) target = $region56
      $region55: #{bottleneck_forward.6} parent=51 // pred_region
        %p561 = scmp.lt.s32.totalorder %s19, 1
        %s562 = scalar_select %p561, %s19, 1
        %s563 = smul.addr %s562, 8
        %s564 = smul.addr %s563, 4
        %s565 = scalar_lea.vmem %s4, %s564
      $region56: #{bottleneck_forward.6} parent=51 // pred_fallthru
        _
      // Predicated region
      $region57: #{bottleneck_forward.6} parent=51 // pred_check
        %p566 = pneg %p157
      $region58: #{bottleneck_forward.6} parent=51 // pred_check_branch
        %568 = sbr.rel (%p566) target = $region60
      $region59: #{bottleneck_forward.6} parent=51 // pred_region
        %p569 = scmp.lt.s32.totalorder %s19, 1
        %s570 = scalar_select %p569, %s19, 1
        %s571 = scalar_lea.vmem %s5, %s570
      $region60: #{bottleneck_forward.6} parent=51 // pred_fallthru
        _
      // Predicated region
      $region61: #{bottleneck_forward.6} parent=51 // pred_check
        %p572 = pneg %p183
      $region62: #{bottleneck_forward.6} parent=51 // pred_check_branch
        %574 = sbr.rel (%p572) target = $region64
      $region63: #{bottleneck_forward.6} parent=51 // pred_region
        %p575 = scmp.lt.s32.totalorder %s19, 1
        %s576 = scalar_select %p575, %s19, 1
        %s577 = scalar_lea.vmem %s6, %s576
      $region64: #{bottleneck_forward.6} parent=51 // pred_fallthru
        _
    $region52: #{bottleneck_forward.6} parent=5 // pred_fallthru
      _
  $region6: #{bottleneck_forward.6} parent=0 // loop_footer
    %s17 = sadd.s32 1, %s13
  $region7: #{bottleneck_forward.6} parent=0 // loop_footer_branch
    %12 = sbr.rel target = $region3
  $region8: #{bottleneck_forward.6} parent=0 // loop_exit
    _

// kernel: bottleneck_forward.5
$region0: #{bottleneck_forward.5}
  #allocation0 [shape = 'u32[]', space=smem, size = 0x4, offset = 0x4, fixed_abs, tag = 'smem constant byte address 0x4 - core index']
  #allocation1 [shape = 'u32[144,128]{1,0:T(1,128)}', space=vmem, size = 0x12000, scoped, tag = 'internal scratch']
  #allocation2 [shape = 'bf16[96,128]{1,0:T(16,128)(2,1)}', space=vmem, size = 0x6000, scoped, tag = 'scratch operand']
  %s0 = inlined_call_operand.vmem [shape: bf16[2,64,128], index: 0, kind: input, shape index: {}]
  %s1 = inlined_call_operand.vmem [shape: f32[64,1], index: 1, kind: input, shape index: {}]
  %s2 = inlined_call_operand.vmem [shape: f32[64,1], index: 2, kind: input, shape index: {}]
  %s3 = inlined_call_operand.vmem [shape: f32[1,128], index: 3, kind: input, shape index: {}]
  %s4 = inlined_call_operand.vmem [shape: f32[1,128], index: 4, kind: input, shape index: {}]
  %s5 = inlined_call_operand.vmem [shape: bf16[1152,128], index: 5, kind: input, shape index: {}]
  %s6 = inlined_call_operand.vmem [shape: bf16[2,64,128], index: 6, kind: output, shape index: {0}]
  %s7 = inlined_call_operand.vmem [shape: f32[2,1,128], index: 7, kind: output, shape index: {1}]
  %s8 = inlined_call_operand.vmem [shape: f32[2,1,128], index: 8, kind: output, shape index: {2}]
  %9 = xla_tuple %s6, %s7, %s8
  %s10 = sld [smem:[#allocation0]]
  $region73: #{bottleneck_forward.5} parent=0
    _
  %s12 = ssub.s32 1, %s10
  %s13 = scalar_select 0, %s12, %s10
  loop: start=0, step=1, limit=4
  $region2: #{bottleneck_forward.5} parent=0 // loop_pre_header
    _
  $region3: #{bottleneck_forward.5} parent=0 // loop_header
    %s15 = sphi 0, %s19
    %p16 = scmp.ge.s32.totalorder %s15, 4
    %s25 = sphi 0, %s27
    %s28 = sphi 0, %s25
    %s29 = sphi 0, %s28
    %s45 = sphi 0, %s29
    %s49 = sphi 0, %s49
    %s51 = sphi 0, %s49
    %s52 = sphi 0, %s51
    %s66 = sphi 0, %s52
    %s70 = sphi 0, %s70
    %s72 = sphi 0, %s70
    %s73 = sphi 0, %s72
    %s87 = sphi 0, %s73
    %s91 = sphi 0, %s91
    %s93 = sphi 0, %s91
    %s94 = sphi 0, %s93
    %s108 = sphi 0, %s94
    %s112 = sphi 0, %s112
    %s114 = sphi 0, %s112
    %s115 = sphi 0, %s114
    %s129 = sphi 0, %s115
    %s133 = sphi 0, %s133
    %s135 = sphi 0, %s133
    %s136 = sphi 0, %s135
    %s150 = sphi 0, %s136
    %s156 = sphi 0, %s158
    %s159 = sphi 0, %s156
    %s160 = sphi 0, %s159
    %s176 = sphi 0, %s160
    %s182 = sphi 0, %s184
    %s185 = sphi 0, %s182
    %s186 = sphi 0, %s185
    %s202 = sphi 0, %s186
    %s208 = sphi 0, %s210
    %s211 = sphi 0, %s208
    %s212 = sphi 0, %s211
    %s228 = sphi 0, %s212
  $region4: #{bottleneck_forward.5} parent=0 // loop_header_branch
    %18 = sbr.rel (%p16) target = $region8
  $region5: #{bottleneck_forward.5} parent=0 // loop_body
    %s20 = ssub.s32 %s15, 1
    %s21 = ssub.s32 %s15, 2
    %s22 = sadd.s32 %s15, 1
    %s23 = ssub.s32 %s15, %s22
    %p24 = scmp.eq.s32.totalorder %s23, 0
    %s26 = sadd.s32 %s25, 1
    %s27 = scalar_select %p24, %s25, %s26
    %p30 = pneg %p24
    %p31 = scmp.eq.s32.totalorder %s15, 1
    %p32 = por %p30, %p31
    %p33 = scmp.ne.s32.totalorder %s25, %s28
    %p34 = scmp.eq.s32.totalorder %s15, 0
    %p35 = por %p33, %p34
    %p36 = scmp.ne.s32.totalorder %s25, %s28
    %p37 = scmp.eq.s32.totalorder %s20, 1
    %p38 = por %p36, %p37
    %p39 = scmp.ne.s32.totalorder %s28, %s29
    %p40 = scmp.eq.s32.totalorder %s20, 0
    %p41 = por %p39, %p40
    %p42 = scmp.ne.s32.totalorder %s28, %s29
    %p43 = scmp.eq.s32.totalorder %s21, 1
    %p44 = por %p42, %p43
    %p46 = scmp.ne.s32.totalorder %s29, %s45
    %p47 = scmp.eq.s32.totalorder %s21, 0
    %p48 = por %p46, %p47
    %s50 = sadd.s32 %s49, 1
    %p53 = scmp.eq.s32.totalorder %s15, 1
    %p54 = scmp.ne.s32.totalorder %s49, %s51
    %p55 = scmp.eq.s32.totalorder %s15, 0
    %p56 = por %p54, %p55
    %p57 = scmp.ne.s32.totalorder %s49, %s51
    %p58 = scmp.eq.s32.totalorder %s20, 1
    %p59 = por %p57, %p58
    %p60 = scmp.ne.s32.totalorder %s51, %s52
    %p61 = scmp.eq.s32.totalorder %s20, 0
    %p62 = por %p60, %p61
    %p63 = scmp.ne.s32.totalorder %s51, %s52
    %p64 = scmp.eq.s32.totalorder %s21, 1
    %p65 = por %p63, %p64
    %p67 = scmp.ne.s32.totalorder %s52, %s66
    %p68 = scmp.eq.s32.totalorder %s21, 0
    %p69 = por %p67, %p68
    %s71 = sadd.s32 %s70, 1
    %p74 = scmp.eq.s32.totalorder %s15, 1
    %p75 = scmp.ne.s32.totalorder %s70, %s72
    %p76 = scmp.eq.s32.totalorder %s15, 0
    %p77 = por %p75, %p76
    %p78 = scmp.ne.s32.totalorder %s70, %s72
    %p79 = scmp.eq.s32.totalorder %s20, 1
    %p80 = por %p78, %p79
    %p81 = scmp.ne.s32.totalorder %s72, %s73
    %p82 = scmp.eq.s32.totalorder %s20, 0
    %p83 = por %p81, %p82
    %p84 = scmp.ne.s32.totalorder %s72, %s73
    %p85 = scmp.eq.s32.totalorder %s21, 1
    %p86 = por %p84, %p85
    %p88 = scmp.ne.s32.totalorder %s73, %s87
    %p89 = scmp.eq.s32.totalorder %s21, 0
    %p90 = por %p88, %p89
    %s92 = sadd.s32 %s91, 1
    %p95 = scmp.eq.s32.totalorder %s15, 1
    %p96 = scmp.ne.s32.totalorder %s91, %s93
    %p97 = scmp.eq.s32.totalorder %s15, 0
    %p98 = por %p96, %p97
    %p99 = scmp.ne.s32.totalorder %s91, %s93
    %p100 = scmp.eq.s32.totalorder %s20, 1
    %p101 = por %p99, %p100
    %p102 = scmp.ne.s32.totalorder %s93, %s94
    %p103 = scmp.eq.s32.totalorder %s20, 0
    %p104 = por %p102, %p103
    %p105 = scmp.ne.s32.totalorder %s93, %s94
    %p106 = scmp.eq.s32.totalorder %s21, 1
    %p107 = por %p105, %p106
    %p109 = scmp.ne.s32.totalorder %s94, %s108
    %p110 = scmp.eq.s32.totalorder %s21, 0
    %p111 = por %p109, %p110
    %s113 = sadd.s32 %s112, 1
    %p116 = scmp.eq.s32.totalorder %s15, 1
    %p117 = scmp.ne.s32.totalorder %s112, %s114
    %p118 = scmp.eq.s32.totalorder %s15, 0
    %p119 = por %p117, %p118
    %p120 = scmp.ne.s32.totalorder %s112, %s114
    %p121 = scmp.eq.s32.totalorder %s20, 1
    %p122 = por %p120, %p121
    %p123 = scmp.ne.s32.totalorder %s114, %s115
    %p124 = scmp.eq.s32.totalorder %s20, 0
    %p125 = por %p123, %p124
    %p126 = scmp.ne.s32.totalorder %s114, %s115
    %p127 = scmp.eq.s32.totalorder %s21, 1
    %p128 = por %p126, %p127
    %p130 = scmp.ne.s32.totalorder %s115, %s129
    %p131 = scmp.eq.s32.totalorder %s21, 0
    %p132 = por %p130, %p131
    %s134 = sadd.s32 %s133, 1
    %p137 = scmp.eq.s32.totalorder %s15, 1
    %p138 = scmp.ne.s32.totalorder %s133, %s135
    %p139 = scmp.eq.s32.totalorder %s15, 0
    %p140 = por %p138, %p139
    %p141 = scmp.ne.s32.totalorder %s133, %s135
    %p142 = scmp.eq.s32.totalorder %s20, 1
    %p143 = por %p141, %p142
    %p144 = scmp.ne.s32.totalorder %s135, %s136
    %p145 = scmp.eq.s32.totalorder %s20, 0
    %p146 = por %p144, %p145
    %p147 = scmp.ne.s32.totalorder %s135, %s136
    %p148 = scmp.eq.s32.totalorder %s21, 1
    %p149 = por %p147, %p148
    %p151 = scmp.ne.s32.totalorder %s136, %s150
    %p152 = scmp.eq.s32.totalorder %s21, 0
    %p153 = por %p151, %p152
    %s154 = ssub.s32 %s15, %s22
    %p155 = scmp.eq.s32.totalorder %s154, 0
    %s157 = sadd.s32 %s156, 1
    %s158 = scalar_select %p155, %s156, %s157
    %p161 = pneg %p155
    %p162 = scmp.eq.s32.totalorder %s15, 1
    %p163 = por %p161, %p162
    %p164 = scmp.ne.s32.totalorder %s156, %s159
    %p165 = scmp.eq.s32.totalorder %s15, 0
    %p166 = por %p164, %p165
    %p167 = scmp.ne.s32.totalorder %s156, %s159
    %p168 = scmp.eq.s32.totalorder %s20, 1
    %p169 = por %p167, %p168
    %p170 = scmp.ne.s32.totalorder %s159, %s160
    %p171 = scmp.eq.s32.totalorder %s20, 0
    %p172 = por %p170, %p171
    %p173 = scmp.ne.s32.totalorder %s159, %s160
    %p174 = scmp.eq.s32.totalorder %s21, 1
    %p175 = por %p173, %p174
    %p177 = scmp.ne.s32.totalorder %s160, %s176
    %p178 = scmp.eq.s32.totalorder %s21, 0
    %p179 = por %p177, %p178
    %s180 = ssub.s32 %s15, %s22
    %p181 = scmp.eq.s32.totalorder %s180, 0
    %s183 = sadd.s32 %s182, 1
    %s184 = scalar_select %p181, %s182, %s183
    %p187 = pneg %p181
    %p188 = scmp.eq.s32.totalorder %s15, 1
    %p189 = por %p187, %p188
    %p190 = scmp.ne.s32.totalorder %s182, %s185
    %p191 = scmp.eq.s32.totalorder %s15, 0
    %p192 = por %p190, %p191
    %p193 = scmp.ne.s32.totalorder %s182, %s185
    %p194 = scmp.eq.s32.totalorder %s20, 1
    %p195 = por %p193, %p194
    %p196 = scmp.ne.s32.totalorder %s185, %s186
    %p197 = scmp.eq.s32.totalorder %s20, 0
    %p198 = por %p196, %p197
    %p199 = scmp.ne.s32.totalorder %s185, %s186
    %p200 = scmp.eq.s32.totalorder %s21, 1
    %p201 = por %p199, %p200
    %p203 = scmp.ne.s32.totalorder %s186, %s202
    %p204 = scmp.eq.s32.totalorder %s21, 0
    %p205 = por %p203, %p204
    %s206 = ssub.s32 %s15, %s22
    %p207 = scmp.eq.s32.totalorder %s206, 0
    %s209 = sadd.s32 %s208, 1
    %s210 = scalar_select %p207, %s208, %s209
    %p213 = pneg %p207
    %p214 = scmp.eq.s32.totalorder %s15, 1
    %p215 = por %p213, %p214
    %p216 = scmp.ne.s32.totalorder %s208, %s211
    %p217 = scmp.eq.s32.totalorder %s15, 0
    %p218 = por %p216, %p217
    %p219 = scmp.ne.s32.totalorder %s208, %s211
    %p220 = scmp.eq.s32.totalorder %s20, 1
    %p221 = por %p219, %p220
    %p222 = scmp.ne.s32.totalorder %s211, %s212
    %p223 = scmp.eq.s32.totalorder %s20, 0
    %p224 = por %p222, %p223
    %p225 = scmp.ne.s32.totalorder %s211, %s212
    %p226 = scmp.eq.s32.totalorder %s21, 1
    %p227 = por %p225, %p226
    %p229 = scmp.ne.s32.totalorder %s212, %s228
    %p230 = scmp.eq.s32.totalorder %s21, 0
    %p231 = por %p229, %p230
    %p232 = scmp.le.s32.totalorder 1, %s15
    %p233 = scmp.lt.s32.totalorder %s15, 3
    %p234 = pnand %p232, %p233
    %p235 = pneg %p234
    // Predicated region
    $region9: #{bottleneck_forward.5} parent=5 // pred_check
      _
    $region10: #{bottleneck_forward.5} parent=5 // pred_check_branch
      %237 = sbr.rel (%p234) target = $region12
    $region11: #{bottleneck_forward.5} parent=5 // pred_region
      %s238 = ssub.s32 %s15, 1
      // Predicated region
      $region13: #{bottleneck_forward.5} parent=11 // pred_check
        %p239 = pneg %p62
      $region14: #{bottleneck_forward.5} parent=11 // pred_check_branch
        %241 = sbr.rel (%p239) target = $region16
      $region15: #{bottleneck_forward.5} parent=11 // pred_region
        _
      $region16: #{bottleneck_forward.5} parent=11 // pred_fallthru
        _
      // Predicated region
      $region17: #{bottleneck_forward.5} parent=11 // pred_check
        %p242 = pneg %p83
      $region18: #{bottleneck_forward.5} parent=11 // pred_check_branch
        %244 = sbr.rel (%p242) target = $region20
      $region19: #{bottleneck_forward.5} parent=11 // pred_region
        _
      $region20: #{bottleneck_forward.5} parent=11 // pred_fallthru
        _
      // Predicated region
      $region21: #{bottleneck_forward.5} parent=11 // pred_check
        %p245 = pneg %p104
      $region22: #{bottleneck_forward.5} parent=11 // pred_check_branch
        %247 = sbr.rel (%p245) target = $region24
      $region23: #{bottleneck_forward.5} parent=11 // pred_region
        _
      $region24: #{bottleneck_forward.5} parent=11 // pred_fallthru
        _
      // Predicated region
      $region25: #{bottleneck_forward.5} parent=11 // pred_check
        %p248 = pneg %p125
      $region26: #{bottleneck_forward.5} parent=11 // pred_check_branch
        %250 = sbr.rel (%p248) target = $region28
      $region27: #{bottleneck_forward.5} parent=11 // pred_region
        _
      $region28: #{bottleneck_forward.5} parent=11 // pred_fallthru
        _
      // Predicated region
      $region29: #{bottleneck_forward.5} parent=11 // pred_check
        %p251 = pneg %p146
      $region30: #{bottleneck_forward.5} parent=11 // pred_check_branch
        %253 = sbr.rel (%p251) target = $region32
      $region31: #{bottleneck_forward.5} parent=11 // pred_region
        _
      $region32: #{bottleneck_forward.5} parent=11 // pred_fallthru
        _
    $region12: #{bottleneck_forward.5} parent=5 // pred_fallthru
      _
    %p254 = scmp.lt.s32.totalorder %s15, 2
    // Predicated region
    $region33: #{bottleneck_forward.5} parent=5 // pred_check
      %p255 = pneg %p254
    $region34: #{bottleneck_forward.5} parent=5 // pred_check_branch
      %257 = sbr.rel (%p255) target = $region36
    $region35: #{bottleneck_forward.5} parent=5 // pred_region
      // Predicated region
      $region37: #{bottleneck_forward.5} parent=35 // pred_check
        %p258 = pneg %p35
      $region38: #{bottleneck_forward.5} parent=35 // pred_check_branch
        %260 = sbr.rel (%p258) target = $region40
      $region39: #{bottleneck_forward.5} parent=35 // pred_region
        %p261 = scmp.lt.s32.totalorder %s15, 1
        %s262 = scalar_select %p261, %s15, 1
        %s263 = smul.addr %s262, 8
        %s264 = smul.addr %s263, 4
        %s265 = scalar_lea.vmem %s0, %s264
      $region40: #{bottleneck_forward.5} parent=35 // pred_fallthru
        _
    $region36: #{bottleneck_forward.5} parent=5 // pred_fallthru
      _
    %p266 = scmp.le.s32.totalorder 1, %s15
    %p267 = scmp.lt.s32.totalorder %s15, 3
    %p268 = pnand %p266, %p267
    %p269 = pneg %p268
    // Predicated region
    $region41: #{bottleneck_forward.5} parent=5 // pred_check
      _
    $region42: #{bottleneck_forward.5} parent=5 // pred_check_branch
      %271 = sbr.rel (%p268) target = $region44
    $region43: #{bottleneck_forward.5} parent=5 // pred_region
      %s272 = ssub.s32 %s15, 1
      %p273 = scmp.lt.s32.totalorder %s20, 1
      %s274 = scalar_select %p273, %s20, 1
      %s275 = smul.addr %s274, 8
      %s276 = smul.addr %s275, 4
      %s277 = scalar_lea.vmem %s0, %s276
      %p278 = pneg %p41
      %p279 = pneg %p38
      %p280 = pneg %p62
      %p281 = pneg %p59
      %p282 = pneg %p83
      %p283 = pneg %p80
      %p284 = pneg %p104
      %p285 = pneg %p101
      %p286 = pneg %p125
      %p287 = pneg %p122
      %p288 = pneg %p146
      %p289 = pneg %p143
      %p290 = pneg %p172
      %p291 = pneg %p169
      %p292 = scmp.lt.s32.totalorder %s20, 1
      %s293 = scalar_select %p292, %s20, 1
      %s294 = smul.addr %s293, 8
      %s295 = smul.addr %s294, 4
      %s296 = scalar_lea.vmem %s6, %s295
      %p297 = pneg %p198
      %p298 = pneg %p195
      %p299 = scmp.lt.s32.totalorder %s20, 1
      %s300 = scalar_select %p299, %s20, 1
      %s301 = scalar_lea.vmem %s7, %s300
      %p302 = pneg %p224
      %p303 = pneg %p221
      %p304 = scmp.lt.s32.totalorder %s20, 1
      %s305 = scalar_select %p304, %s20, 1
      %s306 = scalar_lea.vmem %s8, %s305
      %p307 = scmp.lt.s32.totalorder %s20, 1
      %s308 = scalar_select %p307, %s20, 1
      %s309 = smul.addr %s308, 8
      %s310 = smul.addr %s309, 4
      %s311 = scalar_lea.vmem %s0, %s310
      %p312 = scmp.lt.s32.totalorder %s20, 1
      %s313 = scalar_select %p312, %s20, 1
      %s314 = smul.addr %s313, 8
      %s315 = smul.addr %s314, 4
      %s316 = scalar_lea.vmem %s6, %s315
      %p317 = scmp.lt.s32.totalorder %s20, 1
      %s318 = scalar_select %p317, %s20, 1
      %s319 = scalar_lea.vmem %s7, %s318
      %p320 = scmp.lt.s32.totalorder %s20, 1
      %s321 = scalar_select %p320, %s20, 1
      %s322 = scalar_lea.vmem %s8, %s321
      %v324 = vld [vmem:[%s311] sm:$0xf]
      %v325 = vld [vmem:[%s311 + $0x4] sm:$0xf]
      %v326 = vld [vmem:[%s311 + $0x8] sm:$0xf]
      %v327 = vld [vmem:[%s311 + $0xc] sm:$0xf]
      %v328 = vld [vmem:[%s311 + $0x10] sm:$0xf]
      %v329 = vld [vmem:[%s311 + $0x14] sm:$0xf]
      %v330 = vld [vmem:[%s311 + $0x18] sm:$0xf]
      %v331 = vld [vmem:[%s311 + $0x1c] sm:$0xf]
      %v332 = vunpack.c.l.bf16 %v324
      %v333 = vunpack.c.l.bf16 %v325
      %v334 = vunpack.c.l.bf16 %v326
      %v335 = vunpack.c.l.bf16 %v327
      %v336 = vunpack.c.l.bf16 %v328
      %v337 = vunpack.c.l.bf16 %v329
      %v338 = vunpack.c.l.bf16 %v330
      %v339 = vunpack.c.l.bf16 %v331
      %v340 = vld [vmem:[%s3] sm:$0x1]
      %v342 = vlaneseq
      %v343 = vshrl.u32 %v342, 7
      %v344 = vsub.s32 0, %v343
      %v345 = vrot.slane %v340, %v344
      %v347 = vmul.f32 %v332, %v345
      %v348 = vmul.f32 %v333, %v345
      %v349 = vmul.f32 %v334, %v345
      %v350 = vmul.f32 %v335, %v345
      %v351 = vmul.f32 %v336, %v345
      %v352 = vmul.f32 %v337, %v345
      %v353 = vmul.f32 %v338, %v345
      %v354 = vmul.f32 %v339, %v345
      %v355 = vld [vmem:[%s4] sm:$0x1]
      %v357 = vlaneseq
      %v358 = vshrl.u32 %v357, 7
      %v359 = vsub.s32 0, %v358
      %v360 = vrot.slane %v355, %v359
      %v362 = vadd.f32 %v347, %v360
      %v363 = vadd.f32 %v348, %v360
      %v364 = vadd.f32 %v349, %v360
      %v365 = vadd.f32 %v350, %v360
      %v366 = vadd.f32 %v351, %v360
      %v367 = vadd.f32 %v352, %v360
      %v368 = vadd.f32 %v353, %v360
      %v369 = vadd.f32 %v354, %v360
      %v370 = vmax.f32 %v362, 0.0
      %v371 = vmax.f32 %v363, 0.0
      %v372 = vmax.f32 %v364, 0.0
      %v373 = vmax.f32 %v365, 0.0
      %v374 = vmax.f32 %v366, 0.0
      %v375 = vmax.f32 %v367, 0.0
      %v376 = vmax.f32 %v368, 0.0
      %v377 = vmax.f32 %v369, 0.0
      %v378 = vpack.c.bf16 %v371, %v370
      %v379 = vpack.c.bf16 %v373, %v372
      %v380 = vpack.c.bf16 %v375, %v374
      %v381 = vpack.c.bf16 %v377, %v376
      %382 = vst [vmem:[#allocation2] sm:$0xff] 0
      %383 = vst [vmem:[#allocation2 + $0x28] sm:$0xff] 0
      %384 = vst [vmem:[#allocation2 + $0x8] sm:$0xff] %v378
      %385 = vst [vmem:[#allocation2 + $0x10] sm:$0xff] %v379
      %386 = vst [vmem:[#allocation2 + $0x18] sm:$0xff] %v380
      %387 = vst [vmem:[#allocation2 + $0x20] sm:$0xff] %v381
      %v388 = vld [vmem:[%s1] sm:$0xff]
      %v389 = vld [vmem:[%s1 + $0x8] sm:$0xff]
      %v390 = vld [vmem:[%s1 + $0x10] sm:$0xff]
      %v391 = vld [vmem:[%s1 + $0x18] sm:$0xff]
      %v392 = vld [vmem:[%s1 + $0x20] sm:$0xff]
      %v393 = vld [vmem:[%s1 + $0x28] sm:$0xff]
      %v394 = vld [vmem:[%s1 + $0x30] sm:$0xff]
      %v395 = vld [vmem:[%s1 + $0x38] sm:$0xff]
      %v396 = vld [vmem:[%s2] sm:$0xff]
      %v397 = vld [vmem:[%s2 + $0x8] sm:$0xff]
      %v398 = vld [vmem:[%s2 + $0x10] sm:$0xff]
      %v399 = vld [vmem:[%s2 + $0x18] sm:$0xff]
      %v400 = vld [vmem:[%s2 + $0x20] sm:$0xff]
      %v401 = vld [vmem:[%s2 + $0x28] sm:$0xff]
      %v402 = vld [vmem:[%s2 + $0x30] sm:$0xff]
      %v403 = vld [vmem:[%s2 + $0x38] sm:$0xff]
      %v404 = vld [vmem:[#allocation2] sm:$0xf8]
      %v405 = vld [vmem:[#allocation2 + $0x8] sm:$0xff]
      %v406 = vld [vmem:[#allocation2 + $0x10] sm:$0xff]
      %v407 = vld [vmem:[#allocation2 + $0x18] sm:$0xff]
      %v408 = vld [vmem:[#allocation2 + $0x20] sm:$0xf]
      %v409 = vld [vmem:[%s5] sm:$0xf]
      %v410 = vld [vmem:[%s5 + $0x4] sm:$0xf]
      %v411 = vld [vmem:[%s5 + $0x8] sm:$0xf]
      %v412 = vld [vmem:[%s5 + $0xc] sm:$0xf]
      %v413 = vld [vmem:[%s5 + $0x10] sm:$0xf]
      %v414 = vld [vmem:[%s5 + $0x14] sm:$0xf]
      %v415 = vld [vmem:[%s5 + $0x18] sm:$0xf]
      %v416 = vld [vmem:[%s5 + $0x1c] sm:$0xf]
      %v417 = vld [vmem:[%s5 + $0x20] sm:$0xf]
      %v418 = vld [vmem:[%s5 + $0x24] sm:$0xf]
      %v419 = vld [vmem:[%s5 + $0x28] sm:$0xf]
      %v420 = vld [vmem:[%s5 + $0x2c] sm:$0xf]
      %v421 = vld [vmem:[%s5 + $0x30] sm:$0xf]
      %v422 = vld [vmem:[%s5 + $0x34] sm:$0xf]
      %v423 = vld [vmem:[%s5 + $0x38] sm:$0xf]
      %v424 = vld [vmem:[%s5 + $0x3c] sm:$0xf]
      %vm425 = vsmask.f32 4352
      %v427 = vshrl.u32 %v404, 16
      %v429 = vrot.slane %v427, 3
      %v430 = vshll.u32 %v404, 16
      %v432 = vrot.slane %v430, 4
      %v433 = vor.u32 %v429, %v432
      %v435 = vshrl.u32 %v405, 16
      %v437 = vrot.slane %v435, 3
      %v438 = vshll.u32 %v405, 16
      %v440 = vrot.slane %v438, 4
      %v441 = vor.u32 %v437, %v440
      %v442 = vsel %vm425, %v433, %v441
      %v444 = vshrl.u32 %v406, 16
      %v446 = vrot.slane %v444, 3
      %v447 = vshll.u32 %v406, 16
      %v449 = vrot.slane %v447, 4
      %v450 = vor.u32 %v446, %v449
      %v451 = vsel %vm425, %v441, %v450
      %v453 = vshrl.u32 %v407, 16
      %v455 = vrot.slane %v453, 3
      %v456 = vshll.u32 %v407, 16
      %v458 = vrot.slane %v456, 4
      %v459 = vor.u32 %v455, %v458
      %v460 = vsel %vm425, %v450, %v459
      %v462 = vshrl.u32 %v408, 16
      %v464 = vrot.slane %v462, 3
      %v465 = vshll.u32 %v408, 16
      %v467 = vrot.slane %v465, 4
      %v468 = vor.u32 %v464, %v467
      %v469 = vsel %vm425, %v459, %v468
      %v490 = vunpack.c.l.b16 %v409
      %v491 = vunpack.c.l.b16 %v410
      %v492 = vunpack.c.l.b16 %v411
      %v493 = vunpack.c.l.b16 %v412
      %v494 = vunpack.c.l.b16 %v413
      %v495 = vunpack.c.l.b16 %v414
      %v496 = vunpack.c.l.b16 %v415
      %v497 = vunpack.c.l.b16 %v416
      %v498 = vunpack.c.l.b16 %v417
      %v499 = vunpack.c.l.b16 %v418
      %v500 = vunpack.c.l.b16 %v419
      %v501 = vunpack.c.l.b16 %v420
      %v502 = vunpack.c.l.b16 %v421
      %v503 = vunpack.c.l.b16 %v422
      %v504 = vunpack.c.l.b16 %v423
      %v505 = vunpack.c.l.b16 %v424
      %v506 = vpack.c.b16 %v491, %v490
      %v507 = vpack.c.b16 %v493, %v492
      %v508 = vpack.c.b16 %v495, %v494
      %v509 = vpack.c.b16 %v497, %v496
      %v510 = vpack.c.b16 %v499, %v498
      %v511 = vpack.c.b16 %v501, %v500
      %v512 = vpack.c.b16 %v503, %v502
      %v513 = vpack.c.b16 %v505, %v504
      %522 = vmatprep.subr.bf16.mxu0 0
      %523 = vmatpush1.bf16.msra.mxu0 %v506
      %524 = vmatprep.subr.bf16.mxu0 0
      %525 = vmatpush1.bf16.msra.mxu0 %v507
      %526 = vmatprep.subr.bf16.mxu0 0
      %527 = vmatpush1.bf16.msra.mxu0 %v508
      %528 = vmatprep.subr.bf16.mxu0 0
      %529 = vmatpush1.bf16.msra.mxu0 %v509
      %530 = vmatprep.subr.bf16.mxu0 0
      %531 = vmatpush1.bf16.msra.mxu0 %v510
      %532 = vmatprep.subr.bf16.mxu0 0
      %533 = vmatpush1.bf16.msra.mxu0 %v511
      %534 = vmatprep.subr.bf16.mxu0 0
      %535 = vmatpush1.bf16.msra.mxu0 %v512
      %536 = vmatprep.subr.bf16.mxu0 0
      %537 = vmatpush1.bf16.msra.mxu0 %v513
      %538 = vmatprep.subr.bf16.mxu0 0
      %539 = vmatpush1.bf16.msra.mxu0 0
      %540 = vmatprep.subr.bf16.mxu0 0
      %541 = vmatpush1.bf16.msra.mxu0 0
      %542 = vmatprep.subr.bf16.mxu0 0
      %543 = vmatpush1.bf16.msra.mxu0 0
      %544 = vmatprep.subr.bf16.mxu0 0
      %545 = vmatpush1.bf16.msra.mxu0 0
      %546 = vmatprep.subr.bf16.mxu0 0
      %547 = vmatpush1.bf16.msra.mxu0 0
      %548 = vmatprep.subr.bf16.mxu0 0
      %549 = vmatpush1.bf16.msra.mxu0 0
      %550 = vmatprep.subr.bf16.mxu0 0
      %551 = vmatpush1.bf16.msra.mxu0 0
      %552 = vmatprep.subr.bf16.mxu0 0
      %553 = vmatpush1.bf16.msra.mxu0 0
      %554 = vmatprep.mubr.bf16.mxu0 0
      %555 = vmatmul.mubr.bf16.gmra.mrb[0].mxu0 %v442
      %v556 = vpop.f32.mrb[0].mxu0
      %v557 = vadd.f32 0.0, %v556
      %v558 = vpop.f32.mrb[0].mxu0
      %v559 = vpop.f32.mrb[0].mxu0
      %v560 = vadd.f32 0.0, %v559
      %v561 = vpop.f32.mrb[0].mxu0
      %562 = vmatprep.mubr.bf16.mxu0 0
      %563 = vmatmul.mubr.bf16.gmra.mrb[0].mxu0 %v451
      %v564 = vpop.f32.mrb[0].mxu0
      %v565 = vadd.f32 0.0, %v564
      %v566 = vpop.f32.mrb[0].mxu0
      %v567 = vpop.f32.mrb[0].mxu0
      %v568 = vadd.f32 0.0, %v567
      %v569 = vpop.f32.mrb[0].mxu0
      %570 = vmatprep.mubr.bf16.mxu0 0
      %571 = vmatmul.mubr.bf16.gmra.mrb[0].mxu0 %v460
      %v572 = vpop.f32.mrb[0].mxu0
      %v573 = vadd.f32 0.0, %v572
      %v574 = vpop.f32.mrb[0].mxu0
      %v575 = vpop.f32.mrb[0].mxu0
      %v576 = vadd.f32 0.0, %v575
      %v577 = vpop.f32.mrb[0].mxu0
      %578 = vmatprep.mubr.bf16.mxu0 0
      %579 = vmatmul.mubr.bf16.gmra.mrb[0].mxu0 %v469
      %v580 = vpop.f32.mrb[0].mxu0
      %v581 = vadd.f32 0.0, %v580
      %v582 = vpop.f32.mrb[0].mxu0
      %v583 = vpop.f32.mrb[0].mxu0
      %v584 = vadd.f32 0.0, %v583
      %v585 = vpop.f32.mrb[0].mxu0
      %586 = vdwg.mxu0
      %588 = vset.pattern.permute.xlu0 0
      %589 = vperm.xlu0 %588, %v388
      %v590 = vpop.permute.xlu0 %589
      %593 = vset.pattern.permute.xlu0 0
      %594 = vperm.xlu0 %593, %v389
      %v595 = vpop.permute.xlu0 %594
      %598 = vset.pattern.permute.xlu0 0
      %599 = vperm.xlu0 %598, %v390
      %v600 = vpop.permute.xlu0 %599
      %603 = vset.pattern.permute.xlu0 0
      %604 = vperm.xlu0 %603, %v391
      %v605 = vpop.permute.xlu0 %604
      %608 = vset.pattern.permute.xlu0 0
      %609 = vperm.xlu0 %608, %v392
      %v610 = vpop.permute.xlu0 %609
      %613 = vset.pattern.permute.xlu0 0
      %614 = vperm.xlu0 %613, %v393
      %v615 = vpop.permute.xlu0 %614
      %618 = vset.pattern.permute.xlu0 0
      %619 = vperm.xlu0 %618, %v394
      %v620 = vpop.permute.xlu0 %619
      %623 = vset.pattern.permute.xlu0 0
      %624 = vperm.xlu0 %623, %v395
      %v625 = vpop.permute.xlu0 %624
      %v627 = vmul.f32 %v557, %v590
      %v628 = vmul.f32 %v560, %v595
      %v629 = vmul.f32 %v565, %v600
      %v630 = vmul.f32 %v568, %v605
      %v631 = vmul.f32 %v573, %v610
      %v632 = vmul.f32 %v576, %v615
      %v633 = vmul.f32 %v581, %v620
      %v634 = vmul.f32 %v584, %v625
      %v635 = vadd.f32 %v627, 0.0
      %v636 = vadd.f32 %v628, 0.0
      %v637 = vadd.f32 %v629, 0.0
      %v638 = vadd.f32 %v630, 0.0
      %v639 = vadd.f32 %v631, 0.0
      %v640 = vadd.f32 %v632, 0.0
      %v641 = vadd.f32 %v633, 0.0
      %v642 = vadd.f32 %v634, 0.0
      %v643 = vld [vmem:[#allocation2] sm:$0xf0]
      %v644 = vld [vmem:[%s5 + $0x40] sm:$0xf]
      %v645 = vld [vmem:[%s5 + $0x44] sm:$0xf]
      %v646 = vld [vmem:[%s5 + $0x48] sm:$0xf]
      %v647 = vld [vmem:[%s5 + $0x4c] sm:$0xf]
      %v648 = vld [vmem:[%s5 + $0x50] sm:$0xf]
      %v649 = vld [vmem:[%s5 + $0x54] sm:$0xf]
      %v650 = vld [vmem:[%s5 + $0x58] sm:$0xf]
      %v651 = vld [vmem:[%s5 + $0x5c] sm:$0xf]
      %v652 = vld [vmem:[%s5 + $0x60] sm:$0xf]
      %v653 = vld [vmem:[%s5 + $0x64] sm:$0xf]
      %v654 = vld [vmem:[%s5 + $0x68] sm:$0xf]
      %v655 = vld [vmem:[%s5 + $0x6c] sm:$0xf]
      %v656 = vld [vmem:[%s5 + $0x70] sm:$0xf]
      %v657 = vld [vmem:[%s5 + $0x74] sm:$0xf]
      %v658 = vld [vmem:[%s5 + $0x78] sm:$0xf]
      %v659 = vld [vmem:[%s5 + $0x7c] sm:$0xf]
      %vm665 = vcmask 1043456
      %v666 = vrot.slane %v643, 4
      %v667 = vrot.slane %v405, 4
      %v668 = vsel %vm665, %v666, %v667
      %v669 = vrot.slane %v406, 4
      %v670 = vsel %vm665, %v667, %v669
      %v671 = vrot.slane %v407, 4
      %v672 = vsel %vm665, %v669, %v671
      %v673 = vrot.slane %v408, 4
      %v674 = vsel %vm665, %v671, %v673
      %v695 = vunpack.c.l.b16 %v644
      %v696 = vunpack.c.l.b16 %v645
      %v697 = vunpack.c.l.b16 %v646
      %v698 = vunpack.c.l.b16 %v647
      %v699 = vunpack.c.l.b16 %v648
      %v700 = vunpack.c.l.b16 %v649
      %v701 = vunpack.c.l.b16 %v650
      %v702 = vunpack.c.l.b16 %v651
      %v703 = vunpack.c.l.b16 %v652
      %v704 = vunpack.c.l.b16 %v653
      %v705 = vunpack.c.l.b16 %v654
      %v706 = vunpack.c.l.b16 %v655
      %v707 = vunpack.c.l.b16 %v656
      %v708 = vunpack.c.l.b16 %v657
      %v709 = vunpack.c.l.b16 %v658
      %v710 = vunpack.c.l.b16 %v659
      %v711 = vpack.c.b16 %v696, %v695
      %v712 = vpack.c.b16 %v698, %v697
      %v713 = vpack.c.b16 %v700, %v699
      %v714 = vpack.c.b16 %v702, %v701
      %v715 = vpack.c.b16 %v704, %v703
      %v716 = vpack.c.b16 %v706, %v705
      %v717 = vpack.c.b16 %v708, %v707
      %v718 = vpack.c.b16 %v710, %v709
      %727 = vmatprep.subr.bf16.mxu0 0
      %728 = vmatpush1.bf16.msra.mxu0 %v711
      %729 = vmatprep.subr.bf16.mxu0 0
      %730 = vmatpush1.bf16.msra.mxu0 %v712
      %731 = vmatprep.subr.bf16.mxu0 0
      %732 = vmatpush1.bf16.msra.mxu0 %v713
      %733 = vmatprep.subr.bf16.mxu0 0
      %734 = vmatpush1.bf16.msra.mxu0 %v714
      %735 = vmatprep.subr.bf16.mxu0 0
      %736 = vmatpush1.bf16.msra.mxu0 %v715
      %737 = vmatprep.subr.bf16.mxu0 0
      %738 = vmatpush1.bf16.msra.mxu0 %v716
      %739 = vmatprep.subr.bf16.mxu0 0
      %740 = vmatpush1.bf16.msra.mxu0 %v717
      %741 = vmatprep.subr.bf16.mxu0 0
      %742 = vmatpush1.bf16.msra.mxu0 %v718
      %743 = vmatprep.subr.bf16.mxu0 0
      %744 = vmatpush1.bf16.msra.mxu0 0
      %745 = vmatprep.subr.bf16.mxu0 0
      %746 = vmatpush1.bf16.msra.mxu0 0
      %747 = vmatprep.subr.bf16.mxu0 0
      %748 = vmatpush1.bf16.msra.mxu0 0
      %749 = vmatprep.subr.bf16.mxu0 0
      %750 = vmatpush1.bf16.msra.mxu0 0
      %751 = vmatprep.subr.bf16.mxu0 0
      %752 = vmatpush1.bf16.msra.mxu0 0
      %753 = vmatprep.subr.bf16.mxu0 0
      %754 = vmatpush1.bf16.msra.mxu0 0
      %755 = vmatprep.subr.bf16.mxu0 0
      %756 = vmatpush1.bf16.msra.mxu0 0
      %757 = vmatprep.subr.bf16.mxu0 0
      %758 = vmatpush1.bf16.msra.mxu0 0
      %759 = vmatprep.mubr.bf16.mxu0 0
      %760 = vmatmul.mubr.bf16.gmra.mrb[0].mxu0 %v668
      %v761 = vpop.f32.mrb[0].mxu0
      %v762 = vadd.f32 0.0, %v761
      %v763 = vpop.f32.mrb[0].mxu0
      %v764 = vpop.f32.mrb[0].mxu0
      %v765 = vadd.f32 0.0, %v764
      %v766 = vpop.f32.mrb[0].mxu0
      %767 = vmatprep.mubr.bf16.mxu0 0
      %768 = vmatmul.mubr.bf16.gmra.mrb[0].mxu0 %v670
      %v769 = vpop.f32.mrb[0].mxu0
      %v770 = vadd.f32 0.0, %v769
      %v771 = vpop.f32.mrb[0].mxu0
      %v772 = vpop.f32.mrb[0].mxu0
      %v773 = vadd.f32 0.0, %v772
      %v774 = vpop.f32.mrb[0].mxu0
      %775 = vmatprep.mubr.bf16.mxu0 0
      %776 = vmatmul.mubr.bf16.gmra.mrb[0].mxu0 %v672
      %v777 = vpop.f32.mrb[0].mxu0
      %v778 = vadd.f32 0.0, %v777
      %v779 = vpop.f32.mrb[0].mxu0
      %v780 = vpop.f32.mrb[0].mxu0
      %v781 = vadd.f32 0.0, %v780
      %v782 = vpop.f32.mrb[0].mxu0
      %783 = vmatprep.mubr.bf16.mxu0 0
      %784 = vmatmul.mubr.bf16.gmra.mrb[0].mxu0 %v674
      %v785 = vpop.f32.mrb[0].mxu0
      %v786 = vadd.f32 0.0, %v785
      %v787 = vpop.f32.mrb[0].mxu0
      %v788 = vpop.f32.mrb[0].mxu0
      %v789 = vadd.f32 0.0, %v788
      %v790 = vpop.f32.mrb[0].mxu0
      %791 = vdwg.mxu0
      %v792 = vadd.f32 %v635, %v762
      %v793 = vadd.f32 %v636, %v765
      %v794 = vadd.f32 %v637, %v770
      %v795 = vadd.f32 %v638, %v773
      %v796 = vadd.f32 %v639, %v778
      %v797 = vadd.f32 %v640, %v781
      %v798 = vadd.f32 %v641, %v786
      %v799 = vadd.f32 %v642, %v789
      %v800 = vld [vmem:[#allocation2 + $0x20] sm:$0x1f]
      %v801 = vld [vmem:[%s5 + $0x80] sm:$0xf]
      %v802 = vld [vmem:[%s5 + $0x84] sm:$0xf]
      %v803 = vld [vmem:[%s5 + $0x88] sm:$0xf]
      %v804 = vld [vmem:[%s5 + $0x8c] sm:$0xf]
      %v805 = vld [vmem:[%s5 + $0x90] sm:$0xf]
      %v806 = vld [vmem:[%s5 + $0x94] sm:$0xf]
      %v807 = vld [vmem:[%s5 + $0x98] sm:$0xf]
      %v808 = vld [vmem:[%s5 + $0x9c] sm:$0xf]
      %v809 = vld [vmem:[%s5 + $0xa0] sm:$0xf]
      %v810 = vld [vmem:[%s5 + $0xa4] sm:$0xf]
      %v811 = vld [vmem:[%s5 + $0xa8] sm:$0xf]
      %v812 = vld [vmem:[%s5 + $0xac] sm:$0xf]
      %v813 = vld [vmem:[%s5 + $0xb0] sm:$0xf]
      %v814 = vld [vmem:[%s5 + $0xb4] sm:$0xf]
      %v815 = vld [vmem:[%s5 + $0xb8] sm:$0xf]
      %v816 = vld [vmem:[%s5 + $0xbc] sm:$0xf]
      %vm817 = vsmask.f32 3328
      %v819 = vshrl.u32 %v643, 16
      %v821 = vrot.slane %v819, 4
      %v822 = vshll.u32 %v643, 16
      %v824 = vrot.slane %v822, 5
      %v825 = vor.u32 %v821, %v824
      %v826 = vrot.slane %v435, 4
      %v827 = vrot.slane %v438, 5
      %v828 = vor.u32 %v826, %v827
      %v829 = vsel %vm817, %v825, %v828
      %v830 = vrot.slane %v444, 4
      %v831 = vrot.slane %v447, 5
      %v832 = vor.u32 %v830, %v831
      %v833 = vsel %vm817, %v828, %v832
      %v834 = vrot.slane %v453, 4
      %v835 = vrot.slane %v456, 5
      %v836 = vor.u32 %v834, %v835
      %v837 = vsel %vm817, %v832, %v836
      %v839 = vshrl.u32 %v800, 16
      %v841 = vrot.slane %v839, 4
      %v842 = vshll.u32 %v800, 16
      %v844 = vrot.slane %v842, 5
      %v845 = vor.u32 %v841, %v844
      %v846 = vsel %vm817, %v836, %v845
      %v867 = vunpack.c.l.b16 %v801
      %v868 = vunpack.c.l.b16 %v802
      %v869 = vunpack.c.l.b16 %v803
      %v870 = vunpack.c.l.b16 %v804
      %v871 = vunpack.c.l.b16 %v805
      %v872 = vunpack.c.l.b16 %v806
      %v873 = vunpack.c.l.b16 %v807
      %v874 = vunpack.c.l.b16 %v808
      %v875 = vunpack.c.l.b16 %v809
      %v876 = vunpack.c.l.b16 %v810
      %v877 = vunpack.c.l.b16 %v811
      %v878 = vunpack.c.l.b16 %v812
      %v879 = vunpack.c.l.b16 %v813
      %v880 = vunpack.c.l.b16 %v814
      %v881 = vunpack.c.l.b16 %v815
      %v882 = vunpack.c.l.b16 %v816
      %v883 = vpack.c.b16 %v868, %v867
      %v884 = vpack.c.b16 %v870, %v869
      %v885 = vpack.c.b16 %v872, %v871
      %v886 = vpack.c.b16 %v874, %v873
      %v887 = vpack.c.b16 %v876, %v875
      %v888 = vpack.c.b16 %v878, %v877
      %v889 = vpack.c.b16 %v880, %v879
      %v890 = vpack.c.b16 %v882, %v881
      %899 = vmatprep.subr.bf16.mxu0 0
      %900 = vmatpush1.bf16.msra.mxu0 %v883
      %901 = vmatprep.subr.bf16.mxu0 0
      %902 = vmatpush1.bf16.msra.mxu0 %v884
      %903 = vmatprep.subr.bf16.mxu0 0
      %904 = vmatpush1.bf16.msra.mxu0 %v885
      %905 = vmatprep.subr.bf16.mxu0 0
      %906 = vmatpush1.bf16.msra.mxu0 %v886
      %907 = vmatprep.subr.bf16.mxu0 0
      %908 = vmatpush1.bf16.msra.mxu0 %v887
      %909 = vmatprep.subr.bf16.mxu0 0
      %910 = vmatpush1.bf16.msra.mxu0 %v888
      %911 = vmatprep.subr.bf16.mxu0 0
      %912 = vmatpush1.bf16.msra.mxu0 %v889
      %913 = vmatprep.subr.bf16.mxu0 0
      %914 = vmatpush1.bf16.msra.mxu0 %v890
      %915 = vmatprep.subr.bf16.mxu0 0
      %916 = vmatpush1.bf16.msra.mxu0 0
      %917 = vmatprep.subr.bf16.mxu0 0
      %918 = vmatpush1.bf16.msra.mxu0 0
      %919 = vmatprep.subr.bf16.mxu0 0
      %920 = vmatpush1.bf16.msra.mxu0 0
      %921 = vmatprep.subr.bf16.mxu0 0
      %922 = vmatpush1.bf16.msra.mxu0 0
      %923 = vmatprep.subr.bf16.mxu0 0
      %924 = vmatpush1.bf16.msra.mxu0 0
      %925 = vmatprep.subr.bf16.mxu0 0
      %926 = vmatpush1.bf16.msra.mxu0 0
      %927 = vmatprep.subr.bf16.mxu0 0
      %928 = vmatpush1.bf16.msra.mxu0 0
      %929 = vmatprep.subr.bf16.mxu0 0
      %930 = vmatpush1.bf16.msra.mxu0 0
      %931 = vmatprep.mubr.bf16.mxu0 0
      %932 = vmatmul.mubr.bf16.gmra.mrb[0].mxu0 %v829
      %v933 = vpop.f32.mrb[0].mxu0
      %v934 = vadd.f32 0.0, %v933
      %v935 = vpop.f32.mrb[0].mxu0
      %v936 = vpop.f32.mrb[0].mxu0
      %v937 = vadd.f32 0.0, %v936
      %v938 = vpop.f32.mrb[0].mxu0
      %939 = vmatprep.mubr.bf16.mxu0 0
      %940 = vmatmul.mubr.bf16.gmra.mrb[0].mxu0 %v833
      %v941 = vpop.f32.mrb[0].mxu0
      %v942 = vadd.f32 0.0, %v941
      %v943 = vpop.f32.mrb[0].mxu0
      %v944 = vpop.f32.mrb[0].mxu0
      %v945 = vadd.f32 0.0, %v944
      %v946 = vpop.f32.mrb[0].mxu0
      %947 = vmatprep.mubr.bf16.mxu0 0
      %948 = vmatmul.mubr.bf16.gmra.mrb[0].mxu0 %v837
      %v949 = vpop.f32.mrb[0].mxu0
      %v950 = vadd.f32 0.0, %v949
      %v951 = vpop.f32.mrb[0].mxu0
      %v952 = vpop.f32.mrb[0].mxu0
      %v953 = vadd.f32 0.0, %v952
      %v954 = vpop.f32.mrb[0].mxu0
      %955 = vmatprep.mubr.bf16.mxu0 0
      %956 = vmatmul.mubr.bf16.gmra.mrb[0].mxu0 %v846
      %v957 = vpop.f32.mrb[0].mxu0
      %v958 = vadd.f32 0.0, %v957
      %v959 = vpop.f32.mrb[0].mxu0
      %v960 = vpop.f32.mrb[0].mxu0
      %v961 = vadd.f32 0.0, %v960
      %v962 = vpop.f32.mrb[0].mxu0
      %963 = vdwg.mxu0
      %965 = vset.pattern.permute.xlu0 0
      %966 = vperm.xlu0 %965, %v396
      %v967 = vpop.permute.xlu0 %966
      %970 = vset.pattern.permute.xlu0 0
      %971 = vperm.xlu0 %970, %v397
      %v972 = vpop.permute.xlu0 %971
      %975 = vset.pattern.permute.xlu0 0
      %976 = vperm.xlu0 %975, %v398
      %v977 = vpop.permute.xlu0 %976
      %980 = vset.pattern.permute.xlu0 0
      %981 = vperm.xlu0 %980, %v399
      %v982 = vpop.permute.xlu0 %981
      %985 = vset.pattern.permute.xlu0 0
      %986 = vperm.xlu0 %985, %v400
      %v987 = vpop.permute.xlu0 %986
      %990 = vset.pattern.permute.xlu0 0
      %991 = vperm.xlu0 %990, %v401
      %v992 = vpop.permute.xlu0 %991
      %995 = vset.pattern.permute.xlu0 0
      %996 = vperm.xlu0 %995, %v402
      %v997 = vpop.permute.xlu0 %996
      %1000 = vset.pattern.permute.xlu0 0
      %1001 = vperm.xlu0 %1000, %v403
      %v1002 = vpop.permute.xlu0 %1001
      %v1004 = vmul.f32 %v934, %v967
      %v1005 = vmul.f32 %v937, %v972
      %v1006 = vmul.f32 %v942, %v977
      %v1007 = vmul.f32 %v945, %v982
      %v1008 = vmul.f32 %v950, %v987
      %v1009 = vmul.f32 %v953, %v992
      %v1010 = vmul.f32 %v958, %v997
      %v1011 = vmul.f32 %v961, %v1002
      %v1012 = vadd.f32 %v792, %v1004
      %v1013 = vadd.f32 %v793, %v1005
      %v1014 = vadd.f32 %v794, %v1006
      %v1015 = vadd.f32 %v795, %v1007
      %v1016 = vadd.f32 %v796, %v1008
      %v1017 = vadd.f32 %v797, %v1009
      %v1018 = vadd.f32 %v798, %v1010
      %v1019 = vadd.f32 %v799, %v1011
      %v1020 = vld [vmem:[#allocation2] sm:$0x80]
      %v1021 = vld [vmem:[#allocation2 + $0x20] sm:$0xff]
      %v1022 = vld [vmem:[%s5 + $0xc0] sm:$0xf]
      %v1023 = vld [vmem:[%s5 + $0xc4] sm:$0xf]
      %v1024 = vld [vmem:[%s5 + $0xc8] sm:$0xf]
      %v1025 = vld [vmem:[%s5 + $0xcc] sm:$0xf]
      %v1026 = vld [vmem:[%s5 + $0xd0] sm:$0xf]
      %v1027 = vld [vmem:[%s5 + $0xd4] sm:$0xf]
      %v1028 = vld [vmem:[%s5 + $0xd8] sm:$0xf]
      %v1029 = vld [vmem:[%s5 + $0xdc] sm:$0xf]
      %v1030 = vld [vmem:[%s5 + $0xe0] sm:$0xf]
      %v1031 = vld [vmem:[%s5 + $0xe4] sm:$0xf]
      %v1032 = vld [vmem:[%s5 + $0xe8] sm:$0xf]
      %v1033 = vld [vmem:[%s5 + $0xec] sm:$0xf]
      %v1034 = vld [vmem:[%s5 + $0xf0] sm:$0xf]
      %v1035 = vld [vmem:[%s5 + $0xf4] sm:$0xf]
      %v1036 = vld [vmem:[%s5 + $0xf8] sm:$0xf]
      %v1037 = vld [vmem:[%s5 + $0xfc] sm:$0xf]
      %vm1038 = vsmask.f32 256
      %v1040 = vshrl.u32 %v1020, 16
      %v1042 = vrot.slane %v1040, 7
      %v1043 = vrot.slane %v435, 7
      %v1044 = vor.u32 %v1043, %v438
      %v1045 = vsel %vm1038, %v1042, %v1044
      %v1046 = vrot.slane %v444, 7
      %v1047 = vor.u32 %v1046, %v447
      %v1048 = vsel %vm1038, %v1043, %v1047
      %v1049 = vrot.slane %v453, 7
      %v1050 = vor.u32 %v1049, %v456
      %v1051 = vsel %vm1038, %v1046, %v1050
      %v1053 = vshrl.u32 %v1021, 16
      %v1055 = vrot.slane %v1053, 7
      %v1056 = vshll.u32 %v1021, 16
      %v1058 = vor.u32 %v1055, %v1056
      %v1059 = vsel %vm1038, %v1049, %v1058
      %v1080 = vunpack.c.l.b16 %v1022
      %v1081 = vunpack.c.l.b16 %v1023
      %v1082 = vunpack.c.l.b16 %v1024
      %v1083 = vunpack.c.l.b16 %v1025
      %v1084 = vunpack.c.l.b16 %v1026
      %v1085 = vunpack.c.l.b16 %v1027
      %v1086 = vunpack.c.l.b16 %v1028
      %v1087 = vunpack.c.l.b16 %v1029
      %v1088 = vunpack.c.l.b16 %v1030
      %v1089 = vunpack.c.l.b16 %v1031
      %v1090 = vunpack.c.l.b16 %v1032
      %v1091 = vunpack.c.l.b16 %v1033
      %v1092 = vunpack.c.l.b16 %v1034
      %v1093 = vunpack.c.l.b16 %v1035
      %v1094 = vunpack.c.l.b16 %v1036
      %v1095 = vunpack.c.l.b16 %v1037
      %v1096 = vpack.c.b16 %v1081, %v1080
      %v1097 = vpack.c.b16 %v1083, %v1082
      %v1098 = vpack.c.b16 %v1085, %v1084
      %v1099 = vpack.c.b16 %v1087, %v1086
      %v1100 = vpack.c.b16 %v1089, %v1088
      %v1101 = vpack.c.b16 %v1091, %v1090
      %v1102 = vpack.c.b16 %v1093, %v1092
      %v1103 = vpack.c.b16 %v1095, %v1094
      %1112 = vmatprep.subr.bf16.mxu0 0
      %1113 = vmatpush1.bf16.msra.mxu0 %v1096
      %1114 = vmatprep.subr.bf16.mxu0 0
      %1115 = vmatpush1.bf16.msra.mxu0 %v1097
      %1116 = vmatprep.subr.bf16.mxu0 0
      %1117 = vmatpush1.bf16.msra.mxu0 %v1098
      %1118 = vmatprep.subr.bf16.mxu0 0
      %1119 = vmatpush1.bf16.msra.mxu0 %v1099
      %1120 = vmatprep.subr.bf16.mxu0 0
      %1121 = vmatpush1.bf16.msra.mxu0 %v1100
      %1122 = vmatprep.subr.bf16.mxu0 0
      %1123 = vmatpush1.bf16.msra.mxu0 %v1101
      %1124 = vmatprep.subr.bf16.mxu0 0
      %1125 = vmatpush1.bf16.msra.mxu0 %v1102
      %1126 = vmatprep.subr.bf16.mxu0 0
      %1127 = vmatpush1.bf16.msra.mxu0 %v1103
      %1128 = vmatprep.subr.bf16.mxu0 0
      %1129 = vmatpush1.bf16.msra.mxu0 0
      %1130 = vmatprep.subr.bf16.mxu0 0
      %1131 = vmatpush1.bf16.msra.mxu0 0
      %1132 = vmatprep.subr.bf16.mxu0 0
      %1133 = vmatpush1.bf16.msra.mxu0 0
      %1134 = vmatprep.subr.bf16.mxu0 0
      %1135 = vmatpush1.bf16.msra.mxu0 0
      %1136 = vmatprep.subr.bf16.mxu0 0
      %1137 = vmatpush1.bf16.msra.mxu0 0
      %1138 = vmatprep.subr.bf16.mxu0 0
      %1139 = vmatpush1.bf16.msra.mxu0 0
      %1140 = vmatprep.subr.bf16.mxu0 0
      %1141 = vmatpush1.bf16.msra.mxu0 0
      %1142 = vmatprep.subr.bf16.mxu0 0
      %1143 = vmatpush1.bf16.msra.mxu0 0
      %1144 = vmatprep.mubr.bf16.mxu0 0
      %1145 = vmatmul.mubr.bf16.gmra.mrb[0].mxu0 %v1045
      %v1146 = vpop.f32.mrb[0].mxu0
      %v1147 = vadd.f32 0.0, %v1146
      %v1148 = vpop.f32.mrb[0].mxu0
      %v1149 = vpop.f32.mrb[0].mxu0
      %v1150 = vadd.f32 0.0, %v1149
      %v1151 = vpop.f32.mrb[0].mxu0
      %1152 = vmatprep.mubr.bf16.mxu0 0
      %1153 = vmatmul.mubr.bf16.gmra.mrb[0].mxu0 %v1048
      %v1154 = vpop.f32.mrb[0].mxu0
      %v1155 = vadd.f32 0.0, %v1154
      %v1156 = vpop.f32.mrb[0].mxu0
      %v1157 = vpop.f32.mrb[0].mxu0
      %v1158 = vadd.f32 0.0, %v1157
      %v1159 = vpop.f32.mrb[0].mxu0
      %1160 = vmatprep.mubr.bf16.mxu0 0
      %1161 = vmatmul.mubr.bf16.gmra.mrb[0].mxu0 %v1051
      %v1162 = vpop.f32.mrb[0].mxu0
      %v1163 = vadd.f32 0.0, %v1162
      %v1164 = vpop.f32.mrb[0].mxu0
      %v1165 = vpop.f32.mrb[0].mxu0
      %v1166 = vadd.f32 0.0, %v1165
      %v1167 = vpop.f32.mrb[0].mxu0
      %1168 = vmatprep.mubr.bf16.mxu0 0
      %1169 = vmatmul.mubr.bf16.gmra.mrb[0].mxu0 %v1059
      %v1170 = vpop.f32.mrb[0].mxu0
      %v1171 = vadd.f32 0.0, %v1170
      %v1172 = vpop.f32.mrb[0].mxu0
      %v1173 = vpop.f32.mrb[0].mxu0
      %v1174 = vadd.f32 0.0, %v1173
      %v1175 = vpop.f32.mrb[0].mxu0
      %1176 = vdwg.mxu0
      %v1177 = vmul.f32 %v1147, %v590
      %v1178 = vmul.f32 %v1150, %v595
      %v1179 = vmul.f32 %v1155, %v600
      %v1180 = vmul.f32 %v1158, %v605
      %v1181 = vmul.f32 %v1163, %v610
      %v1182 = vmul.f32 %v1166, %v615
      %v1183 = vmul.f32 %v1171, %v620
      %v1184 = vmul.f32 %v1174, %v625
      %v1185 = vadd.f32 %v1012, %v1177
      %v1186 = vadd.f32 %v1013, %v1178
      %v1187 = vadd.f32 %v1014, %v1179
      %v1188 = vadd.f32 %v1015, %v1180
      %v1189 = vadd.f32 %v1016, %v1181
      %v1190 = vadd.f32 %v1017, %v1182
      %v1191 = vadd.f32 %v1018, %v1183
      %v1192 = vadd.f32 %v1019, %v1184
      %v1193 = vld [vmem:[%s5 + $0x100] sm:$0xf]
      %v1194 = vld [vmem:[%s5 + $0x104] sm:$0xf]
      %v1195 = vld [vmem:[%s5 + $0x108] sm:$0xf]
      %v1196 = vld [vmem:[%s5 + $0x10c] sm:$0xf]
      %v1197 = vld [vmem:[%s5 + $0x110] sm:$0xf]
      %v1198 = vld [vmem:[%s5 + $0x114] sm:$0xf]
      %v1199 = vld [vmem:[%s5 + $0x118] sm:$0xf]
      %v1200 = vld [vmem:[%s5 + $0x11c] sm:$0xf]
      %v1201 = vld [vmem:[%s5 + $0x120] sm:$0xf]
      %v1202 = vld [vmem:[%s5 + $0x124] sm:$0xf]
      %v1203 = vld [vmem:[%s5 + $0x128] sm:$0xf]
      %v1204 = vld [vmem:[%s5 + $0x12c] sm:$0xf]
      %v1205 = vld [vmem:[%s5 + $0x130] sm:$0xf]
      %v1206 = vld [vmem:[%s5 + $0x134] sm:$0xf]
      %v1207 = vld [vmem:[%s5 + $0x138] sm:$0xf]
      %v1208 = vld [vmem:[%s5 + $0x13c] sm:$0xf]
      %v1225 = vunpack.c.l.b16 %v1193
      %v1226 = vunpack.c.l.b16 %v1194
      %v1227 = vunpack.c.l.b16 %v1195
      %v1228 = vunpack.c.l.b16 %v1196
      %v1229 = vunpack.c.l.b16 %v1197
      %v1230 = vunpack.c.l.b16 %v1198
      %v1231 = vunpack.c.l.b16 %v1199
      %v1232 = vunpack.c.l.b16 %v1200
      %v1233 = vunpack.c.l.b16 %v1201
      %v1234 = vunpack.c.l.b16 %v1202
      %v1235 = vunpack.c.l.b16 %v1203
      %v1236 = vunpack.c.l.b16 %v1204
      %v1237 = vunpack.c.l.b16 %v1205
      %v1238 = vunpack.c.l.b16 %v1206
      %v1239 = vunpack.c.l.b16 %v1207
      %v1240 = vunpack.c.l.b16 %v1208
      %v1241 = vpack.c.b16 %v1226, %v1225
      %v1242 = vpack.c.b16 %v1228, %v1227
      %v1243 = vpack.c.b16 %v1230, %v1229
      %v1244 = vpack.c.b16 %v1232, %v1231
      %v1245 = vpack.c.b16 %v1234, %v1233
      %v1246 = vpack.c.b16 %v1236, %v1235
      %v1247 = vpack.c.b16 %v1238, %v1237
      %v1248 = vpack.c.b16 %v1240, %v1239
      %1257 = vmatprep.subr.bf16.mxu0 0
      %1258 = vmatpush1.bf16.msra.mxu0 %v1241
      %1259 = vmatprep.subr.bf16.mxu0 0
      %1260 = vmatpush1.bf16.msra.mxu0 %v1242
      %1261 = vmatprep.subr.bf16.mxu0 0
      %1262 = vmatpush1.bf16.msra.mxu0 %v1243
      %1263 = vmatprep.subr.bf16.mxu0 0
      %1264 = vmatpush1.bf16.msra.mxu0 %v1244
      %1265 = vmatprep.subr.bf16.mxu0 0
      %1266 = vmatpush1.bf16.msra.mxu0 %v1245
      %1267 = vmatprep.subr.bf16.mxu0 0
      %1268 = vmatpush1.bf16.msra.mxu0 %v1246
      %1269 = vmatprep.subr.bf16.mxu0 0
      %1270 = vmatpush1.bf16.msra.mxu0 %v1247
      %1271 = vmatprep.subr.bf16.mxu0 0
      %1272 = vmatpush1.bf16.msra.mxu0 %v1248
      %1273 = vmatprep.subr.bf16.mxu0 0
      %1274 = vmatpush1.bf16.msra.mxu0 0
      %1275 = vmatprep.subr.bf16.mxu0 0
      %1276 = vmatpush1.bf16.msra.mxu0 0
      %1277 = vmatprep.subr.bf16.mxu0 0
      %1278 = vmatpush1.bf16.msra.mxu0 0
      %1279 = vmatprep.subr.bf16.mxu0 0
      %1280 = vmatpush1.bf16.msra.mxu0 0
      %1281 = vmatprep.subr.bf16.mxu0 0
      %1282 = vmatpush1.bf16.msra.mxu0 0
      %1283 = vmatprep.subr.bf16.mxu0 0
      %1284 = vmatpush1.bf16.msra.mxu0 0
      %1285 = vmatprep.subr.bf16.mxu0 0
      %1286 = vmatpush1.bf16.msra.mxu0 0
      %1287 = vmatprep.subr.bf16.mxu0 0
      %1288 = vmatpush1.bf16.msra.mxu0 0
      %1289 = vmatprep.mubr.bf16.mxu0 0
      %1290 = vmatmul.mubr.bf16.gmra.mrb[0].mxu0 %v405
      %v1291 = vpop.f32.mrb[0].mxu0
      %v1292 = vadd.f32 0.0, %v1291
      %v1293 = vpop.f32.mrb[0].mxu0
      %v1294 = vpop.f32.mrb[0].mxu0
      %v1295 = vadd.f32 0.0, %v1294
      %v1296 = vpop.f32.mrb[0].mxu0
      %1297 = vmatprep.mubr.bf16.mxu0 0
      %1298 = vmatmul.mubr.bf16.gmra.mrb[0].mxu0 %v406
      %v1299 = vpop.f32.mrb[0].mxu0
      %v1300 = vadd.f32 0.0, %v1299
      %v1301 = vpop.f32.mrb[0].mxu0
      %v1302 = vpop.f32.mrb[0].mxu0
      %v1303 = vadd.f32 0.0, %v1302
      %v1304 = vpop.f32.mrb[0].mxu0
      %1305 = vmatprep.mubr.bf16.mxu0 0
      %1306 = vmatmul.mubr.bf16.gmra.mrb[0].mxu0 %v407
      %v1307 = vpop.f32.mrb[0].mxu0
      %v1308 = vadd.f32 0.0, %v1307
      %v1309 = vpop.f32.mrb[0].mxu0
      %v1310 = vpop.f32.mrb[0].mxu0
      %v1311 = vadd.f32 0.0, %v1310
      %v1312 = vpop.f32.mrb[0].mxu0
      %1313 = vmatprep.mubr.bf16.mxu0 0
      %1314 = vmatmul.mubr.bf16.gmra.mrb[0].mxu0 %v1021
      %v1315 = vpop.f32.mrb[0].mxu0
      %v1316 = vadd.f32 0.0, %v1315
      %v1317 = vpop.f32.mrb[0].mxu0
      %v1318 = vpop.f32.mrb[0].mxu0
      %v1319 = vadd.f32 0.0, %v1318
      %v1320 = vpop.f32.mrb[0].mxu0
      %1321 = vdwg.mxu0
      %v1322 = vadd.f32 %v1185, %v1292
      %v1323 = vadd.f32 %v1186, %v1295
      %v1324 = vadd.f32 %v1187, %v1300
      %v1325 = vadd.f32 %v1188, %v1303
      %v1326 = vadd.f32 %v1189, %v1308
      %v1327 = vadd.f32 %v1190, %v1311
      %v1328 = vadd.f32 %v1191, %v1316
      %v1329 = vadd.f32 %v1192, %v1319
      %v1330 = vld [vmem:[#allocation2 + $0x8] sm:$0xff]
      %v1331 = vld [vmem:[#allocation2 + $0x10] sm:$0xff]
      %v1332 = vld [vmem:[#allocation2 + $0x18] sm:$0xff]
      %v1333 = vld [vmem:[#allocation2 + $0x20] sm:$0xff]
      %v1334 = vld [vmem:[#allocation2 + $0x28] sm:$0x1]
      %v1335 = vld [vmem:[%s5 + $0x140] sm:$0xf]
      %v1336 = vld [vmem:[%s5 + $0x144] sm:$0xf]
      %v1337 = vld [vmem:[%s5 + $0x148] sm:$0xf]
      %v1338 = vld [vmem:[%s5 + $0x14c] sm:$0xf]
      %v1339 = vld [vmem:[%s5 + $0x150] sm:$0xf]
      %v1340 = vld [vmem:[%s5 + $0x154] sm:$0xf]
      %v1341 = vld [vmem:[%s5 + $0x158] sm:$0xf]
      %v1342 = vld [vmem:[%s5 + $0x15c] sm:$0xf]
      %v1343 = vld [vmem:[%s5 + $0x160] sm:$0xf]
      %v1344 = vld [vmem:[%s5 + $0x164] sm:$0xf]
      %v1345 = vld [vmem:[%s5 + $0x168] sm:$0xf]
      %v1346 = vld [vmem:[%s5 + $0x16c] sm:$0xf]
      %v1347 = vld [vmem:[%s5 + $0x170] sm:$0xf]
      %v1348 = vld [vmem:[%s5 + $0x174] sm:$0xf]
      %v1349 = vld [vmem:[%s5 + $0x178] sm:$0xf]
      %v1350 = vld [vmem:[%s5 + $0x17c] sm:$0xf]
      %vm1351 = vsmask.f32 7424
      %v1353 = vshrl.u32 %v1330, 16
      %v1355 = vshll.u32 %v1330, 16
      %v1357 = vrot.slane %v1355, 1
      %v1358 = vor.u32 %v1353, %v1357
      %v1360 = vshll.u32 %v1331, 16
      %v1362 = vrot.slane %v1360, 1
      %v1363 = vsel %vm1351, %v1358, %v1362
      %v1364 = vshrl.u32 %v1331, 16
      %v1366 = vor.u32 %v1364, %v1362
      %v1368 = vshll.u32 %v1332, 16
      %v1370 = vrot.slane %v1368, 1
      %v1371 = vsel %vm1351, %v1366, %v1370
      %v1372 = vshrl.u32 %v1332, 16
      %v1374 = vor.u32 %v1372, %v1370
      %v1376 = vshll.u32 %v1333, 16
      %v1378 = vrot.slane %v1376, 1
      %v1379 = vsel %vm1351, %v1374, %v1378
      %v1380 = vshrl.u32 %v1333, 16
      %v1382 = vor.u32 %v1380, %v1378
      %v1384 = vshll.u32 %v1334, 16
      %v1386 = vrot.slane %v1384, 1
      %v1387 = vsel %vm1351, %v1382, %v1386
      %v1408 = vunpack.c.l.b16 %v1335
      %v1409 = vunpack.c.l.b16 %v1336
      %v1410 = vunpack.c.l.b16 %v1337
      %v1411 = vunpack.c.l.b16 %v1338
      %v1412 = vunpack.c.l.b16 %v1339
      %v1413 = vunpack.c.l.b16 %v1340
      %v1414 = vunpack.c.l.b16 %v1341
      %v1415 = vunpack.c.l.b16 %v1342
      %v1416 = vunpack.c.l.b16 %v1343
      %v1417 = vunpack.c.l.b16 %v1344
      %v1418 = vunpack.c.l.b16 %v1345
      %v1419 = vunpack.c.l.b16 %v1346
      %v1420 = vunpack.c.l.b16 %v1347
      %v1421 = vunpack.c.l.b16 %v1348
      %v1422 = vunpack.c.l.b16 %v1349
      %v1423 = vunpack.c.l.b16 %v1350
      %v1424 = vpack.c.b16 %v1409, %v1408
      %v1425 = vpack.c.b16 %v1411, %v1410
      %v1426 = vpack.c.b16 %v1413, %v1412
      %v1427 = vpack.c.b16 %v1415, %v1414
      %v1428 = vpack.c.b16 %v1417, %v1416
      %v1429 = vpack.c.b16 %v1419, %v1418
      %v1430 = vpack.c.b16 %v1421, %v1420
      %v1431 = vpack.c.b16 %v1423, %v1422
      %1440 = vmatprep.subr.bf16.mxu0 0
      %1441 = vmatpush1.bf16.msra.mxu0 %v1424
      %1442 = vmatprep.subr.bf16.mxu0 0
      %1443 = vmatpush1.bf16.msra.mxu0 %v1425
      %1444 = vmatprep.subr.bf16.mxu0 0
      %1445 = vmatpush1.bf16.msra.mxu0 %v1426
      %1446 = vmatprep.subr.bf16.mxu0 0
      %1447 = vmatpush1.bf16.msra.mxu0 %v1427
      %1448 = vmatprep.subr.bf16.mxu0 0
      %1449 = vmatpush1.bf16.msra.mxu0 %v1428
      %1450 = vmatprep.subr.bf16.mxu0 0
      %1451 = vmatpush1.bf16.msra.mxu0 %v1429
      %1452 = vmatprep.subr.bf16.mxu0 0
      %1453 = vmatpush1.bf16.msra.mxu0 %v1430
      %1454 = vmatprep.subr.bf16.mxu0 0
      %1455 = vmatpush1.bf16.msra.mxu0 %v1431
      %1456 = vmatprep.subr.bf16.mxu0 0
      %1457 = vmatpush1.bf16.msra.mxu0 0
      %1458 = vmatprep.subr.bf16.mxu0 0
      %1459 = vmatpush1.bf16.msra.mxu0 0
      %1460 = vmatprep.subr.bf16.mxu0 0
      %1461 = vmatpush1.bf16.msra.mxu0 0
      %1462 = vmatprep.subr.bf16.mxu0 0
      %1463 = vmatpush1.bf16.msra.mxu0 0
      %1464 = vmatprep.subr.bf16.mxu0 0
      %1465 = vmatpush1.bf16.msra.mxu0 0
      %1466 = vmatprep.subr.bf16.mxu0 0
      %1467 = vmatpush1.bf16.msra.mxu0 0
      %1468 = vmatprep.subr.bf16.mxu0 0
      %1469 = vmatpush1.bf16.msra.mxu0 0
      %1470 = vmatprep.subr.bf16.mxu0 0
      %1471 = vmatpush1.bf16.msra.mxu0 0
      %1472 = vmatprep.mubr.bf16.mxu0 0
      %1473 = vmatmul.mubr.bf16.gmra.mrb[0].mxu0 %v1363
      %v1474 = vpop.f32.mrb[0].mxu0
      %v1475 = vadd.f32 0.0, %v1474
      %v1476 = vpop.f32.mrb[0].mxu0
      %v1477 = vpop.f32.mrb[0].mxu0
      %v1478 = vadd.f32 0.0, %v1477
      %v1479 = vpop.f32.mrb[0].mxu0
      %1480 = vmatprep.mubr.bf16.mxu0 0
      %1481 = vmatmul.mubr.bf16.gmra.mrb[0].mxu0 %v1371
      %v1482 = vpop.f32.mrb[0].mxu0
      %v1483 = vadd.f32 0.0, %v1482
      %v1484 = vpop.f32.mrb[0].mxu0
      %v1485 = vpop.f32.mrb[0].mxu0
      %v1486 = vadd.f32 0.0, %v1485
      %v1487 = vpop.f32.mrb[0].mxu0
      %1488 = vmatprep.mubr.bf16.mxu0 0
      %1489 = vmatmul.mubr.bf16.gmra.mrb[0].mxu0 %v1379
      %v1490 = vpop.f32.mrb[0].mxu0
      %v1491 = vadd.f32 0.0, %v1490
      %v1492 = vpop.f32.mrb[0].mxu0
      %v1493 = vpop.f32.mrb[0].mxu0
      %v1494 = vadd.f32 0.0, %v1493
      %v1495 = vpop.f32.mrb[0].mxu0
      %1496 = vmatprep.mubr.bf16.mxu0 0
      %1497 = vmatmul.mubr.bf16.gmra.mrb[0].mxu0 %v1387
      %v1498 = vpop.f32.mrb[0].mxu0
      %v1499 = vadd.f32 0.0, %v1498
      %v1500 = vpop.f32.mrb[0].mxu0
      %v1501 = vpop.f32.mrb[0].mxu0
      %v1502 = vadd.f32 0.0, %v1501
      %v1503 = vpop.f32.mrb[0].mxu0
      %1504 = vdwg.mxu0
      %v1505 = vmul.f32 %v1475, %v967
      %v1506 = vmul.f32 %v1478, %v972
      %v1507 = vmul.f32 %v1483, %v977
      %v1508 = vmul.f32 %v1486, %v982
      %v1509 = vmul.f32 %v1491, %v987
      %v1510 = vmul.f32 %v1494, %v992
      %v1511 = vmul.f32 %v1499, %v997
      %v1512 = vmul.f32 %v1502, %v1002
      %v1513 = vadd.f32 %v1322, %v1505
      %v1514 = vadd.f32 %v1323, %v1506
      %v1515 = vadd.f32 %v1324, %v1507
      %v1516 = vadd.f32 %v1325, %v1508
      %v1517 = vadd.f32 %v1326, %v1509
      %v1518 = vadd.f32 %v1327, %v1510
      %v1519 = vadd.f32 %v1328, %v1511
      %v1520 = vadd.f32 %v1329, %v1512
      %v1521 = vld [vmem:[#allocation2 + $0x8] sm:$0xf8]
      %v1522 = vld [vmem:[#allocation2 + $0x28] sm:$0xf]
      %v1523 = vld [vmem:[%s5 + $0x180] sm:$0xf]
      %v1524 = vld [vmem:[%s5 + $0x184] sm:$0xf]
      %v1525 = vld [vmem:[%s5 + $0x188] sm:$0xf]
      %v1526 = vld [vmem:[%s5 + $0x18c] sm:$0xf]
      %v1527 = vld [vmem:[%s5 + $0x190] sm:$0xf]
      %v1528 = vld [vmem:[%s5 + $0x194] sm:$0xf]
      %v1529 = vld [vmem:[%s5 + $0x198] sm:$0xf]
      %v1530 = vld [vmem:[%s5 + $0x19c] sm:$0xf]
      %v1531 = vld [vmem:[%s5 + $0x1a0] sm:$0xf]
      %v1532 = vld [vmem:[%s5 + $0x1a4] sm:$0xf]
      %v1533 = vld [vmem:[%s5 + $0x1a8] sm:$0xf]
      %v1534 = vld [vmem:[%s5 + $0x1ac] sm:$0xf]
      %v1535 = vld [vmem:[%s5 + $0x1b0] sm:$0xf]
      %v1536 = vld [vmem:[%s5 + $0x1b4] sm:$0xf]
      %v1537 = vld [vmem:[%s5 + $0x1b8] sm:$0xf]
      %v1538 = vld [vmem:[%s5 + $0x1bc] sm:$0xf]
      %v1540 = vshrl.u32 %v1521, 16
      %v1542 = vrot.slane %v1540, 3
      %v1543 = vshll.u32 %v1521, 16
      %v1545 = vrot.slane %v1543, 4
      %v1546 = vor.u32 %v1542, %v1545
      %v1547 = vrot.slane %v1364, 3
      %v1548 = vrot.slane %v1360, 4
      %v1549 = vor.u32 %v1547, %v1548
      %v1550 = vsel %vm425, %v1546, %v1549
      %v1551 = vrot.slane %v1372, 3
      %v1552 = vrot.slane %v1368, 4
      %v1553 = vor.u32 %v1551, %v1552
      %v1554 = vsel %vm425, %v1549, %v1553
      %v1555 = vrot.slane %v1380, 3
      %v1556 = vrot.slane %v1376, 4
      %v1557 = vor.u32 %v1555, %v1556
      %v1558 = vsel %vm425, %v1553, %v1557
      %v1560 = vshrl.u32 %v1522, 16
      %v1562 = vrot.slane %v1560, 3
      %v1563 = vshll.u32 %v1522, 16
      %v1565 = vrot.slane %v1563, 4
      %v1566 = vor.u32 %v1562, %v1565
      %v1567 = vsel %vm425, %v1557, %v1566
      %v1588 = vunpack.c.l.b16 %v1523
      %v1589 = vunpack.c.l.b16 %v1524
      %v1590 = vunpack.c.l.b16 %v1525
      %v1591 = vunpack.c.l.b16 %v1526
      %v1592 = vunpack.c.l.b16 %v1527
      %v1593 = vunpack.c.l.b16 %v1528
      %v1594 = vunpack.c.l.b16 %v1529
      %v1595 = vunpack.c.l.b16 %v1530
      %v1596 = vunpack.c.l.b16 %v1531
      %v1597 = vunpack.c.l.b16 %v1532
      %v1598 = vunpack.c.l.b16 %v1533
      %v1599 = vunpack.c.l.b16 %v1534
      %v1600 = vunpack.c.l.b16 %v1535
      %v1601 = vunpack.c.l.b16 %v1536
      %v1602 = vunpack.c.l.b16 %v1537
      %v1603 = vunpack.c.l.b16 %v1538
      %v1604 = vpack.c.b16 %v1589, %v1588
      %v1605 = vpack.c.b16 %v1591, %v1590
      %v1606 = vpack.c.b16 %v1593, %v1592
      %v1607 = vpack.c.b16 %v1595, %v1594
      %v1608 = vpack.c.b16 %v1597, %v1596
      %v1609 = vpack.c.b16 %v1599, %v1598
      %v1610 = vpack.c.b16 %v1601, %v1600
      %v1611 = vpack.c.b16 %v1603, %v1602
      %1620 = vmatprep.subr.bf16.mxu0 0
      %1621 = vmatpush1.bf16.msra.mxu0 %v1604
      %1622 = vmatprep.subr.bf16.mxu0 0
      %1623 = vmatpush1.bf16.msra.mxu0 %v1605
      %1624 = vmatprep.subr.bf16.mxu0 0
      %1625 = vmatpush1.bf16.msra.mxu0 %v1606
      %1626 = vmatprep.subr.bf16.mxu0 0
      %1627 = vmatpush1.bf16.msra.mxu0 %v1607
      %1628 = vmatprep.subr.bf16.mxu0 0
      %1629 = vmatpush1.bf16.msra.mxu0 %v1608
      %1630 = vmatprep.subr.bf16.mxu0 0
      %1631 = vmatpush1.bf16.msra.mxu0 %v1609
      %1632 = vmatprep.subr.bf16.mxu0 0
      %1633 = vmatpush1.bf16.msra.mxu0 %v1610
      %1634 = vmatprep.subr.bf16.mxu0 0
      %1635 = vmatpush1.bf16.msra.mxu0 %v1611
      %1636 = vmatprep.subr.bf16.mxu0 0
      %1637 = vmatpush1.bf16.msra.mxu0 0
      %1638 = vmatprep.subr.bf16.mxu0 0
      %1639 = vmatpush1.bf16.msra.mxu0 0
      %1640 = vmatprep.subr.bf16.mxu0 0
      %1641 = vmatpush1.bf16.msra.mxu0 0
      %1642 = vmatprep.subr.bf16.mxu0 0
      %1643 = vmatpush1.bf16.msra.mxu0 0
      %1644 = vmatprep.subr.bf16.mxu0 0
      %1645 = vmatpush1.bf16.msra.mxu0 0
      %1646 = vmatprep.subr.bf16.mxu0 0
      %1647 = vmatpush1.bf16.msra.mxu0 0
      %1648 = vmatprep.subr.bf16.mxu0 0
      %1649 = vmatpush1.bf16.msra.mxu0 0
      %1650 = vmatprep.subr.bf16.mxu0 0
      %1651 = vmatpush1.bf16.msra.mxu0 0
      %1652 = vmatprep.mubr.bf16.mxu0 0
      %1653 = vmatmul.mubr.bf16.gmra.mrb[0].mxu0 %v1550
      %v1654 = vpop.f32.mrb[0].mxu0
      %v1655 = vadd.f32 0.0, %v1654
      %v1656 = vpop.f32.mrb[0].mxu0
      %v1657 = vpop.f32.mrb[0].mxu0
      %v1658 = vadd.f32 0.0, %v1657
      %v1659 = vpop.f32.mrb[0].mxu0
      %1660 = vmatprep.mubr.bf16.mxu0 0
      %1661 = vmatmul.mubr.bf16.gmra.mrb[0].mxu0 %v1554
      %v1662 = vpop.f32.mrb[0].mxu0
      %v1663 = vadd.f32 0.0, %v1662
      %v1664 = vpop.f32.mrb[0].mxu0
      %v1665 = vpop.f32.mrb[0].mxu0
      %v1666 = vadd.f32 0.0, %v1665
      %v1667 = vpop.f32.mrb[0].mxu0
      %1668 = vmatprep.mubr.bf16.mxu0 0
      %1669 = vmatmul.mubr.bf16.gmra.mrb[0].mxu0 %v1558
      %v1670 = vpop.f32.mrb[0].mxu0
      %v1671 = vadd.f32 0.0, %v1670
      %v1672 = vpop.f32.mrb[0].mxu0
      %v1673 = vpop.f32.mrb[0].mxu0
      %v1674 = vadd.f32 0.0, %v1673
      %v1675 = vpop.f32.mrb[0].mxu0
      %1676 = vmatprep.mubr.bf16.mxu0 0
      %1677 = vmatmul.mubr.bf16.gmra.mrb[0].mxu0 %v1567
      %v1678 = vpop.f32.mrb[0].mxu0
      %v1679 = vadd.f32 0.0, %v1678
      %v1680 = vpop.f32.mrb[0].mxu0
      %v1681 = vpop.f32.mrb[0].mxu0
      %v1682 = vadd.f32 0.0, %v1681
      %v1683 = vpop.f32.mrb[0].mxu0
      %1684 = vdwg.mxu0
      %v1685 = vmul.f32 %v1655, %v590
      %v1686 = vmul.f32 %v1658, %v595
      %v1687 = vmul.f32 %v1663, %v600
      %v1688 = vmul.f32 %v1666, %v605
      %v1689 = vmul.f32 %v1671, %v610
      %v1690 = vmul.f32 %v1674, %v615
      %v1691 = vmul.f32 %v1679, %v620
      %v1692 = vmul.f32 %v1682, %v625
      %v1693 = vadd.f32 %v1513, %v1685
      %v1694 = vadd.f32 %v1514, %v1686
      %v1695 = vadd.f32 %v1515, %v1687
      %v1696 = vadd.f32 %v1516, %v1688
      %v1697 = vadd.f32 %v1517, %v1689
      %v1698 = vadd.f32 %v1518, %v1690
      %v1699 = vadd.f32 %v1519, %v1691
      %v1700 = vadd.f32 %v1520, %v1692
      %v1701 = vld [vmem:[#allocation2 + $0x8] sm:$0xf0]
      %v1702 = vld [vmem:[%s5 + $0x1c0] sm:$0xf]
      %v1703 = vld [vmem:[%s5 + $0x1c4] sm:$0xf]
      %v1704 = vld [vmem:[%s5 + $0x1c8] sm:$0xf]
      %v1705 = vld [vmem:[%s5 + $0x1cc] sm:$0xf]
      %v1706 = vld [vmem:[%s5 + $0x1d0] sm:$0xf]
      %v1707 = vld [vmem:[%s5 + $0x1d4] sm:$0xf]
      %v1708 = vld [vmem:[%s5 + $0x1d8] sm:$0xf]
      %v1709 = vld [vmem:[%s5 + $0x1dc] sm:$0xf]
      %v1710 = vld [vmem:[%s5 + $0x1e0] sm:$0xf]
      %v1711 = vld [vmem:[%s5 + $0x1e4] sm:$0xf]
      %v1712 = vld [vmem:[%s5 + $0x1e8] sm:$0xf]
      %v1713 = vld [vmem:[%s5 + $0x1ec] sm:$0xf]
      %v1714 = vld [vmem:[%s5 + $0x1f0] sm:$0xf]
      %v1715 = vld [vmem:[%s5 + $0x1f4] sm:$0xf]
      %v1716 = vld [vmem:[%s5 + $0x1f8] sm:$0xf]
      %v1717 = vld [vmem:[%s5 + $0x1fc] sm:$0xf]
      %v1723 = vrot.slane %v1701, 4
      %v1724 = vrot.slane %v1331, 4
      %v1725 = vsel %vm665, %v1723, %v1724
      %v1726 = vrot.slane %v1332, 4
      %v1727 = vsel %vm665, %v1724, %v1726
      %v1728 = vrot.slane %v1333, 4
      %v1729 = vsel %vm665, %v1726, %v1728
      %v1730 = vrot.slane %v1522, 4
      %v1731 = vsel %vm665, %v1728, %v1730
      %v1752 = vunpack.c.l.b16 %v1702
      %v1753 = vunpack.c.l.b16 %v1703
      %v1754 = vunpack.c.l.b16 %v1704
      %v1755 = vunpack.c.l.b16 %v1705
      %v1756 = vunpack.c.l.b16 %v1706
      %v1757 = vunpack.c.l.b16 %v1707
      %v1758 = vunpack.c.l.b16 %v1708
      %v1759 = vunpack.c.l.b16 %v1709
      %v1760 = vunpack.c.l.b16 %v1710
      %v1761 = vunpack.c.l.b16 %v1711
      %v1762 = vunpack.c.l.b16 %v1712
      %v1763 = vunpack.c.l.b16 %v1713
      %v1764 = vunpack.c.l.b16 %v1714
      %v1765 = vunpack.c.l.b16 %v1715
      %v1766 = vunpack.c.l.b16 %v1716
      %v1767 = vunpack.c.l.b16 %v1717
      %v1768 = vpack.c.b16 %v1753, %v1752
      %v1769 = vpack.c.b16 %v1755, %v1754
      %v1770 = vpack.c.b16 %v1757, %v1756
      %v1771 = vpack.c.b16 %v1759, %v1758
      %v1772 = vpack.c.b16 %v1761, %v1760
      %v1773 = vpack.c.b16 %v1763, %v1762
      %v1774 = vpack.c.b16 %v1765, %v1764
      %v1775 = vpack.c.b16 %v1767, %v1766
      %1784 = vmatprep.subr.bf16.mxu0 0
      %1785 = vmatpush1.bf16.msra.mxu0 %v1768
      %1786 = vmatprep.subr.bf16.mxu0 0
      %1787 = vmatpush1.bf16.msra.mxu0 %v1769
      %1788 = vmatprep.subr.bf16.mxu0 0
      %1789 = vmatpush1.bf16.msra.mxu0 %v1770
      %1790 = vmatprep.subr.bf16.mxu0 0
      %1791 = vmatpush1.bf16.msra.mxu0 %v1771
      %1792 = vmatprep.subr.bf16.mxu0 0
      %1793 = vmatpush1.bf16.msra.mxu0 %v1772
      %1794 = vmatprep.subr.bf16.mxu0 0
      %1795 = vmatpush1.bf16.msra.mxu0 %v1773
      %1796 = vmatprep.subr.bf16.mxu0 0
      %1797 = vmatpush1.bf16.msra.mxu0 %v1774
      %1798 = vmatprep.subr.bf16.mxu0 0
      %1799 = vmatpush1.bf16.msra.mxu0 %v1775
      %1800 = vmatprep.subr.bf16.mxu0 0
      %1801 = vmatpush1.bf16.msra.mxu0 0
      %1802 = vmatprep.subr.bf16.mxu0 0
      %1803 = vmatpush1.bf16.msra.mxu0 0
      %1804 = vmatprep.subr.bf16.mxu0 0
      %1805 = vmatpush1.bf16.msra.mxu0 0
      %1806 = vmatprep.subr.bf16.mxu0 0
      %1807 = vmatpush1.bf16.msra.mxu0 0
      %1808 = vmatprep.subr.bf16.mxu0 0
      %1809 = vmatpush1.bf16.msra.mxu0 0
      %1810 = vmatprep.subr.bf16.mxu0 0
      %1811 = vmatpush1.bf16.msra.mxu0 0
      %1812 = vmatprep.subr.bf16.mxu0 0
      %1813 = vmatpush1.bf16.msra.mxu0 0
      %1814 = vmatprep.subr.bf16.mxu0 0
      %1815 = vmatpush1.bf16.msra.mxu0 0
      %1816 = vmatprep.mubr.bf16.mxu0 0
      %1817 = vmatmul.mubr.bf16.gmra.mrb[0].mxu0 %v1725
      %v1818 = vpop.f32.mrb[0].mxu0
      %v1819 = vadd.f32 0.0, %v1818
      %v1820 = vpop.f32.mrb[0].mxu0
      %v1821 = vpop.f32.mrb[0].mxu0
      %v1822 = vadd.f32 0.0, %v1821
      %v1823 = vpop.f32.mrb[0].mxu0
      %1824 = vmatprep.mubr.bf16.mxu0 0
      %1825 = vmatmul.mubr.bf16.gmra.mrb[0].mxu0 %v1727
      %v1826 = vpop.f32.mrb[0].mxu0
      %v1827 = vadd.f32 0.0, %v1826
      %v1828 = vpop.f32.mrb[0].mxu0
      %v1829 = vpop.f32.mrb[0].mxu0
      %v1830 = vadd.f32 0.0, %v1829
      %v1831 = vpop.f32.mrb[0].mxu0
      %1832 = vmatprep.mubr.bf16.mxu0 0
      %1833 = vmatmul.mubr.bf16.gmra.mrb[0].mxu0 %v1729
      %v1834 = vpop.f32.mrb[0].mxu0
      %v1835 = vadd.f32 0.0, %v1834
      %v1836 = vpop.f32.mrb[0].mxu0
      %v1837 = vpop.f32.mrb[0].mxu0
      %v1838 = vadd.f32 0.0, %v1837
      %v1839 = vpop.f32.mrb[0].mxu0
      %1840 = vmatprep.mubr.bf16.mxu0 0
      %1841 = vmatmul.mubr.bf16.gmra.mrb[0].mxu0 %v1731
      %v1842 = vpop.f32.mrb[0].mxu0
      %v1843 = vadd.f32 0.0, %v1842
      %v1844 = vpop.f32.mrb[0].mxu0
      %v1845 = vpop.f32.mrb[0].mxu0
      %v1846 = vadd.f32 0.0, %v1845
      %v1847 = vpop.f32.mrb[0].mxu0
      %1848 = vdwg.mxu0
      %v1849 = vadd.f32 %v1693, %v1819
      %v1850 = vadd.f32 %v1694, %v1822
      %v1851 = vadd.f32 %v1695, %v1827
      %v1852 = vadd.f32 %v1696, %v1830
      %v1853 = vadd.f32 %v1697, %v1835
      %v1854 = vadd.f32 %v1698, %v1838
      %v1855 = vadd.f32 %v1699, %v1843
      %v1856 = vadd.f32 %v1700, %v1846
      %v1857 = vld [vmem:[#allocation2 + $0x28] sm:$0x1f]
      %v1858 = vld [vmem:[%s5 + $0x200] sm:$0xf]
      %v1859 = vld [vmem:[%s5 + $0x204] sm:$0xf]
      %v1860 = vld [vmem:[%s5 + $0x208] sm:$0xf]
      %v1861 = vld [vmem:[%s5 + $0x20c] sm:$0xf]
      %v1862 = vld [vmem:[%s5 + $0x210] sm:$0xf]
      %v1863 = vld [vmem:[%s5 + $0x214] sm:$0xf]
      %v1864 = vld [vmem:[%s5 + $0x218] sm:$0xf]
      %v1865 = vld [vmem:[%s5 + $0x21c] sm:$0xf]
      %v1866 = vld [vmem:[%s5 + $0x220] sm:$0xf]
      %v1867 = vld [vmem:[%s5 + $0x224] sm:$0xf]
      %v1868 = vld [vmem:[%s5 + $0x228] sm:$0xf]
      %v1869 = vld [vmem:[%s5 + $0x22c] sm:$0xf]
      %v1870 = vld [vmem:[%s5 + $0x230] sm:$0xf]
      %v1871 = vld [vmem:[%s5 + $0x234] sm:$0xf]
      %v1872 = vld [vmem:[%s5 + $0x238] sm:$0xf]
      %v1873 = vld [vmem:[%s5 + $0x23c] sm:$0xf]
      %v1875 = vshrl.u32 %v1701, 16
      %v1877 = vrot.slane %v1875, 4
      %v1878 = vshll.u32 %v1701, 16
      %v1880 = vrot.slane %v1878, 5
      %v1881 = vor.u32 %v1877, %v1880
      %v1882 = vrot.slane %v1364, 4
      %v1883 = vrot.slane %v1360, 5
      %v1884 = vor.u32 %v1882, %v1883
      %v1885 = vsel %vm817, %v1881, %v1884
      %v1886 = vrot.slane %v1372, 4
      %v1887 = vrot.slane %v1368, 5
      %v1888 = vor.u32 %v1886, %v1887
      %v1889 = vsel %vm817, %v1884, %v1888
      %v1890 = vrot.slane %v1380, 4
      %v1891 = vrot.slane %v1376, 5
      %v1892 = vor.u32 %v1890, %v1891
      %v1893 = vsel %vm817, %v1888, %v1892
      %v1895 = vshrl.u32 %v1857, 16
      %v1897 = vrot.slane %v1895, 4
      %v1898 = vshll.u32 %v1857, 16
      %v1900 = vrot.slane %v1898, 5
      %v1901 = vor.u32 %v1897, %v1900
      %v1902 = vsel %vm817, %v1892, %v1901
      %v1923 = vunpack.c.l.b16 %v1858
      %v1924 = vunpack.c.l.b16 %v1859
      %v1925 = vunpack.c.l.b16 %v1860
      %v1926 = vunpack.c.l.b16 %v1861
      %v1927 = vunpack.c.l.b16 %v1862
      %v1928 = vunpack.c.l.b16 %v1863
      %v1929 = vunpack.c.l.b16 %v1864
      %v1930 = vunpack.c.l.b16 %v1865
      %v1931 = vunpack.c.l.b16 %v1866
      %v1932 = vunpack.c.l.b16 %v1867
      %v1933 = vunpack.c.l.b16 %v1868
      %v1934 = vunpack.c.l.b16 %v1869
      %v1935 = vunpack.c.l.b16 %v1870
      %v1936 = vunpack.c.l.b16 %v1871
      %v1937 = vunpack.c.l.b16 %v1872
      %v1938 = vunpack.c.l.b16 %v1873
      %v1939 = vpack.c.b16 %v1924, %v1923
      %v1940 = vpack.c.b16 %v1926, %v1925
      %v1941 = vpack.c.b16 %v1928, %v1927
      %v1942 = vpack.c.b16 %v1930, %v1929
      %v1943 = vpack.c.b16 %v1932, %v1931
      %v1944 = vpack.c.b16 %v1934, %v1933
      %v1945 = vpack.c.b16 %v1936, %v1935
      %v1946 = vpack.c.b16 %v1938, %v1937
      %1955 = vmatprep.subr.bf16.mxu0 0
      %1956 = vmatpush1.bf16.msra.mxu0 %v1939
      %1957 = vmatprep.subr.bf16.mxu0 0
      %1958 = vmatpush1.bf16.msra.mxu0 %v1940
      %1959 = vmatprep.subr.bf16.mxu0 0
      %1960 = vmatpush1.bf16.msra.mxu0 %v1941
      %1961 = vmatprep.subr.bf16.mxu0 0
      %1962 = vmatpush1.bf16.msra.mxu0 %v1942
      %1963 = vmatprep.subr.bf16.mxu0 0
      %1964 = vmatpush1.bf16.msra.mxu0 %v1943
      %1965 = vmatprep.subr.bf16.mxu0 0
      %1966 = vmatpush1.bf16.msra.mxu0 %v1944
      %1967 = vmatprep.subr.bf16.mxu0 0
      %1968 = vmatpush1.bf16.msra.mxu0 %v1945
      %1969 = vmatprep.subr.bf16.mxu0 0
      %1970 = vmatpush1.bf16.msra.mxu0 %v1946
      %1971 = vmatprep.subr.bf16.mxu0 0
      %1972 = vmatpush1.bf16.msra.mxu0 0
      %1973 = vmatprep.subr.bf16.mxu0 0
      %1974 = vmatpush1.bf16.msra.mxu0 0
      %1975 = vmatprep.subr.bf16.mxu0 0
      %1976 = vmatpush1.bf16.msra.mxu0 0
      %1977 = vmatprep.subr.bf16.mxu0 0
      %1978 = vmatpush1.bf16.msra.mxu0 0
      %1979 = vmatprep.subr.bf16.mxu0 0
      %1980 = vmatpush1.bf16.msra.mxu0 0
      %1981 = vmatprep.subr.bf16.mxu0 0
      %1982 = vmatpush1.bf16.msra.mxu0 0
      %1983 = vmatprep.subr.bf16.mxu0 0
      %1984 = vmatpush1.bf16.msra.mxu0 0
      %1985 = vmatprep.subr.bf16.mxu0 0
      %1986 = vmatpush1.bf16.msra.mxu0 0
      %1987 = vmatprep.mubr.bf16.mxu0 0
      %1988 = vmatmul.mubr.bf16.gmra.mrb[0].mxu0 %v1885
      %v1989 = vpop.f32.mrb[0].mxu0
      %v1990 = vadd.f32 0.0, %v1989
      %v1991 = vpop.f32.mrb[0].mxu0
      %v1992 = vpop.f32.mrb[0].mxu0
      %v1993 = vadd.f32 0.0, %v1992
      %v1994 = vpop.f32.mrb[0].mxu0
      %1995 = vmatprep.mubr.bf16.mxu0 0
      %1996 = vmatmul.mubr.bf16.gmra.mrb[0].mxu0 %v1889
      %v1997 = vpop.f32.mrb[0].mxu0
      %v1998 = vadd.f32 0.0, %v1997
      %v1999 = vpop.f32.mrb[0].mxu0
      %v2000 = vpop.f32.mrb[0].mxu0
      %v2001 = vadd.f32 0.0, %v2000
      %v2002 = vpop.f32.mrb[0].mxu0
      %2003 = vmatprep.mubr.bf16.mxu0 0
      %2004 = vmatmul.mubr.bf16.gmra.mrb[0].mxu0 %v1893
      %v2005 = vpop.f32.mrb[0].mxu0
      %v2006 = vadd.f32 0.0, %v2005
      %v2007 = vpop.f32.mrb[0].mxu0
      %v2008 = vpop.f32.mrb[0].mxu0
      %v2009 = vadd.f32 0.0, %v2008
      %v2010 = vpop.f32.mrb[0].mxu0
      %2011 = vmatprep.mubr.bf16.mxu0 0
      %2012 = vmatmul.mubr.bf16.gmra.mrb[0].mxu0 %v1902
      %v2013 = vpop.f32.mrb[0].mxu0
      %v2014 = vadd.f32 0.0, %v2013
      %v2015 = vpop.f32.mrb[0].mxu0
      %v2016 = vpop.f32.mrb[0].mxu0
      %v2017 = vadd.f32 0.0, %v2016
      %v2018 = vpop.f32.mrb[0].mxu0
      %2019 = vdwg.mxu0
      %v2020 = vmul.f32 %v1990, %v967
      %v2021 = vmul.f32 %v1993, %v972
      %v2022 = vmul.f32 %v1998, %v977
      %v2023 = vmul.f32 %v2001, %v982
      %v2024 = vmul.f32 %v2006, %v987
      %v2025 = vmul.f32 %v2009, %v992
      %v2026 = vmul.f32 %v2014, %v997
      %v2027 = vmul.f32 %v2017, %v1002
      %v2028 = vadd.f32 %v1849, %v2020
      %v2029 = vadd.f32 %v1850, %v2021
      %v2030 = vadd.f32 %v1851, %v2022
      %v2031 = vadd.f32 %v1852, %v2023
      %v2032 = vadd.f32 %v1853, %v2024
      %v2033 = vadd.f32 %v1854, %v2025
      %v2034 = vadd.f32 %v1855, %v2026
      %v2035 = vadd.f32 %v1856, %v2027
      %v2036 = vpack.c.bf16 %v2029, %v2028
      %v2037 = vpack.c.bf16 %v2031, %v2030
      %v2038 = vpack.c.bf16 %v2033, %v2032
      %v2039 = vpack.c.bf16 %v2035, %v2034
      %v2044 = vunpack.c.l.b16 %v2036
      %v2045 = vunpack.c.h.b16 %v2036
      %v2046 = vunpack.c.l.b16 %v2037
      %v2047 = vunpack.c.h.b16 %v2037
      %v2048 = vunpack.c.l.b16 %v2038
      %v2049 = vunpack.c.h.b16 %v2038
      %v2050 = vunpack.c.l.b16 %v2039
      %v2051 = vunpack.c.h.b16 %v2039
      %v2052 = vpack.c.b16 %v2044, %v2044
      %v2053 = vpack.c.b16 %v2045, %v2045
      %v2054 = vpack.c.b16 %v2046, %v2046
      %v2055 = vpack.c.b16 %v2047, %v2047
      %v2056 = vpack.c.b16 %v2048, %v2048
      %v2057 = vpack.c.b16 %v2049, %v2049
      %v2058 = vpack.c.b16 %v2050, %v2050
      %v2059 = vpack.c.b16 %v2051, %v2051
      %2068 = vst [vmem:[%s316] sm:$0xf] %v2052
      %2069 = vst [vmem:[%s316 + $0x4] sm:$0xf] %v2053
      %2070 = vst [vmem:[%s316 + $0x8] sm:$0xf] %v2054
      %2071 = vst [vmem:[%s316 + $0xc] sm:$0xf] %v2055
      %2072 = vst [vmem:[%s316 + $0x10] sm:$0xf] %v2056
      %2073 = vst [vmem:[%s316 + $0x14] sm:$0xf] %v2057
      %2074 = vst [vmem:[%s316 + $0x18] sm:$0xf] %v2058
      %2075 = vst [vmem:[%s316 + $0x1c] sm:$0xf] %v2059
      %v2076 = vadd.f32 %v2028, %v2029
      %v2077 = vadd.f32 %v2076, %v2030
      %v2078 = vadd.f32 %v2077, %v2031
      %v2079 = vadd.f32 %v2078, %v2032
      %v2080 = vadd.f32 %v2079, %v2033
      %v2081 = vadd.f32 %v2080, %v2034
      %v2082 = vadd.f32 %v2081, %v2035
      %v2083 = vrot.slane %v2082, 4
      %v2084 = vadd.f32 %v2082, %v2083
      %v2085 = vrot.slane %v2084, 2
      %v2086 = vadd.f32 %v2084, %v2085
      %v2087 = vrot.slane %v2086, 1
      %v2088 = vadd.f32 %v2086, %v2087
      %2089 = vst [vmem:[%s319] sm:$0x1] %v2088
      %v2090 = vmul.f32 %v2028, %v2028
      %v2091 = vmul.f32 %v2029, %v2029
      %v2092 = vmul.f32 %v2030, %v2030
      %v2093 = vmul.f32 %v2031, %v2031
      %v2094 = vmul.f32 %v2032, %v2032
      %v2095 = vmul.f32 %v2033, %v2033
      %v2096 = vmul.f32 %v2034, %v2034
      %v2097 = vmul.f32 %v2035, %v2035
      %v2098 = vadd.f32 %v2090, %v2091
      %v2099 = vadd.f32 %v2098, %v2092
      %v2100 = vadd.f32 %v2099, %v2093
      %v2101 = vadd.f32 %v2100, %v2094
      %v2102 = vadd.f32 %v2101, %v2095
      %v2103 = vadd.f32 %v2102, %v2096
      %v2104 = vadd.f32 %v2103, %v2097
      %v2105 = vrot.slane %v2104, 4
      %v2106 = vadd.f32 %v2104, %v2105
      %v2107 = vrot.slane %v2106, 2
      %v2108 = vadd.f32 %v2106, %v2107
      %v2109 = vrot.slane %v2108, 1
      %v2110 = vadd.f32 %v2108, %v2109
      %2111 = vst [vmem:[%s322] sm:$0x1] %v2110
      %p2112 = scmp.lt.s32.totalorder %s20, 1
      %s2113 = scalar_select %p2112, %s20, 1
      %s2114 = smul.addr %s2113, 8
      %s2115 = smul.addr %s2114, 4
      %s2116 = scalar_lea.vmem %s6, %s2115
      %p2117 = scmp.lt.s32.totalorder %s20, 1
      %s2118 = scalar_select %p2117, %s20, 1
      %s2119 = scalar_lea.vmem %s7, %s2118
      %p2120 = scmp.lt.s32.totalorder %s20, 1
      %s2121 = scalar_select %p2120, %s20, 1
      %s2122 = scalar_lea.vmem %s8, %s2121
      // Predicated region
      $region45: #{bottleneck_forward.5} parent=43 // pred_check
        %p2123 = pneg %p169
      $region46: #{bottleneck_forward.5} parent=43 // pred_check_branch
        %2125 = sbr.rel (%p2123) target = $region48
      $region47: #{bottleneck_forward.5} parent=43 // pred_region
        _
      $region48: #{bottleneck_forward.5} parent=43 // pred_fallthru
        _
      // Predicated region
      $region49: #{bottleneck_forward.5} parent=43 // pred_check
        %p2126 = pneg %p195
      $region50: #{bottleneck_forward.5} parent=43 // pred_check_branch
        %2128 = sbr.rel (%p2126) target = $region52
      $region51: #{bottleneck_forward.5} parent=43 // pred_region
        _
      $region52: #{bottleneck_forward.5} parent=43 // pred_fallthru
        _
      // Predicated region
      $region53: #{bottleneck_forward.5} parent=43 // pred_check
        %p2129 = pneg %p221
      $region54: #{bottleneck_forward.5} parent=43 // pred_check_branch
        %2131 = sbr.rel (%p2129) target = $region56
      $region55: #{bottleneck_forward.5} parent=43 // pred_region
        _
      $region56: #{bottleneck_forward.5} parent=43 // pred_fallthru
        _
    $region44: #{bottleneck_forward.5} parent=5 // pred_fallthru
      _
    %p2132 = scmp.le.s32.totalorder 2, %s15
    // Predicated region
    $region57: #{bottleneck_forward.5} parent=5 // pred_check
      %p2133 = pneg %p2132
    $region58: #{bottleneck_forward.5} parent=5 // pred_check_branch
      %2135 = sbr.rel (%p2133) target = $region60
    $region59: #{bottleneck_forward.5} parent=5 // pred_region
      %s2136 = ssub.s32 %s15, 2
      // Predicated region
      $region61: #{bottleneck_forward.5} parent=59 // pred_check
        %p2137 = pneg %p175
      $region62: #{bottleneck_forward.5} parent=59 // pred_check_branch
        %2139 = sbr.rel (%p2137) target = $region64
      $region63: #{bottleneck_forward.5} parent=59 // pred_region
        %p2140 = scmp.lt.s32.totalorder %s21, 1
        %s2141 = scalar_select %p2140, %s21, 1
        %s2142 = smul.addr %s2141, 8
        %s2143 = smul.addr %s2142, 4
        %s2144 = scalar_lea.vmem %s6, %s2143
      $region64: #{bottleneck_forward.5} parent=59 // pred_fallthru
        _
      // Predicated region
      $region65: #{bottleneck_forward.5} parent=59 // pred_check
        %p2145 = pneg %p201
      $region66: #{bottleneck_forward.5} parent=59 // pred_check_branch
        %2147 = sbr.rel (%p2145) target = $region68
      $region67: #{bottleneck_forward.5} parent=59 // pred_region
        %p2148 = scmp.lt.s32.totalorder %s21, 1
        %s2149 = scalar_select %p2148, %s21, 1
        %s2150 = scalar_lea.vmem %s7, %s2149
      $region68: #{bottleneck_forward.5} parent=59 // pred_fallthru
        _
      // Predicated region
      $region69: #{bottleneck_forward.5} parent=59 // pred_check
        %p2151 = pneg %p227
      $region70: #{bottleneck_forward.5} parent=59 // pred_check_branch
        %2153 = sbr.rel (%p2151) target = $region72
      $region71: #{bottleneck_forward.5} parent=59 // pred_region
        %p2154 = scmp.lt.s32.totalorder %s21, 1
        %s2155 = scalar_select %p2154, %s21, 1
        %s2156 = scalar_lea.vmem %s8, %s2155
      $region72: #{bottleneck_forward.5} parent=59 // pred_fallthru
        _
    $region60: #{bottleneck_forward.5} parent=5 // pred_fallthru
      _
  $region6: #{bottleneck_forward.5} parent=0 // loop_footer
    %s19 = sadd.s32 1, %s15
  $region7: #{bottleneck_forward.5} parent=0 // loop_footer_branch
    %14 = sbr.rel target = $region3
  $region8: #{bottleneck_forward.5} parent=0 // loop_exit
    _

</llo_original>
